<compile_context>
chip_gen: v7x
topology: tpu7x:2x2x1
jax: 0.10.0
libtpu: 0.0.40
codegen_flags: <defaults>
</compile_context>

<pallas_src>
import functools

import jax
import jax.numpy as jnp
from jax.experimental import pallas as pl
from jax.experimental.pallas import tpu as pltpu

EPS = 1e-5                 # PyTorch BatchNorm2d default eps
KSIZE = 3
PAD = 2
C_IN = 9                   # input planes
C_MID = 16                 # conv channels (layer-1 input is zero-padded 9 -> 16)
KC = KSIZE * KSIZE * C_MID  # 144: contraction depth of the per-layer im2col dot
H_IN = 9                   # 9x9 board
G = 17                     # grid edge: largest padded conv input is 13 + 2*2 = 17
L = G * G                  # 289 grid cells per sample
LP = 384                   # padded per-sample lane stride (3*128): aligned + explicit zeros
SLACK = 128                # leading zero lanes in the activation scratch (needs >= 36)
H_OUT = (11, 13, 15)       # conv output spatial sizes (k=3, pad=2 grows spatial by +2)
H_HEAD = 15
HEAD_IN = C_MID * H_HEAD * H_HEAD   # 3600


# ------------------------------ fused kernel -------------------------------

def _fused_forward_kernel(x_ref, w1_ref, p1_ref, w2_ref, p2_ref, w3_ref, p3_ref,
                          mask_ref, hw_ref, seg_ref, hb_ref, o_ref,
                          act_ref, col_ref, *, n_batch):
    # Activation layout (act_ref): (16 channels, SLACK + N*LP) f32.  Lane
    # SLACK + n*LP + h*G + w holds the channel value of sample n at grid cell
    # (h, w); lanes [0, SLACK) and each per-sample tail [L, LP) stay zero, which
    # implements the conv's pad=2 and cross-sample isolation implicitly.
    nl = n_batch * LP

    # -------- in-kernel input staging (replaces the old XLA staging fusion) -----
    act_ref[...] = jnp.zeros_like(act_ref)
    for n in range(n_batch):
        for h in range(H_IN):
            dst = SLACK + n * LP + h * G
            act_ref[0:C_IN, dst:dst + H_IN] = x_ref[n, h]      # (C, W) row slab

    def conv_bn_relu(w_ref, p_ref, layer_idx):
        # im2col: copy the 9 shifted tap views of the activation grid into the
        # (144, N*LP) scratch (16-row sublane-aligned blocks), then ONE MXU dot.
        for kh in range(KSIZE):
            for kw in range(KSIZE):
                k = kh * KSIZE + kw
                start = SLACK + (kh - PAD) * G + (kw - PAD)    # in [SLACK-36, SLACK]
                col_ref[k * C_MID:(k + 1) * C_MID, :] = act_ref[:, start:start + nl]
        acc = jnp.dot(w_ref[...], col_ref[...],
                      preferred_element_type=jnp.float32)      # (16, N*LP)
        acc = acc + p_ref[:, 0:1]                              # conv bias
        # TODO(synk): on v5e, split this K=144 contraction into K=128 + K=16 dots
        # (pack taps 0..7 contiguously) to match its 128-deep MXU; v6e/v7x take
        # the single pass.

        # Training-mode BatchNorm2d (batch stats, biased variance) over the valid
        # N*Ho*Wo positions; both lane reductions fused into one stacked sum.
        ho = H_OUT[layer_idx]
        inv_count = 1.0 / float(n_batch * ho * ho)
        m = mask_ref[layer_idx:layer_idx + 1, :]               # (1, N*LP) validity
        ma = acc * m
        sums = jnp.sum(jnp.concatenate([ma, ma * acc], axis=0),
                       axis=1, keepdims=True) * inv_count      # (32, 1)
        mean = sums[0:C_MID]
        var = jnp.maximum(sums[C_MID:2 * C_MID] - mean * mean, 0.0)
        y = (acc - mean) * jax.lax.rsqrt(var + EPS) * p_ref[:, 1:2] + p_ref[:, 2:3]
        return jnp.maximum(y, 0.0) * m                         # masked ReLU output

    a = conv_bn_relu(w1_ref, p1_ref, 0)
    act_ref[:, SLACK:SLACK + nl] = a                           # aligned full-tile store
    a = conv_bn_relu(w2_ref, p2_ref, 1)
    act_ref[:, SLACK:SLACK + nl] = a
    a = conv_bn_relu(w3_ref, p3_ref, 2)                        # conv3 output stays a value

    # -------- Linear(3600, 1) head, vectorized -----------------------------------
    prod = a * hw_ref[...]                                     # (16, N*LP), zero off-board
    per_sample = jnp.dot(prod, seg_ref[...],
                         preferred_element_type=jnp.float32)   # (16, N) segment sums
    o_ref[...] = jnp.sum(per_sample, axis=0, keepdims=True) + hb_ref[...]   # (1, N)
    # TODO(synk): before scaling n_batch (>~8), add a batch/lane-tile grid with
    # dimension_semantics=("parallel",) plus a cross-tile two-pass BN reduction so
    # vreg pressure stays flat and v7x's two TensorCores both engage.


def _vmem_spec():
    return pl.BlockSpec(memory_space=pltpu.MemorySpace.VMEM)


def fused_forward(x_nhcw, kp, n_batch):
    nl = n_batch * LP
    inputs = (x_nhcw, kp["w1"], kp["p1"], kp["w2"], kp["p2"], kp["w3"], kp["p3"],
              kp["mask"], kp["hw"], kp["seg"], kp["hb"])
    flops = 3 * 2 * C_MID * KC * nl + 2 * C_MID * nl + 2 * C_MID * nl * n_batch
    bytes_accessed = sum(int(a.size) * a.dtype.itemsize for a in inputs) + n_batch * 4
    return pl.pallas_call(
        functools.partial(_fused_forward_kernel, n_batch=n_batch),
        out_shape=jax.ShapeDtypeStruct((1, n_batch), jnp.float32),
        in_specs=[_vmem_spec() for _ in inputs],
        out_specs=_vmem_spec(),
        scratch_shapes=[pltpu.VMEM((C_MID, SLACK + nl), jnp.float32),   # activation grid
                        pltpu.VMEM((KC, nl), jnp.float32)],             # im2col operand
        cost_estimate=pl.CostEstimate(flops=flops, transcendentals=3 * C_MID,
                                      bytes_accessed=bytes_accessed),
    )(*inputs)


def dq_nash_forward(x, kp):
    """x: (N, 9, 9, 9) float32 NCHW -> (N, 1), matching DQ_nashN.forward."""
    n_batch = x.shape[0]
    # Tiny (N,C,H,W) -> (N,H,C,W) flip so the kernel can scatter (C, W) row slabs
    # with plain leading-dim indexing; all real staging happens inside the kernel.
    x_nhcw = jnp.transpose(x, (0, 2, 1, 3))
    return fused_forward(x_nhcw, kp, n_batch).reshape(n_batch, 1)


# --------------------- one-time host-side repacking -------------------------

def prepare_kernel_params(params, n_batch):
    """Repack PyTorch-layout weights into the kernel's layout.  One-time cost."""
    kp = {}
    for i, name in enumerate(("conv1", "conv2", "conv3")):
        w, b, gamma, beta = params[name]
        cout, cin = w.shape[0], w.shape[1]
        wp = jnp.zeros((cout, C_MID, KSIZE, KSIZE), jnp.float32).at[:, :cin, :, :].set(w)
        # (Cout, Cin_pad, kh, kw) -> (Cout, kh, kw, Cin_pad) -> (Cout, 144); column
        # (kh*3 + kw)*16 + cin matches the im2col row order built in the kernel.
        kp[f"w{i + 1}"] = jnp.transpose(wp, (0, 2, 3, 1)).reshape(cout, KC)
        kp[f"p{i + 1}"] = jnp.stack([b, gamma, beta], axis=1)            # (16, 3)

    masks = []
    for ho in H_OUT:   # per-layer validity mask over the padded per-sample stride
        mk = jnp.zeros((n_batch, G, G), jnp.float32).at[:, :ho, :ho].set(1.0)
        mk = jnp.pad(mk.reshape(n_batch, L), ((0, 0), (0, LP - L)))
        masks.append(mk.reshape(n_batch * LP))
    kp["mask"] = jnp.stack(masks, axis=0)                                # (3, N*LP)

    wh, bh = params["head"]                                              # (1, 3600), (1,)
    hw3 = wh.reshape(C_MID, H_HEAD, H_HEAD)                              # NCHW .view order
    hwg = (jnp.zeros((C_MID, G, G), jnp.float32)
           .at[:, :H_HEAD, :H_HEAD].set(hw3).reshape(C_MID, L))
    hwg = jnp.pad(hwg, ((0, 0), (0, LP - L)))                            # (16, LP)
    kp["hw"] = jnp.tile(hwg, (1, n_batch))                               # (16, N*LP)
    kp["seg"] = jnp.repeat(jnp.eye(n_batch, dtype=jnp.float32), LP, axis=0)  # (N*LP, N)
    kp["hb"] = bh.reshape(1, 1)
    return kp


# --------------------------- reference & init -------------------------------

def reference_forward(x, params):
    """Pure-JAX/XLA reference of DQ_nashN.forward (training-mode BatchNorm)."""
    def conv_bn_relu(h, w, b, gamma, beta):
        y = jax.lax.conv_general_dilated(
            h, w, window_strides=(1, 1), padding=((PAD, PAD), (PAD, PAD)),
            dimension_numbers=("NCHW", "OIHW", "NCHW"),
            precision=jax.lax.Precision.HIGHEST)
        y = y + b.reshape(1, -1, 1, 1)
        mean = jnp.mean(y, axis=(0, 2, 3), keepdims=True)
        var = jnp.mean((y - mean) ** 2, axis=(0, 2, 3), keepdims=True)
        y = (y - mean) * jax.lax.rsqrt(var + EPS)
        y = y * gamma.reshape(1, -1, 1, 1) + beta.reshape(1, -1, 1, 1)
        return jnp.maximum(y, 0.0)

    h = x
    for name in ("conv1", "conv2", "conv3"):
        w, b, g, bt = params[name]
        h = conv_bn_relu(h, w, b, g, bt)
    wh, bh = params["head"]
    return jnp.dot(h.reshape(h.shape[0], -1), wh.T,
                   precision=jax.lax.Precision.HIGHEST) + bh


def init_params(key):
    def u(k, shape, fan_in):
        bound = 1.0 / jnp.sqrt(jnp.float32(fan_in))
        return jax.random.uniform(k, shape, jnp.float32, -bound, bound)

    keys = jax.random.split(key, 8)
    params = {}
    params["conv1"] = (u(keys[0], (C_MID, C_IN, 3, 3), C_IN * 9),
                       u(keys[1], (C_MID,), C_IN * 9),
                       jnp.ones((C_MID,), jnp.float32),    # BN gamma
                       jnp.zeros((C_MID,), jnp.float32))   # BN beta
    params["conv2"] = (u(keys[2], (C_MID, C_MID, 3, 3), C_MID * 9),
                       u(keys[3], (C_MID,), C_MID * 9),
                       jnp.ones((C_MID,), jnp.float32),
                       jnp.zeros((C_MID,), jnp.float32))
    params["conv3"] = (u(keys[4], (C_MID, C_MID, 3, 3), C_MID * 9),
                       u(keys[5], (C_MID,), C_MID * 9),
                       jnp.ones((C_MID,), jnp.float32),
                       jnp.zeros((C_MID,), jnp.float32))
    params["head"] = (u(keys[6], (1, HEAD_IN), HEAD_IN),
                      u(keys[7], (1,), HEAD_IN))
    return params


if __name__ == "__main__":
    key = jax.random.PRNGKey(0)
    pkey, xkey = jax.random.split(key)
    params = init_params(pkey)

    # Input implied by the module: head expects 3600 = 16*15*15 and each conv
    # (k=3, pad=2) grows spatial by +2  =>  input is (N, 9, 9, 9).  batch = 2.
    n_batch = 2
    x = jax.random.normal(xkey, (n_batch, C_IN, H_IN, H_IN), dtype=jnp.float32)

    kp = prepare_kernel_params(params, n_batch)    # one-time weight/mask repack
    fwd = jax.jit(lambda xx: dq_nash_forward(xx, kp))
    out = fwd(x)
    jax.block_until_ready(out)

    assert out.shape == (n_batch, 1) and out.dtype == jnp.float32
    assert bool(jnp.all(jnp.isfinite(out)))
    ref = reference_forward(x, params)
    assert bool(jnp.max(jnp.abs(out - ref)) < 5e-2), (out, ref)
    print("KERNEL_OK")
</pallas_src>

<mosaic_0001>
module attributes {stable_mosaic.version = 11 : i64} {
  func.func @_fused_forward_kernel(%arg0: memref<2x9x9x9xf32, #tpu.memory_space<vmem>>, %arg1: memref<16x144xf32, #tpu.memory_space<vmem>>, %arg2: memref<16x3xf32, #tpu.memory_space<vmem>>, %arg3: memref<16x144xf32, #tpu.memory_space<vmem>>, %arg4: memref<16x3xf32, #tpu.memory_space<vmem>>, %arg5: memref<16x144xf32, #tpu.memory_space<vmem>>, %arg6: memref<16x3xf32, #tpu.memory_space<vmem>>, %arg7: memref<3x768xf32, #tpu.memory_space<vmem>>, %arg8: memref<16x768xf32, #tpu.memory_space<vmem>>, %arg9: memref<768x2xf32, #tpu.memory_space<vmem>>, %arg10: memref<1x1xf32, #tpu.memory_space<vmem>>, %arg11: memref<1x2xf32, #tpu.memory_space<vmem>>, %arg12: memref<16x896xf32, #tpu.memory_space<vmem>>, %arg13: memref<144x768xf32, #tpu.memory_space<vmem>>) attributes {dimension_semantics = [], scalar_prefetch = 0 : i64, scratch_operands = 2 : i64, tpu.core_type = #tpu.core_type<tc>} {
    %cst = arith.constant 0.000000e+00 : f32
    %0 = vector.broadcast %cst : f32 to vector<16x896xf32>
    %c0 = arith.constant 0 : index
    %c0_0 = arith.constant 0 : index
    %1 = vector.load %arg12[%c0, %c0_0] : memref<16x896xf32, #tpu.memory_space<vmem>>, vector<16x896xf32>
    tpu.vector_store %arg12[%c0, %c0_0], %0 {strides = array<i32>} : memref<16x896xf32, #tpu.memory_space<vmem>>, vector<16x896xf32>,
    %c0_1 = arith.constant 0 : index
    %c0_2 = arith.constant 0 : index
    %c0_3 = arith.constant 0 : index
    %c0_4 = arith.constant 0 : index
    %2 = vector.load %arg0[%c0_1, %c0_2, %c0_3, %c0_4] : memref<2x9x9x9xf32, #tpu.memory_space<vmem>>, vector<1x1x9x9xf32>
    %3 = vector.shape_cast %2 : vector<1x1x9x9xf32> to vector<9x9xf32>
    %c0_5 = arith.constant 0 : index
    %c128 = arith.constant 128 : index
    %4 = vector.load %arg12[%c0_5, %c128] : memref<16x896xf32, #tpu.memory_space<vmem>>, vector<9x9xf32>
    tpu.vector_store %arg12[%c0_5, %c128], %3 {strides = array<i32>} : memref<16x896xf32, #tpu.memory_space<vmem>>, vector<9x9xf32>,
    %c0_6 = arith.constant 0 : index
    %c1 = arith.constant 1 : index
    %c0_7 = arith.constant 0 : index
    %c0_8 = arith.constant 0 : index
    %5 = vector.load %arg0[%c0_6, %c1, %c0_7, %c0_8] : memref<2x9x9x9xf32, #tpu.memory_space<vmem>>, vector<1x1x9x9xf32>
    %6 = vector.shape_cast %5 : vector<1x1x9x9xf32> to vector<9x9xf32>
    %c0_9 = arith.constant 0 : index
    %c145 = arith.constant 145 : index
    %7 = vector.load %arg12[%c0_9, %c145] : memref<16x896xf32, #tpu.memory_space<vmem>>, vector<9x9xf32>
    tpu.vector_store %arg12[%c0_9, %c145], %6 {strides = array<i32>} : memref<16x896xf32, #tpu.memory_space<vmem>>, vector<9x9xf32>,
    %c0_10 = arith.constant 0 : index
    %c2 = arith.constant 2 : index
    %c0_11 = arith.constant 0 : index
    %c0_12 = arith.constant 0 : index
    %8 = vector.load %arg0[%c0_10, %c2, %c0_11, %c0_12] : memref<2x9x9x9xf32, #tpu.memory_space<vmem>>, vector<1x1x9x9xf32>
    %9 = vector.shape_cast %8 : vector<1x1x9x9xf32> to vector<9x9xf32>
    %c0_13 = arith.constant 0 : index
    %c162 = arith.constant 162 : index
    %10 = vector.load %arg12[%c0_13, %c162] : memref<16x896xf32, #tpu.memory_space<vmem>>, vector<9x9xf32>
    tpu.vector_store %arg12[%c0_13, %c162], %9 {strides = array<i32>} : memref<16x896xf32, #tpu.memory_space<vmem>>, vector<9x9xf32>,
    %c0_14 = arith.constant 0 : index
    %c3 = arith.constant 3 : index
    %c0_15 = arith.constant 0 : index
    %c0_16 = arith.constant 0 : index
    %11 = vector.load %arg0[%c0_14, %c3, %c0_15, %c0_16] : memref<2x9x9x9xf32, #tpu.memory_space<vmem>>, vector<1x1x9x9xf32>
    %12 = vector.shape_cast %11 : vector<1x1x9x9xf32> to vector<9x9xf32>
    %c0_17 = arith.constant 0 : index
    %c179 = arith.constant 179 : index
    %13 = vector.load %arg12[%c0_17, %c179] : memref<16x896xf32, #tpu.memory_space<vmem>>, vector<9x9xf32>
    tpu.vector_store %arg12[%c0_17, %c179], %12 {strides = array<i32>} : memref<16x896xf32, #tpu.memory_space<vmem>>, vector<9x9xf32>,
    %c0_18 = arith.constant 0 : index
    %c4 = arith.constant 4 : index
    %c0_19 = arith.constant 0 : index
    %c0_20 = arith.constant 0 : index
    %14 = vector.load %arg0[%c0_18, %c4, %c0_19, %c0_20] : memref<2x9x9x9xf32, #tpu.memory_space<vmem>>, vector<1x1x9x9xf32>
    %15 = vector.shape_cast %14 : vector<1x1x9x9xf32> to vector<9x9xf32>
    %c0_21 = arith.constant 0 : index
    %c196 = arith.constant 196 : index
    %16 = vector.load %arg12[%c0_21, %c196] : memref<16x896xf32, #tpu.memory_space<vmem>>, vector<9x9xf32>
    tpu.vector_store %arg12[%c0_21, %c196], %15 {strides = array<i32>} : memref<16x896xf32, #tpu.memory_space<vmem>>, vector<9x9xf32>,
    %c0_22 = arith.constant 0 : index
    %c5 = arith.constant 5 : index
    %c0_23 = arith.constant 0 : index
    %c0_24 = arith.constant 0 : index
    %17 = vector.load %arg0[%c0_22, %c5, %c0_23, %c0_24] : memref<2x9x9x9xf32, #tpu.memory_space<vmem>>, vector<1x1x9x9xf32>
    %18 = vector.shape_cast %17 : vector<1x1x9x9xf32> to vector<9x9xf32>
    %c0_25 = arith.constant 0 : index
    %c213 = arith.constant 213 : index
    %19 = vector.load %arg12[%c0_25, %c213] : memref<16x896xf32, #tpu.memory_space<vmem>>, vector<9x9xf32>
    tpu.vector_store %arg12[%c0_25, %c213], %18 {strides = array<i32>} : memref<16x896xf32, #tpu.memory_space<vmem>>, vector<9x9xf32>,
    %c0_26 = arith.constant 0 : index
    %c6 = arith.constant 6 : index
    %c0_27 = arith.constant 0 : index
    %c0_28 = arith.constant 0 : index
    %20 = vector.load %arg0[%c0_26, %c6, %c0_27, %c0_28] : memref<2x9x9x9xf32, #tpu.memory_space<vmem>>, vector<1x1x9x9xf32>
    %21 = vector.shape_cast %20 : vector<1x1x9x9xf32> to vector<9x9xf32>
    %c0_29 = arith.constant 0 : index
    %c230 = arith.constant 230 : index
    %22 = vector.load %arg12[%c0_29, %c230] : memref<16x896xf32, #tpu.memory_space<vmem>>, vector<9x9xf32>
    tpu.vector_store %arg12[%c0_29, %c230], %21 {strides = array<i32>} : memref<16x896xf32, #tpu.memory_space<vmem>>, vector<9x9xf32>,
    %c0_30 = arith.constant 0 : index
    %c7 = arith.constant 7 : index
    %c0_31 = arith.constant 0 : index
    %c0_32 = arith.constant 0 : index
    %23 = vector.load %arg0[%c0_30, %c7, %c0_31, %c0_32] : memref<2x9x9x9xf32, #tpu.memory_space<vmem>>, vector<1x1x9x9xf32>
    %24 = vector.shape_cast %23 : vector<1x1x9x9xf32> to vector<9x9xf32>
    %c0_33 = arith.constant 0 : index
    %c247 = arith.constant 247 : index
    %25 = vector.load %arg12[%c0_33, %c247] : memref<16x896xf32, #tpu.memory_space<vmem>>, vector<9x9xf32>
    tpu.vector_store %arg12[%c0_33, %c247], %24 {strides = array<i32>} : memref<16x896xf32, #tpu.memory_space<vmem>>, vector<9x9xf32>,
    %c0_34 = arith.constant 0 : index
    %c8 = arith.constant 8 : index
    %c0_35 = arith.constant 0 : index
    %c0_36 = arith.constant 0 : index
    %26 = vector.load %arg0[%c0_34, %c8, %c0_35, %c0_36] : memref<2x9x9x9xf32, #tpu.memory_space<vmem>>, vector<1x1x9x9xf32>
    %27 = vector.shape_cast %26 : vector<1x1x9x9xf32> to vector<9x9xf32>
    %c0_37 = arith.constant 0 : index
    %c264 = arith.constant 264 : index
    %28 = vector.load %arg12[%c0_37, %c264] : memref<16x896xf32, #tpu.memory_space<vmem>>, vector<9x9xf32>
    tpu.vector_store %arg12[%c0_37, %c264], %27 {strides = array<i32>} : memref<16x896xf32, #tpu.memory_space<vmem>>, vector<9x9xf32>,
    %c1_38 = arith.constant 1 : index
    %c0_39 = arith.constant 0 : index
    %c0_40 = arith.constant 0 : index
    %c0_41 = arith.constant 0 : index
    %29 = vector.load %arg0[%c1_38, %c0_39, %c0_40, %c0_41] : memref<2x9x9x9xf32, #tpu.memory_space<vmem>>, vector<1x1x9x9xf32>
    %30 = vector.shape_cast %29 : vector<1x1x9x9xf32> to vector<9x9xf32>
    %c0_42 = arith.constant 0 : index
    %c512 = arith.constant 512 : index
    %31 = vector.load %arg12[%c0_42, %c512] : memref<16x896xf32, #tpu.memory_space<vmem>>, vector<9x9xf32>
    tpu.vector_store %arg12[%c0_42, %c512], %30 {strides = array<i32>} : memref<16x896xf32, #tpu.memory_space<vmem>>, vector<9x9xf32>,
    %c1_43 = arith.constant 1 : index
    %c1_44 = arith.constant 1 : index
    %c0_45 = arith.constant 0 : index
    %c0_46 = arith.constant 0 : index
    %32 = vector.load %arg0[%c1_43, %c1_44, %c0_45, %c0_46] : memref<2x9x9x9xf32, #tpu.memory_space<vmem>>, vector<1x1x9x9xf32>
    %33 = vector.shape_cast %32 : vector<1x1x9x9xf32> to vector<9x9xf32>
    %c0_47 = arith.constant 0 : index
    %c529 = arith.constant 529 : index
    %34 = vector.load %arg12[%c0_47, %c529] : memref<16x896xf32, #tpu.memory_space<vmem>>, vector<9x9xf32>
    tpu.vector_store %arg12[%c0_47, %c529], %33 {strides = array<i32>} : memref<16x896xf32, #tpu.memory_space<vmem>>, vector<9x9xf32>,
    %c1_48 = arith.constant 1 : index
    %c2_49 = arith.constant 2 : index
    %c0_50 = arith.constant 0 : index
    %c0_51 = arith.constant 0 : index
    %35 = vector.load %arg0[%c1_48, %c2_49, %c0_50, %c0_51] : memref<2x9x9x9xf32, #tpu.memory_space<vmem>>, vector<1x1x9x9xf32>
    %36 = vector.shape_cast %35 : vector<1x1x9x9xf32> to vector<9x9xf32>
    %c0_52 = arith.constant 0 : index
    %c546 = arith.constant 546 : index
    %37 = vector.load %arg12[%c0_52, %c546] : memref<16x896xf32, #tpu.memory_space<vmem>>, vector<9x9xf32>
    tpu.vector_store %arg12[%c0_52, %c546], %36 {strides = array<i32>} : memref<16x896xf32, #tpu.memory_space<vmem>>, vector<9x9xf32>,
    %c1_53 = arith.constant 1 : index
    %c3_54 = arith.constant 3 : index
    %c0_55 = arith.constant 0 : index
    %c0_56 = arith.constant 0 : index
    %38 = vector.load %arg0[%c1_53, %c3_54, %c0_55, %c0_56] : memref<2x9x9x9xf32, #tpu.memory_space<vmem>>, vector<1x1x9x9xf32>
    %39 = vector.shape_cast %38 : vector<1x1x9x9xf32> to vector<9x9xf32>
    %c0_57 = arith.constant 0 : index
    %c563 = arith.constant 563 : index
    %40 = vector.load %arg12[%c0_57, %c563] : memref<16x896xf32, #tpu.memory_space<vmem>>, vector<9x9xf32>
    tpu.vector_store %arg12[%c0_57, %c563], %39 {strides = array<i32>} : memref<16x896xf32, #tpu.memory_space<vmem>>, vector<9x9xf32>,
    %c1_58 = arith.constant 1 : index
    %c4_59 = arith.constant 4 : index
    %c0_60 = arith.constant 0 : index
    %c0_61 = arith.constant 0 : index
    %41 = vector.load %arg0[%c1_58, %c4_59, %c0_60, %c0_61] : memref<2x9x9x9xf32, #tpu.memory_space<vmem>>, vector<1x1x9x9xf32>
    %42 = vector.shape_cast %41 : vector<1x1x9x9xf32> to vector<9x9xf32>
    %c0_62 = arith.constant 0 : index
    %c580 = arith.constant 580 : index
    %43 = vector.load %arg12[%c0_62, %c580] : memref<16x896xf32, #tpu.memory_space<vmem>>, vector<9x9xf32>
    tpu.vector_store %arg12[%c0_62, %c580], %42 {strides = array<i32>} : memref<16x896xf32, #tpu.memory_space<vmem>>, vector<9x9xf32>,
    %c1_63 = arith.constant 1 : index
    %c5_64 = arith.constant 5 : index
    %c0_65 = arith.constant 0 : index
    %c0_66 = arith.constant 0 : index
    %44 = vector.load %arg0[%c1_63, %c5_64, %c0_65, %c0_66] : memref<2x9x9x9xf32, #tpu.memory_space<vmem>>, vector<1x1x9x9xf32>
    %45 = vector.shape_cast %44 : vector<1x1x9x9xf32> to vector<9x9xf32>
    %c0_67 = arith.constant 0 : index
    %c597 = arith.constant 597 : index
    %46 = vector.load %arg12[%c0_67, %c597] : memref<16x896xf32, #tpu.memory_space<vmem>>, vector<9x9xf32>
    tpu.vector_store %arg12[%c0_67, %c597], %45 {strides = array<i32>} : memref<16x896xf32, #tpu.memory_space<vmem>>, vector<9x9xf32>,
    %c1_68 = arith.constant 1 : index
    %c6_69 = arith.constant 6 : index
    %c0_70 = arith.constant 0 : index
    %c0_71 = arith.constant 0 : index
    %47 = vector.load %arg0[%c1_68, %c6_69, %c0_70, %c0_71] : memref<2x9x9x9xf32, #tpu.memory_space<vmem>>, vector<1x1x9x9xf32>
    %48 = vector.shape_cast %47 : vector<1x1x9x9xf32> to vector<9x9xf32>
    %c0_72 = arith.constant 0 : index
    %c614 = arith.constant 614 : index
    %49 = vector.load %arg12[%c0_72, %c614] : memref<16x896xf32, #tpu.memory_space<vmem>>, vector<9x9xf32>
    tpu.vector_store %arg12[%c0_72, %c614], %48 {strides = array<i32>} : memref<16x896xf32, #tpu.memory_space<vmem>>, vector<9x9xf32>,
    %c1_73 = arith.constant 1 : index
    %c7_74 = arith.constant 7 : index
    %c0_75 = arith.constant 0 : index
    %c0_76 = arith.constant 0 : index
    %50 = vector.load %arg0[%c1_73, %c7_74, %c0_75, %c0_76] : memref<2x9x9x9xf32, #tpu.memory_space<vmem>>, vector<1x1x9x9xf32>
    %51 = vector.shape_cast %50 : vector<1x1x9x9xf32> to vector<9x9xf32>
    %c0_77 = arith.constant 0 : index
    %c631 = arith.constant 631 : index
    %52 = vector.load %arg12[%c0_77, %c631] : memref<16x896xf32, #tpu.memory_space<vmem>>, vector<9x9xf32>
    tpu.vector_store %arg12[%c0_77, %c631], %51 {strides = array<i32>} : memref<16x896xf32, #tpu.memory_space<vmem>>, vector<9x9xf32>,
    %c1_78 = arith.constant 1 : index
    %c8_79 = arith.constant 8 : index
    %c0_80 = arith.constant 0 : index
    %c0_81 = arith.constant 0 : index
    %53 = vector.load %arg0[%c1_78, %c8_79, %c0_80, %c0_81] : memref<2x9x9x9xf32, #tpu.memory_space<vmem>>, vector<1x1x9x9xf32>
    %54 = vector.shape_cast %53 : vector<1x1x9x9xf32> to vector<9x9xf32>
    %c0_82 = arith.constant 0 : index
    %c648 = arith.constant 648 : index
    %55 = vector.load %arg12[%c0_82, %c648] : memref<16x896xf32, #tpu.memory_space<vmem>>, vector<9x9xf32>
    tpu.vector_store %arg12[%c0_82, %c648], %54 {strides = array<i32>} : memref<16x896xf32, #tpu.memory_space<vmem>>, vector<9x9xf32>,
    %c0_83 = arith.constant 0 : index
    %c92 = arith.constant 92 : index
    %56 = vector.load %arg12[%c0_83, %c92] : memref<16x896xf32, #tpu.memory_space<vmem>>, vector<16x768xf32>
    %c0_84 = arith.constant 0 : index
    %c0_85 = arith.constant 0 : index
    %57 = vector.load %arg13[%c0_84, %c0_85] : memref<144x768xf32, #tpu.memory_space<vmem>>, vector<16x768xf32>
    tpu.vector_store %arg13[%c0_84, %c0_85], %56 {strides = array<i32>} : memref<144x768xf32, #tpu.memory_space<vmem>>, vector<16x768xf32>,
    %c0_86 = arith.constant 0 : index
    %c93 = arith.constant 93 : index
    %58 = vector.load %arg12[%c0_86, %c93] : memref<16x896xf32, #tpu.memory_space<vmem>>, vector<16x768xf32>
    %c16 = arith.constant 16 : index
    %c0_87 = arith.constant 0 : index
    %59 = vector.load %arg13[%c16, %c0_87] : memref<144x768xf32, #tpu.memory_space<vmem>>, vector<16x768xf32>
    tpu.vector_store %arg13[%c16, %c0_87], %58 {strides = array<i32>} : memref<144x768xf32, #tpu.memory_space<vmem>>, vector<16x768xf32>,
    %c0_88 = arith.constant 0 : index
    %c94 = arith.constant 94 : index
    %60 = vector.load %arg12[%c0_88, %c94] : memref<16x896xf32, #tpu.memory_space<vmem>>, vector<16x768xf32>
    %c32 = arith.constant 32 : index
    %c0_89 = arith.constant 0 : index
    %61 = vector.load %arg13[%c32, %c0_89] : memref<144x768xf32, #tpu.memory_space<vmem>>, vector<16x768xf32>
    tpu.vector_store %arg13[%c32, %c0_89], %60 {strides = array<i32>} : memref<144x768xf32, #tpu.memory_space<vmem>>, vector<16x768xf32>,
    %c0_90 = arith.constant 0 : index
    %c109 = arith.constant 109 : index
    %62 = vector.load %arg12[%c0_90, %c109] : memref<16x896xf32, #tpu.memory_space<vmem>>, vector<16x768xf32>
    %c48 = arith.constant 48 : index
    %c0_91 = arith.constant 0 : index
    %63 = vector.load %arg13[%c48, %c0_91] : memref<144x768xf32, #tpu.memory_space<vmem>>, vector<16x768xf32>
    tpu.vector_store %arg13[%c48, %c0_91], %62 {strides = array<i32>} : memref<144x768xf32, #tpu.memory_space<vmem>>, vector<16x768xf32>,
    %c0_92 = arith.constant 0 : index
    %c110 = arith.constant 110 : index
    %64 = vector.load %arg12[%c0_92, %c110] : memref<16x896xf32, #tpu.memory_space<vmem>>, vector<16x768xf32>
    %c64 = arith.constant 64 : index
    %c0_93 = arith.constant 0 : index
    %65 = vector.load %arg13[%c64, %c0_93] : memref<144x768xf32, #tpu.memory_space<vmem>>, vector<16x768xf32>
    tpu.vector_store %arg13[%c64, %c0_93], %64 {strides = array<i32>} : memref<144x768xf32, #tpu.memory_space<vmem>>, vector<16x768xf32>,
    %c0_94 = arith.constant 0 : index
    %c111 = arith.constant 111 : index
    %66 = vector.load %arg12[%c0_94, %c111] : memref<16x896xf32, #tpu.memory_space<vmem>>, vector<16x768xf32>
    %c80 = arith.constant 80 : index
    %c0_95 = arith.constant 0 : index
    %67 = vector.load %arg13[%c80, %c0_95] : memref<144x768xf32, #tpu.memory_space<vmem>>, vector<16x768xf32>
    tpu.vector_store %arg13[%c80, %c0_95], %66 {strides = array<i32>} : memref<144x768xf32, #tpu.memory_space<vmem>>, vector<16x768xf32>,
    %c0_96 = arith.constant 0 : index
    %c126 = arith.constant 126 : index
    %68 = vector.load %arg12[%c0_96, %c126] : memref<16x896xf32, #tpu.memory_space<vmem>>, vector<16x768xf32>
    %c96 = arith.constant 96 : index
    %c0_97 = arith.constant 0 : index
    %69 = vector.load %arg13[%c96, %c0_97] : memref<144x768xf32, #tpu.memory_space<vmem>>, vector<16x768xf32>
    tpu.vector_store %arg13[%c96, %c0_97], %68 {strides = array<i32>} : memref<144x768xf32, #tpu.memory_space<vmem>>, vector<16x768xf32>,
    %c0_98 = arith.constant 0 : index
    %c127 = arith.constant 127 : index
    %70 = vector.load %arg12[%c0_98, %c127] : memref<16x896xf32, #tpu.memory_space<vmem>>, vector<16x768xf32>
    %c112 = arith.constant 112 : index
    %c0_99 = arith.constant 0 : index
    %71 = vector.load %arg13[%c112, %c0_99] : memref<144x768xf32, #tpu.memory_space<vmem>>, vector<16x768xf32>
    tpu.vector_store %arg13[%c112, %c0_99], %70 {strides = array<i32>} : memref<144x768xf32, #tpu.memory_space<vmem>>, vector<16x768xf32>,
    %c0_100 = arith.constant 0 : index
    %c128_101 = arith.constant 128 : index
    %72 = vector.load %arg12[%c0_100, %c128_101] : memref<16x896xf32, #tpu.memory_space<vmem>>, vector<16x768xf32>
    %c128_102 = arith.constant 128 : index
    %c0_103 = arith.constant 0 : index
    %73 = vector.load %arg13[%c128_102, %c0_103] : memref<144x768xf32, #tpu.memory_space<vmem>>, vector<16x768xf32>
    tpu.vector_store %arg13[%c128_102, %c0_103], %72 {strides = array<i32>} : memref<144x768xf32, #tpu.memory_space<vmem>>, vector<16x768xf32>,
    %c0_104 = arith.constant 0 : index
    %c0_105 = arith.constant 0 : index
    %74 = vector.load %arg1[%c0_104, %c0_105] : memref<16x144xf32, #tpu.memory_space<vmem>>, vector<16x144xf32>
    %c0_106 = arith.constant 0 : index
    %c0_107 = arith.constant 0 : index
    %75 = vector.load %arg13[%c0_106, %c0_107] : memref<144x768xf32, #tpu.memory_space<vmem>>, vector<144x768xf32>
    %cst_108 = arith.constant dense<0.000000e+00> : vector<16x768xf32>
    %76 = tpu.matmul %74, %75, %cst_108 {dimension_numbers = #tpu.dot_dimension_numbers<[1], [0], [0], [1], [0, 0, 1, 1], [], []>} : vector<16x144xf32>, vector<144x768xf32>, vector<16x768xf32> -> vector<16x768xf32>
    %c0_109 = arith.constant 0 : index
    %c0_110 = arith.constant 0 : index
    %77 = vector.load %arg2[%c0_109, %c0_110] : memref<16x3xf32, #tpu.memory_space<vmem>>, vector<16x1xf32>
    %78 = vector.broadcast %77 : vector<16x1xf32> to vector<16x768xf32>
    %79 = arith.addf %76, %78 : vector<16x768xf32>
    %c0_111 = arith.constant 0 : index
    %c0_112 = arith.constant 0 : index
    %80 = vector.load %arg7[%c0_111, %c0_112] : memref<3x768xf32, #tpu.memory_space<vmem>>, vector<1x768xf32>
    %81 = vector.broadcast %80 : vector<1x768xf32> to vector<16x768xf32>
    %82 = arith.mulf %79, %81 : vector<16x768xf32>
    %83 = arith.mulf %82, %79 : vector<16x768xf32>
    %84 = tpu.concatenate %82, %83 in 0 : vector<16x768xf32>, vector<16x768xf32> -> vector<32x768xf32>
    %cst_113 = arith.constant dense<0.000000e+00> : vector<32xf32>
    %85 = vector.multi_reduction <add>, %84, %cst_113 [1] : vector<32x768xf32> to vector<32xf32>
    %86 = vector.shape_cast %85 : vector<32xf32> to vector<32x1xf32>
    %cst_114 = arith.constant 0.00413223123 : f32
    %87 = vector.broadcast %cst_114 : f32 to vector<32x1xf32>
    %88 = arith.mulf %86, %87 : vector<32x1xf32>
    %89 = vector.extract_strided_slice %88 {offsets = [0, 0], sizes = [16, 1], strides = [1, 1]} : vector<32x1xf32> to vector<16x1xf32>
    %90 = vector.extract_strided_slice %88 {offsets = [16, 0], sizes = [16, 1], strides = [1, 1]} : vector<32x1xf32> to vector<16x1xf32>
    %91 = arith.mulf %89, %89 : vector<16x1xf32>
    %92 = arith.subf %90, %91 : vector<16x1xf32>
    %cst_115 = arith.constant 0.000000e+00 : f32
    %93 = vector.broadcast %cst_115 : f32 to vector<16x1xf32>
    %94 = arith.maximumf %92, %93 : vector<16x1xf32>
    %95 = vector.broadcast %89 : vector<16x1xf32> to vector<16x768xf32>
    %96 = arith.subf %79, %95 : vector<16x768xf32>
    %cst_116 = arith.constant 9.99999974E-6 : f32
    %97 = vector.broadcast %cst_116 : f32 to vector<16x1xf32>
    %98 = arith.addf %94, %97 : vector<16x1xf32>
    %99 = math.rsqrt %98 : vector<16x1xf32>
    %100 = vector.broadcast %99 : vector<16x1xf32> to vector<16x768xf32>
    %101 = arith.mulf %96, %100 : vector<16x768xf32>
    %c0_117 = arith.constant 0 : index
    %c1_118 = arith.constant 1 : index
    %102 = vector.load %arg2[%c0_117, %c1_118] : memref<16x3xf32, #tpu.memory_space<vmem>>, vector<16x1xf32>
    %103 = vector.broadcast %102 : vector<16x1xf32> to vector<16x768xf32>
    %104 = arith.mulf %101, %103 : vector<16x768xf32>
    %c0_119 = arith.constant 0 : index
    %c2_120 = arith.constant 2 : index
    %105 = vector.load %arg2[%c0_119, %c2_120] : memref<16x3xf32, #tpu.memory_space<vmem>>, vector<16x1xf32>
    %106 = vector.broadcast %105 : vector<16x1xf32> to vector<16x768xf32>
    %107 = arith.addf %104, %106 : vector<16x768xf32>
    %cst_121 = arith.constant 0.000000e+00 : f32
    %108 = vector.broadcast %cst_121 : f32 to vector<16x768xf32>
    %109 = arith.maximumf %107, %108 : vector<16x768xf32>
    %110 = vector.broadcast %80 : vector<1x768xf32> to vector<16x768xf32>
    %111 = arith.mulf %109, %110 : vector<16x768xf32>
    %c0_122 = arith.constant 0 : index
    %c128_123 = arith.constant 128 : index
    %112 = vector.load %arg12[%c0_122, %c128_123] : memref<16x896xf32, #tpu.memory_space<vmem>>, vector<16x768xf32>
    tpu.vector_store %arg12[%c0_122, %c128_123], %111 {strides = array<i32>} : memref<16x896xf32, #tpu.memory_space<vmem>>, vector<16x768xf32>,
    %c0_124 = arith.constant 0 : index
    %c92_125 = arith.constant 92 : index
    %113 = vector.load %arg12[%c0_124, %c92_125] : memref<16x896xf32, #tpu.memory_space<vmem>>, vector<16x768xf32>
    %c0_126 = arith.constant 0 : index
    %c0_127 = arith.constant 0 : index
    %114 = vector.load %arg13[%c0_126, %c0_127] : memref<144x768xf32, #tpu.memory_space<vmem>>, vector<16x768xf32>
    tpu.vector_store %arg13[%c0_126, %c0_127], %113 {strides = array<i32>} : memref<144x768xf32, #tpu.memory_space<vmem>>, vector<16x768xf32>,
    %c0_128 = arith.constant 0 : index
    %c93_129 = arith.constant 93 : index
    %115 = vector.load %arg12[%c0_128, %c93_129] : memref<16x896xf32, #tpu.memory_space<vmem>>, vector<16x768xf32>
    %c16_130 = arith.constant 16 : index
    %c0_131 = arith.constant 0 : index
    %116 = vector.load %arg13[%c16_130, %c0_131] : memref<144x768xf32, #tpu.memory_space<vmem>>, vector<16x768xf32>
    tpu.vector_store %arg13[%c16_130, %c0_131], %115 {strides = array<i32>} : memref<144x768xf32, #tpu.memory_space<vmem>>, vector<16x768xf32>,
    %c0_132 = arith.constant 0 : index
    %c94_133 = arith.constant 94 : index
    %117 = vector.load %arg12[%c0_132, %c94_133] : memref<16x896xf32, #tpu.memory_space<vmem>>, vector<16x768xf32>
    %c32_134 = arith.constant 32 : index
    %c0_135 = arith.constant 0 : index
    %118 = vector.load %arg13[%c32_134, %c0_135] : memref<144x768xf32, #tpu.memory_space<vmem>>, vector<16x768xf32>
    tpu.vector_store %arg13[%c32_134, %c0_135], %117 {strides = array<i32>} : memref<144x768xf32, #tpu.memory_space<vmem>>, vector<16x768xf32>,
    %c0_136 = arith.constant 0 : index
    %c109_137 = arith.constant 109 : index
    %119 = vector.load %arg12[%c0_136, %c109_137] : memref<16x896xf32, #tpu.memory_space<vmem>>, vector<16x768xf32>
    %c48_138 = arith.constant 48 : index
    %c0_139 = arith.constant 0 : index
    %120 = vector.load %arg13[%c48_138, %c0_139] : memref<144x768xf32, #tpu.memory_space<vmem>>, vector<16x768xf32>
    tpu.vector_store %arg13[%c48_138, %c0_139], %119 {strides = array<i32>} : memref<144x768xf32, #tpu.memory_space<vmem>>, vector<16x768xf32>,
    %c0_140 = arith.constant 0 : index
    %c110_141 = arith.constant 110 : index
    %121 = vector.load %arg12[%c0_140, %c110_141] : memref<16x896xf32, #tpu.memory_space<vmem>>, vector<16x768xf32>
    %c64_142 = arith.constant 64 : index
    %c0_143 = arith.constant 0 : index
    %122 = vector.load %arg13[%c64_142, %c0_143] : memref<144x768xf32, #tpu.memory_space<vmem>>, vector<16x768xf32>
    tpu.vector_store %arg13[%c64_142, %c0_143], %121 {strides = array<i32>} : memref<144x768xf32, #tpu.memory_space<vmem>>, vector<16x768xf32>,
    %c0_144 = arith.constant 0 : index
    %c111_145 = arith.constant 111 : index
    %123 = vector.load %arg12[%c0_144, %c111_145] : memref<16x896xf32, #tpu.memory_space<vmem>>, vector<16x768xf32>
    %c80_146 = arith.constant 80 : index
    %c0_147 = arith.constant 0 : index
    %124 = vector.load %arg13[%c80_146, %c0_147] : memref<144x768xf32, #tpu.memory_space<vmem>>, vector<16x768xf32>
    tpu.vector_store %arg13[%c80_146, %c0_147], %123 {strides = array<i32>} : memref<144x768xf32, #tpu.memory_space<vmem>>, vector<16x768xf32>,
    %c0_148 = arith.constant 0 : index
    %c126_149 = arith.constant 126 : index
    %125 = vector.load %arg12[%c0_148, %c126_149] : memref<16x896xf32, #tpu.memory_space<vmem>>, vector<16x768xf32>
    %c96_150 = arith.constant 96 : index
    %c0_151 = arith.constant 0 : index
    %126 = vector.load %arg13[%c96_150, %c0_151] : memref<144x768xf32, #tpu.memory_space<vmem>>, vector<16x768xf32>
    tpu.vector_store %arg13[%c96_150, %c0_151], %125 {strides = array<i32>} : memref<144x768xf32, #tpu.memory_space<vmem>>, vector<16x768xf32>,
    %c0_152 = arith.constant 0 : index
    %c127_153 = arith.constant 127 : index
    %127 = vector.load %arg12[%c0_152, %c127_153] : memref<16x896xf32, #tpu.memory_space<vmem>>, vector<16x768xf32>
    %c112_154 = arith.constant 112 : index
    %c0_155 = arith.constant 0 : index
    %128 = vector.load %arg13[%c112_154, %c0_155] : memref<144x768xf32, #tpu.memory_space<vmem>>, vector<16x768xf32>
    tpu.vector_store %arg13[%c112_154, %c0_155], %127 {strides = array<i32>} : memref<144x768xf32, #tpu.memory_space<vmem>>, vector<16x768xf32>,
    %c0_156 = arith.constant 0 : index
    %c128_157 = arith.constant 128 : index
    %129 = vector.load %arg12[%c0_156, %c128_157] : memref<16x896xf32, #tpu.memory_space<vmem>>, vector<16x768xf32>
    %c128_158 = arith.constant 128 : index
    %c0_159 = arith.constant 0 : index
    %130 = vector.load %arg13[%c128_158, %c0_159] : memref<144x768xf32, #tpu.memory_space<vmem>>, vector<16x768xf32>
    tpu.vector_store %arg13[%c128_158, %c0_159], %129 {strides = array<i32>} : memref<144x768xf32, #tpu.memory_space<vmem>>, vector<16x768xf32>,
    %c0_160 = arith.constant 0 : index
    %c0_161 = arith.constant 0 : index
    %131 = vector.load %arg3[%c0_160, %c0_161] : memref<16x144xf32, #tpu.memory_space<vmem>>, vector<16x144xf32>
    %c0_162 = arith.constant 0 : index
    %c0_163 = arith.constant 0 : index
    %132 = vector.load %arg13[%c0_162, %c0_163] : memref<144x768xf32, #tpu.memory_space<vmem>>, vector<144x768xf32>
    %cst_164 = arith.constant dense<0.000000e+00> : vector<16x768xf32>
    %133 = tpu.matmul %131, %132, %cst_164 {dimension_numbers = #tpu.dot_dimension_numbers<[1], [0], [0], [1], [0, 0, 1, 1], [], []>} : vector<16x144xf32>, vector<144x768xf32>, vector<16x768xf32> -> vector<16x768xf32>
    %c0_165 = arith.constant 0 : index
    %c0_166 = arith.constant 0 : index
    %134 = vector.load %arg4[%c0_165, %c0_166] : memref<16x3xf32, #tpu.memory_space<vmem>>, vector<16x1xf32>
    %135 = vector.broadcast %134 : vector<16x1xf32> to vector<16x768xf32>
    %136 = arith.addf %133, %135 : vector<16x768xf32>
    %c1_167 = arith.constant 1 : index
    %c0_168 = arith.constant 0 : index
    %137 = vector.load %arg7[%c1_167, %c0_168] : memref<3x768xf32, #tpu.memory_space<vmem>>, vector<1x768xf32>
    %138 = vector.broadcast %137 : vector<1x768xf32> to vector<16x768xf32>
    %139 = arith.mulf %136, %138 : vector<16x768xf32>
    %140 = arith.mulf %139, %136 : vector<16x768xf32>
    %141 = tpu.concatenate %139, %140 in 0 : vector<16x768xf32>, vector<16x768xf32> -> vector<32x768xf32>
    %cst_169 = arith.constant dense<0.000000e+00> : vector<32xf32>
    %142 = vector.multi_reduction <add>, %141, %cst_169 [1] : vector<32x768xf32> to vector<32xf32>
    %143 = vector.shape_cast %142 : vector<32xf32> to vector<32x1xf32>
    %cst_170 = arith.constant 2.958580e-03 : f32
    %144 = vector.broadcast %cst_170 : f32 to vector<32x1xf32>
    %145 = arith.mulf %143, %144 : vector<32x1xf32>
    %146 = vector.extract_strided_slice %145 {offsets = [0, 0], sizes = [16, 1], strides = [1, 1]} : vector<32x1xf32> to vector<16x1xf32>
    %147 = vector.extract_strided_slice %145 {offsets = [16, 0], sizes = [16, 1], strides = [1, 1]} : vector<32x1xf32> to vector<16x1xf32>
    %148 = arith.mulf %146, %146 : vector<16x1xf32>
    %149 = arith.subf %147, %148 : vector<16x1xf32>
    %cst_171 = arith.constant 0.000000e+00 : f32
    %150 = vector.broadcast %cst_171 : f32 to vector<16x1xf32>
    %151 = arith.maximumf %149, %150 : vector<16x1xf32>
    %152 = vector.broadcast %146 : vector<16x1xf32> to vector<16x768xf32>
    %153 = arith.subf %136, %152 : vector<16x768xf32>
    %cst_172 = arith.constant 9.99999974E-6 : f32
    %154 = vector.broadcast %cst_172 : f32 to vector<16x1xf32>
    %155 = arith.addf %151, %154 : vector<16x1xf32>
    %156 = math.rsqrt %155 : vector<16x1xf32>
    %157 = vector.broadcast %156 : vector<16x1xf32> to vector<16x768xf32>
    %158 = arith.mulf %153, %157 : vector<16x768xf32>
    %c0_173 = arith.constant 0 : index
    %c1_174 = arith.constant 1 : index
    %159 = vector.load %arg4[%c0_173, %c1_174] : memref<16x3xf32, #tpu.memory_space<vmem>>, vector<16x1xf32>
    %160 = vector.broadcast %159 : vector<16x1xf32> to vector<16x768xf32>
    %161 = arith.mulf %158, %160 : vector<16x768xf32>
    %c0_175 = arith.constant 0 : index
    %c2_176 = arith.constant 2 : index
    %162 = vector.load %arg4[%c0_175, %c2_176] : memref<16x3xf32, #tpu.memory_space<vmem>>, vector<16x1xf32>
    %163 = vector.broadcast %162 : vector<16x1xf32> to vector<16x768xf32>
    %164 = arith.addf %161, %163 : vector<16x768xf32>
    %cst_177 = arith.constant 0.000000e+00 : f32
    %165 = vector.broadcast %cst_177 : f32 to vector<16x768xf32>
    %166 = arith.maximumf %164, %165 : vector<16x768xf32>
    %167 = vector.broadcast %137 : vector<1x768xf32> to vector<16x768xf32>
    %168 = arith.mulf %166, %167 : vector<16x768xf32>
    %c0_178 = arith.constant 0 : index
    %c128_179 = arith.constant 128 : index
    %169 = vector.load %arg12[%c0_178, %c128_179] : memref<16x896xf32, #tpu.memory_space<vmem>>, vector<16x768xf32>
    tpu.vector_store %arg12[%c0_178, %c128_179], %168 {strides = array<i32>} : memref<16x896xf32, #tpu.memory_space<vmem>>, vector<16x768xf32>,
    %c0_180 = arith.constant 0 : index
    %c92_181 = arith.constant 92 : index
    %170 = vector.load %arg12[%c0_180, %c92_181] : memref<16x896xf32, #tpu.memory_space<vmem>>, vector<16x768xf32>
    %c0_182 = arith.constant 0 : index
    %c0_183 = arith.constant 0 : index
    %171 = vector.load %arg13[%c0_182, %c0_183] : memref<144x768xf32, #tpu.memory_space<vmem>>, vector<16x768xf32>
    tpu.vector_store %arg13[%c0_182, %c0_183], %170 {strides = array<i32>} : memref<144x768xf32, #tpu.memory_space<vmem>>, vector<16x768xf32>,
    %c0_184 = arith.constant 0 : index
    %c93_185 = arith.constant 93 : index
    %172 = vector.load %arg12[%c0_184, %c93_185] : memref<16x896xf32, #tpu.memory_space<vmem>>, vector<16x768xf32>
    %c16_186 = arith.constant 16 : index
    %c0_187 = arith.constant 0 : index
    %173 = vector.load %arg13[%c16_186, %c0_187] : memref<144x768xf32, #tpu.memory_space<vmem>>, vector<16x768xf32>
    tpu.vector_store %arg13[%c16_186, %c0_187], %172 {strides = array<i32>} : memref<144x768xf32, #tpu.memory_space<vmem>>, vector<16x768xf32>,
    %c0_188 = arith.constant 0 : index
    %c94_189 = arith.constant 94 : index
    %174 = vector.load %arg12[%c0_188, %c94_189] : memref<16x896xf32, #tpu.memory_space<vmem>>, vector<16x768xf32>
    %c32_190 = arith.constant 32 : index
    %c0_191 = arith.constant 0 : index
    %175 = vector.load %arg13[%c32_190, %c0_191] : memref<144x768xf32, #tpu.memory_space<vmem>>, vector<16x768xf32>
    tpu.vector_store %arg13[%c32_190, %c0_191], %174 {strides = array<i32>} : memref<144x768xf32, #tpu.memory_space<vmem>>, vector<16x768xf32>,
    %c0_192 = arith.constant 0 : index
    %c109_193 = arith.constant 109 : index
    %176 = vector.load %arg12[%c0_192, %c109_193] : memref<16x896xf32, #tpu.memory_space<vmem>>, vector<16x768xf32>
    %c48_194 = arith.constant 48 : index
    %c0_195 = arith.constant 0 : index
    %177 = vector.load %arg13[%c48_194, %c0_195] : memref<144x768xf32, #tpu.memory_space<vmem>>, vector<16x768xf32>
    tpu.vector_store %arg13[%c48_194, %c0_195], %176 {strides = array<i32>} : memref<144x768xf32, #tpu.memory_space<vmem>>, vector<16x768xf32>,
    %c0_196 = arith.constant 0 : index
    %c110_197 = arith.constant 110 : index
    %178 = vector.load %arg12[%c0_196, %c110_197] : memref<16x896xf32, #tpu.memory_space<vmem>>, vector<16x768xf32>
    %c64_198 = arith.constant 64 : index
    %c0_199 = arith.constant 0 : index
    %179 = vector.load %arg13[%c64_198, %c0_199] : memref<144x768xf32, #tpu.memory_space<vmem>>, vector<16x768xf32>
    tpu.vector_store %arg13[%c64_198, %c0_199], %178 {strides = array<i32>} : memref<144x768xf32, #tpu.memory_space<vmem>>, vector<16x768xf32>,
    %c0_200 = arith.constant 0 : index
    %c111_201 = arith.constant 111 : index
    %180 = vector.load %arg12[%c0_200, %c111_201] : memref<16x896xf32, #tpu.memory_space<vmem>>, vector<16x768xf32>
    %c80_202 = arith.constant 80 : index
    %c0_203 = arith.constant 0 : index
    %181 = vector.load %arg13[%c80_202, %c0_203] : memref<144x768xf32, #tpu.memory_space<vmem>>, vector<16x768xf32>
    tpu.vector_store %arg13[%c80_202, %c0_203], %180 {strides = array<i32>} : memref<144x768xf32, #tpu.memory_space<vmem>>, vector<16x768xf32>,
    %c0_204 = arith.constant 0 : index
    %c126_205 = arith.constant 126 : index
    %182 = vector.load %arg12[%c0_204, %c126_205] : memref<16x896xf32, #tpu.memory_space<vmem>>, vector<16x768xf32>
    %c96_206 = arith.constant 96 : index
    %c0_207 = arith.constant 0 : index
    %183 = vector.load %arg13[%c96_206, %c0_207] : memref<144x768xf32, #tpu.memory_space<vmem>>, vector<16x768xf32>
    tpu.vector_store %arg13[%c96_206, %c0_207], %182 {strides = array<i32>} : memref<144x768xf32, #tpu.memory_space<vmem>>, vector<16x768xf32>,
    %c0_208 = arith.constant 0 : index
    %c127_209 = arith.constant 127 : index
    %184 = vector.load %arg12[%c0_208, %c127_209] : memref<16x896xf32, #tpu.memory_space<vmem>>, vector<16x768xf32>
    %c112_210 = arith.constant 112 : index
    %c0_211 = arith.constant 0 : index
    %185 = vector.load %arg13[%c112_210, %c0_211] : memref<144x768xf32, #tpu.memory_space<vmem>>, vector<16x768xf32>
    tpu.vector_store %arg13[%c112_210, %c0_211], %184 {strides = array<i32>} : memref<144x768xf32, #tpu.memory_space<vmem>>, vector<16x768xf32>,
    %c0_212 = arith.constant 0 : index
    %c128_213 = arith.constant 128 : index
    %186 = vector.load %arg12[%c0_212, %c128_213] : memref<16x896xf32, #tpu.memory_space<vmem>>, vector<16x768xf32>
    %c128_214 = arith.constant 128 : index
    %c0_215 = arith.constant 0 : index
    %187 = vector.load %arg13[%c128_214, %c0_215] : memref<144x768xf32, #tpu.memory_space<vmem>>, vector<16x768xf32>
    tpu.vector_store %arg13[%c128_214, %c0_215], %186 {strides = array<i32>} : memref<144x768xf32, #tpu.memory_space<vmem>>, vector<16x768xf32>,
    %c0_216 = arith.constant 0 : index
    %c0_217 = arith.constant 0 : index
    %188 = vector.load %arg5[%c0_216, %c0_217] : memref<16x144xf32, #tpu.memory_space<vmem>>, vector<16x144xf32>
    %c0_218 = arith.constant 0 : index
    %c0_219 = arith.constant 0 : index
    %189 = vector.load %arg13[%c0_218, %c0_219] : memref<144x768xf32, #tpu.memory_space<vmem>>, vector<144x768xf32>
    %cst_220 = arith.constant dense<0.000000e+00> : vector<16x768xf32>
    %190 = tpu.matmul %188, %189, %cst_220 {dimension_numbers = #tpu.dot_dimension_numbers<[1], [0], [0], [1], [0, 0, 1, 1], [], []>} : vector<16x144xf32>, vector<144x768xf32>, vector<16x768xf32> -> vector<16x768xf32>
    %c0_221 = arith.constant 0 : index
    %c0_222 = arith.constant 0 : index
    %191 = vector.load %arg6[%c0_221, %c0_222] : memref<16x3xf32, #tpu.memory_space<vmem>>, vector<16x1xf32>
    %192 = vector.broadcast %191 : vector<16x1xf32> to vector<16x768xf32>
    %193 = arith.addf %190, %192 : vector<16x768xf32>
    %c2_223 = arith.constant 2 : index
    %c0_224 = arith.constant 0 : index
    %194 = vector.load %arg7[%c2_223, %c0_224] : memref<3x768xf32, #tpu.memory_space<vmem>>, vector<1x768xf32>
    %195 = vector.broadcast %194 : vector<1x768xf32> to vector<16x768xf32>
    %196 = arith.mulf %193, %195 : vector<16x768xf32>
    %197 = arith.mulf %196, %193 : vector<16x768xf32>
    %198 = tpu.concatenate %196, %197 in 0 : vector<16x768xf32>, vector<16x768xf32> -> vector<32x768xf32>
    %cst_225 = arith.constant dense<0.000000e+00> : vector<32xf32>
    %199 = vector.multi_reduction <add>, %198, %cst_225 [1] : vector<32x768xf32> to vector<32xf32>
    %200 = vector.shape_cast %199 : vector<32xf32> to vector<32x1xf32>
    %cst_226 = arith.constant 0.00222222228 : f32
    %201 = vector.broadcast %cst_226 : f32 to vector<32x1xf32>
    %202 = arith.mulf %200, %201 : vector<32x1xf32>
    %203 = vector.extract_strided_slice %202 {offsets = [0, 0], sizes = [16, 1], strides = [1, 1]} : vector<32x1xf32> to vector<16x1xf32>
    %204 = vector.extract_strided_slice %202 {offsets = [16, 0], sizes = [16, 1], strides = [1, 1]} : vector<32x1xf32> to vector<16x1xf32>
    %205 = arith.mulf %203, %203 : vector<16x1xf32>
    %206 = arith.subf %204, %205 : vector<16x1xf32>
    %cst_227 = arith.constant 0.000000e+00 : f32
    %207 = vector.broadcast %cst_227 : f32 to vector<16x1xf32>
    %208 = arith.maximumf %206, %207 : vector<16x1xf32>
    %209 = vector.broadcast %203 : vector<16x1xf32> to vector<16x768xf32>
    %210 = arith.subf %193, %209 : vector<16x768xf32>
    %cst_228 = arith.constant 9.99999974E-6 : f32
    %211 = vector.broadcast %cst_228 : f32 to vector<16x1xf32>
    %212 = arith.addf %208, %211 : vector<16x1xf32>
    %213 = math.rsqrt %212 : vector<16x1xf32>
    %214 = vector.broadcast %213 : vector<16x1xf32> to vector<16x768xf32>
    %215 = arith.mulf %210, %214 : vector<16x768xf32>
    %c0_229 = arith.constant 0 : index
    %c1_230 = arith.constant 1 : index
    %216 = vector.load %arg6[%c0_229, %c1_230] : memref<16x3xf32, #tpu.memory_space<vmem>>, vector<16x1xf32>
    %217 = vector.broadcast %216 : vector<16x1xf32> to vector<16x768xf32>
    %218 = arith.mulf %215, %217 : vector<16x768xf32>
    %c0_231 = arith.constant 0 : index
    %c2_232 = arith.constant 2 : index
    %219 = vector.load %arg6[%c0_231, %c2_232] : memref<16x3xf32, #tpu.memory_space<vmem>>, vector<16x1xf32>
    %220 = vector.broadcast %219 : vector<16x1xf32> to vector<16x768xf32>
    %221 = arith.addf %218, %220 : vector<16x768xf32>
    %cst_233 = arith.constant 0.000000e+00 : f32
    %222 = vector.broadcast %cst_233 : f32 to vector<16x768xf32>
    %223 = arith.maximumf %221, %222 : vector<16x768xf32>
    %224 = vector.broadcast %194 : vector<1x768xf32> to vector<16x768xf32>
    %225 = arith.mulf %223, %224 : vector<16x768xf32>
    %c0_234 = arith.constant 0 : index
    %c0_235 = arith.constant 0 : index
    %226 = vector.load %arg8[%c0_234, %c0_235] : memref<16x768xf32, #tpu.memory_space<vmem>>, vector<16x768xf32>
    %227 = arith.mulf %225, %226 : vector<16x768xf32>
    %c0_236 = arith.constant 0 : index
    %c0_237 = arith.constant 0 : index
    %228 = vector.load %arg9[%c0_236, %c0_237] : memref<768x2xf32, #tpu.memory_space<vmem>>, vector<768x2xf32>
    %cst_238 = arith.constant dense<0.000000e+00> : vector<16x2xf32>
    %229 = tpu.matmul %227, %228, %cst_238 {dimension_numbers = #tpu.dot_dimension_numbers<[1], [0], [0], [1], [0, 0, 1, 1], [], []>} : vector<16x768xf32>, vector<768x2xf32>, vector<16x2xf32> -> vector<16x2xf32>
    %cst_239 = arith.constant dense<0.000000e+00> : vector<2xf32>
    %230 = vector.multi_reduction <add>, %229, %cst_239 [0] : vector<16x2xf32> to vector<2xf32>
    %231 = vector.shape_cast %230 : vector<2xf32> to vector<1x2xf32>
    %c0_240 = arith.constant 0 : index
    %c0_241 = arith.constant 0 : index
    %232 = vector.load %arg10[%c0_240, %c0_241] : memref<1x1xf32, #tpu.memory_space<vmem>>, vector<1x1xf32>
    %233 = vector.broadcast %232 : vector<1x1xf32> to vector<1x2xf32>
    %234 = arith.addf %231, %233 : vector<1x2xf32>
    %c0_242 = arith.constant 0 : index
    %c0_243 = arith.constant 0 : index
    %235 = vector.load %arg11[%c0_242, %c0_243] : memref<1x2xf32, #tpu.memory_space<vmem>>, vector<1x2xf32>
    tpu.vector_store %arg11[%c0_242, %c0_243], %234 {strides = array<i32>} : memref<1x2xf32, #tpu.memory_space<vmem>>, vector<1x2xf32>,
    return
  }
}

</mosaic_0001>

<llo_original>
// kernel: _lambda_.1
$region0: #{_lambda_.1}
  #allocation0 [shape = 'u32[]', space=smem, size = 0x4, offset = 0x4, fixed_abs, tag = 'smem constant byte address 0x4 - core index']
  #allocation1 [shape = 'u32[144,128]{1,0:T(1,128)}', space=vmem, size = 0x12000, scoped, tag = 'internal scratch']
  #allocation2 [shape = 'f32[16,896]{1,0:T(8,128)}', space=vmem, size = 0xe000, scoped, tag = 'scratch operand']
  #allocation3 [shape = 'f32[144,768]{1,0:T(8,128)}', space=vmem, size = 0x6c000, scoped, tag = 'scratch operand']
  #allocation4 [shape = 'f32[1,1]{1,0:T(1,128)S(1)}', space=vmem, size = 0x200, scoped, tag = 'scoped memory for _lambda_.1']
  %s0 = inlined_call_operand.vmem [shape: f32[2,9,9,9], index: 0, kind: input, shape index: {}]
  %s1 = inlined_call_operand.vmem [shape: f32[16,144], index: 1, kind: input, shape index: {}]
  %s2 = inlined_call_operand.vmem [shape: f32[16,3], index: 2, kind: input, shape index: {}]
  %s3 = inlined_call_operand.vmem [shape: f32[16,144], index: 3, kind: input, shape index: {}]
  %s4 = inlined_call_operand.vmem [shape: f32[16,3], index: 4, kind: input, shape index: {}]
  %s5 = inlined_call_operand.vmem [shape: f32[16,144], index: 5, kind: input, shape index: {}]
  %s6 = inlined_call_operand.vmem [shape: f32[16,3], index: 6, kind: input, shape index: {}]
  %s7 = inlined_call_operand.vmem [shape: f32[3,768], index: 7, kind: input, shape index: {}]
  %s8 = inlined_call_operand.vmem [shape: f32[16,768], index: 8, kind: input, shape index: {}]
  %s9 = inlined_call_operand.hbm [shape: f32[768,2], index: 9, kind: input, shape index: {}]
  %s10 = inlined_call_operand.<no memory space> [shape: f32[1,1], index: 10, kind: input, shape index: {}]
  %s11 = inlined_call_operand.hbm [shape: f32[1,2], index: 11, kind: output, shape index: {}]
  %s12 = sld [smem:[#allocation0]]
  $region58: #{_lambda_.1} parent=0
    _
  %s14 = ssub.s32 1, %s12
  %s15 = scalar_select 0, %s14, %s12
  %v16 = vstv %s10
  %17 = vst [vmem:[#allocation4] sm:$0x1] %v16
  $region1: #{_lambda_.1} parent=0
    #allocation5 [shape = 'u8[393216]{0}', space=vmem, size = 0x60000, scoped, tag = 'input window, operand 9, single buffered']
    #allocation6 [shape = 's32[1]{0}', space=sflag, size = 0x4, scoped, tag = 'scoped memory for _lambda_.1']
    #allocation7 [shape = 's32[1]{0}', space=sflag, size = 0x4, scoped, tag = 'scoped memory for _lambda_.1']
    #allocation8 [shape = 'u8[512]{0}', space=vmem, size = 0x400, scoped, tag = 'output window, operand 0, single buffered']
    %18 = vsyncpa [#allocation6], 0
    %19 = vsyncpa [#allocation7], 0
    // Predicated region
    $region2: #{_lambda_.1} parent=1 // pred_check
      _
    $region3: #{_lambda_.1} parent=1 // pred_check_branch
      %21 = sbr.rel (0) target = $region5
    $region4: #{_lambda_.1} parent=1 // pred_region
      _
    $region5: #{_lambda_.1} parent=1 // pred_fallthru
      _
    // Predicated region
    $region6: #{_lambda_.1} parent=1 // pred_check
      _
    $region7: #{_lambda_.1} parent=1 // pred_check_branch
      %23 = sbr.rel (0) target = $region9
    $region8: #{_lambda_.1} parent=1 // pred_region
      _
    $region9: #{_lambda_.1} parent=1 // pred_fallthru
      _
    // Predicated region
    $region10: #{_lambda_.1} parent=1 // pred_check
      _
    $region11: #{_lambda_.1} parent=1 // pred_check_branch
      %25 = sbr.rel (0) target = $region13
    $region12: #{_lambda_.1} parent=1 // pred_region
      _
    $region13: #{_lambda_.1} parent=1 // pred_fallthru
      _
    // Predicated region
    $region14: #{_lambda_.1} parent=1 // pred_check
      _
    $region15: #{_lambda_.1} parent=1 // pred_check_branch
      %27 = sbr.rel (0) target = $region17
    $region16: #{_lambda_.1} parent=1 // pred_region
      _
    $region17: #{_lambda_.1} parent=1 // pred_fallthru
      _
    // Predicated region
    $region18: #{_lambda_.1} parent=1 // pred_check
      _
    $region19: #{_lambda_.1} parent=1 // pred_check_branch
      %29 = sbr.rel (0) target = $region21
    $region20: #{_lambda_.1} parent=1 // pred_region
      _
    $region21: #{_lambda_.1} parent=1 // pred_fallthru
      _
    // Predicated region
    $region22: #{_lambda_.1} parent=1 // pred_check
      _
    $region23: #{_lambda_.1} parent=1 // pred_check_branch
      %31 = sbr.rel (0) target = $region25
    $region24: #{_lambda_.1} parent=1 // pred_region
      _
    $region25: #{_lambda_.1} parent=1 // pred_fallthru
      _
    // Predicated region
    $region26: #{_lambda_.1} parent=1 // pred_check
      _
    $region27: #{_lambda_.1} parent=1 // pred_check_branch
      %33 = sbr.rel (0) target = $region29
    $region28: #{_lambda_.1} parent=1 // pred_region
      _
    $region29: #{_lambda_.1} parent=1 // pred_fallthru
      _
    // Predicated region
    $region30: #{_lambda_.1} parent=1 // pred_check
      _
    $region31: #{_lambda_.1} parent=1 // pred_check_branch
      %35 = sbr.rel (0) target = $region33
    $region32: #{_lambda_.1} parent=1 // pred_region
      _
    $region33: #{_lambda_.1} parent=1 // pred_fallthru
      _
    // Predicated region
    $region34: #{_lambda_.1} parent=1 // pred_check
      _
    $region35: #{_lambda_.1} parent=1 // pred_check_branch
      %37 = sbr.rel (0) target = $region37
    $region36: #{_lambda_.1} parent=1 // pred_region
      _
    $region37: #{_lambda_.1} parent=1 // pred_fallthru
      _
    // Predicated region
    $region38: #{_lambda_.1} parent=1 // pred_check
      _
    $region39: #{_lambda_.1} parent=1 // pred_check_branch
      %39 = sbr.rel (0) target = $region41
    $region40: #{_lambda_.1} parent=1 // pred_region
      %s41 = ssub.s32 12288, 12288
      %42 = vsyncadd [#allocation6], %s41
      %s43 = sshll.u32 [#allocation5], 4
      %s44 = int_to_ptr.vmem [resolvable:$true] %s43
      %49 = dma.hbm_to_vmem [thread:$0]  %s9, 12288, %s44, [#allocation6], 128, 128, 8
    $region41: #{_lambda_.1} parent=1 // pred_fallthru
      _
    // Predicated region
    $region42: #{_lambda_.1} parent=1 // pred_check
      _
    $region43: #{_lambda_.1} parent=1 // pred_check_branch
      %51 = sbr.rel (0) target = $region45
    $region44: #{_lambda_.1} parent=1 // pred_region
      _
    $region45: #{_lambda_.1} parent=1 // pred_fallthru
      _
    // Predicated region
    $region46: #{_lambda_.1} parent=1 // pred_check
      _
    $region47: #{_lambda_.1} parent=1 // pred_check_branch
      %53 = sbr.rel (0) target = $region49
    $region48: #{_lambda_.1} parent=1 // pred_region
      %54 = dma.done [#allocation6], 12288
    $region49: #{_lambda_.1} parent=1 // pred_fallthru
      _
    %55 = vst [vmem:[#allocation2] sm:$0xff] 0.0
    %56 = vst [vmem:[#allocation2 + $0x8] sm:$0xff] 0.0
    %57 = vst [vmem:[#allocation2 + $0x10] sm:$0xff] 0.0
    %58 = vst [vmem:[#allocation2 + $0x18] sm:$0xff] 0.0
    %59 = vst [vmem:[#allocation2 + $0x20] sm:$0xff] 0.0
    %60 = vst [vmem:[#allocation2 + $0x28] sm:$0xff] 0.0
    %61 = vst [vmem:[#allocation2 + $0x30] sm:$0xff] 0.0
    %62 = vst [vmem:[#allocation2 + $0x38] sm:$0xff] 0.0
    %63 = vst [vmem:[#allocation2 + $0x40] sm:$0xff] 0.0
    %64 = vst [vmem:[#allocation2 + $0x48] sm:$0xff] 0.0
    %65 = vst [vmem:[#allocation2 + $0x50] sm:$0xff] 0.0
    %66 = vst [vmem:[#allocation2 + $0x58] sm:$0xff] 0.0
    %67 = vst [vmem:[#allocation2 + $0x60] sm:$0xff] 0.0
    %68 = vst [vmem:[#allocation2 + $0x68] sm:$0xff] 0.0
    %v69 = vld [vmem:[%s0] sm:$0xff]
    %v70 = vld [vmem:[%s0 + $0x8] sm:$0x1]
    %vm71 = vcmask 72704
    %72 = vst.msk [vmem:[#allocation2 + $0x8] sm:$0xff] %vm71, %v69
    %vm73 = vcmask 65536
    %74 = vst.msk [vmem:[#allocation2 + $0x40] sm:$0x1] %vm73, %v70
    %s75 = scalar_lea.vmem %s0, 16
    %v76 = vld [vmem:[%s75] sm:$0xff]
    %v77 = vld [vmem:[%s75 + $0x8] sm:$0x1]
    %80 = vrot.lane.b32.xlu0 %v76, 17
    %v81 = vpop.permute.xlu0 %80
    %82 = vrot.lane.b32.xlu0 %v77, 17
    %v83 = vpop.permute.xlu0 %82
    %vm86 = vcmask 212104
    %87 = vst.msk [vmem:[#allocation2 + $0x8] sm:$0xff] %vm86, %v81
    %vm88 = vcmask 204936
    %89 = vst.msk [vmem:[#allocation2 + $0x40] sm:$0x1] %vm88, %v83
    %s90 = scalar_lea.vmem %s0, 32
    %v91 = vld [vmem:[%s90] sm:$0xff]
    %v92 = vld [vmem:[%s90 + $0x8] sm:$0x1]
    %95 = vrot.lane.b32.xlu0 %v91, 34
    %v96 = vpop.permute.xlu0 %95
    %97 = vrot.lane.b32.xlu0 %v92, 34
    %v98 = vpop.permute.xlu0 %97
    %vm101 = vcmask 351504
    %102 = vst.msk [vmem:[#allocation2 + $0x8] sm:$0xff] %vm101, %v96
    %vm103 = vcmask 344336
    %104 = vst.msk [vmem:[#allocation2 + $0x40] sm:$0x1] %vm103, %v98
    %s105 = scalar_lea.vmem %s0, 48
    %v106 = vld [vmem:[%s105] sm:$0xff]
    %v107 = vld [vmem:[%s105 + $0x8] sm:$0x1]
    %110 = vrot.lane.b32.xlu0 %v106, 51
    %v111 = vpop.permute.xlu0 %110
    %112 = vrot.lane.b32.xlu0 %v107, 51
    %v113 = vpop.permute.xlu0 %112
    %vm116 = vcmask 490904
    %117 = vst.msk [vmem:[#allocation2 + $0x8] sm:$0xff] %vm116, %v111
    %vm118 = vcmask 483736
    %119 = vst.msk [vmem:[#allocation2 + $0x40] sm:$0x1] %vm118, %v113
    %s120 = scalar_lea.vmem %s0, 64
    %v121 = vld [vmem:[%s120] sm:$0xff]
    %v122 = vld [vmem:[%s120 + $0x8] sm:$0x1]
    %125 = vrot.lane.b32.xlu0 %v121, 68
    %v126 = vpop.permute.xlu0 %125
    %127 = vrot.lane.b32.xlu0 %v122, 68
    %v128 = vpop.permute.xlu0 %127
    %vm131 = vcmask 630304
    %132 = vst.msk [vmem:[#allocation2 + $0x8] sm:$0xff] %vm131, %v126
    %vm133 = vcmask 623136
    %134 = vst.msk [vmem:[#allocation2 + $0x40] sm:$0x1] %vm133, %v128
    %s135 = scalar_lea.vmem %s0, 80
    %v136 = vld [vmem:[%s135] sm:$0xff]
    %v137 = vld [vmem:[%s135 + $0x8] sm:$0x1]
    %140 = vrot.lane.b32.xlu0 %v136, 85
    %v141 = vpop.permute.xlu0 %140
    %142 = vrot.lane.b32.xlu0 %v137, 85
    %v143 = vpop.permute.xlu0 %142
    %vm146 = vcmask 769704
    %147 = vst.msk [vmem:[#allocation2 + $0x8] sm:$0xff] %vm146, %v141
    %vm148 = vcmask 762536
    %149 = vst.msk [vmem:[#allocation2 + $0x40] sm:$0x1] %vm148, %v143
    %s150 = scalar_lea.vmem %s0, 96
    %v151 = vld [vmem:[%s150] sm:$0xff]
    %v152 = vld [vmem:[%s150 + $0x8] sm:$0x1]
    %155 = vrot.lane.b32.xlu0 %v151, 102
    %v156 = vpop.permute.xlu0 %155
    %157 = vrot.lane.b32.xlu0 %v152, 102
    %v158 = vpop.permute.xlu0 %157
    %vm161 = vcmask 909104
    %162 = vst.msk [vmem:[#allocation2 + $0x8] sm:$0xff] %vm161, %v156
    %vm163 = vcmask 901936
    %164 = vst.msk [vmem:[#allocation2 + $0x40] sm:$0x1] %vm163, %v158
    %s165 = scalar_lea.vmem %s0, 112
    %v166 = vld [vmem:[%s165] sm:$0xff]
    %v167 = vld [vmem:[%s165 + $0x8] sm:$0x1]
    %170 = vrot.lane.b32.xlu0 %v166, 119
    %v171 = vpop.permute.xlu0 %170
    %172 = vrot.lane.b32.xlu0 %v167, 119
    %v173 = vpop.permute.xlu0 %172
    %vm176 = vcmask 1048504
    %177 = vst.msk [vmem:[#allocation2 + $0x8] sm:$0xff] %vm176, %v171
    %vm178 = vcmask 1041336
    %179 = vst.msk [vmem:[#allocation2 + $0x40] sm:$0x1] %vm178, %v173
    %s180 = scalar_lea.vmem %s0, 128
    %v181 = vld [vmem:[%s180] sm:$0xff]
    %v182 = vld [vmem:[%s180 + $0x8] sm:$0x1]
    %185 = vrot.lane.b32.xlu0 %v181, 8
    %v186 = vpop.permute.xlu0 %185
    %187 = vrot.lane.b32.xlu0 %v182, 8
    %v188 = vpop.permute.xlu0 %187
    %vm191 = vcmask 138304
    %192 = vst.msk [vmem:[#allocation2 + $0x10] sm:$0xff] %vm191, %v186
    %vm193 = vcmask 131136
    %194 = vst.msk [vmem:[#allocation2 + $0x48] sm:$0x1] %vm193, %v188
    %s195 = scalar_lea.vmem %s0, 144
    %v196 = vld [vmem:[%s195] sm:$0xff]
    %v197 = vld [vmem:[%s195 + $0x8] sm:$0x1]
    %198 = vst.msk [vmem:[#allocation2 + $0x20] sm:$0xff] %vm71, %v196
    %199 = vst.msk [vmem:[#allocation2 + $0x58] sm:$0x1] %vm73, %v197
    %s200 = scalar_lea.vmem %s0, 160
    %v201 = vld [vmem:[%s200] sm:$0xff]
    %v202 = vld [vmem:[%s200 + $0x8] sm:$0x1]
    %205 = vrot.lane.b32.xlu0 %v201, 17
    %v206 = vpop.permute.xlu0 %205
    %207 = vrot.lane.b32.xlu0 %v202, 17
    %v208 = vpop.permute.xlu0 %207
    %211 = vst.msk [vmem:[#allocation2 + $0x20] sm:$0xff] %vm86, %v206
    %212 = vst.msk [vmem:[#allocation2 + $0x58] sm:$0x1] %vm88, %v208
    %s213 = scalar_lea.vmem %s0, 176
    %v214 = vld [vmem:[%s213] sm:$0xff]
    %v215 = vld [vmem:[%s213 + $0x8] sm:$0x1]
    %218 = vrot.lane.b32.xlu0 %v214, 34
    %v219 = vpop.permute.xlu0 %218
    %220 = vrot.lane.b32.xlu0 %v215, 34
    %v221 = vpop.permute.xlu0 %220
    %224 = vst.msk [vmem:[#allocation2 + $0x20] sm:$0xff] %vm101, %v219
    %225 = vst.msk [vmem:[#allocation2 + $0x58] sm:$0x1] %vm103, %v221
    %s226 = scalar_lea.vmem %s0, 192
    %v227 = vld [vmem:[%s226] sm:$0xff]
    %v228 = vld [vmem:[%s226 + $0x8] sm:$0x1]
    %231 = vrot.lane.b32.xlu0 %v227, 51
    %v232 = vpop.permute.xlu0 %231
    %233 = vrot.lane.b32.xlu0 %v228, 51
    %v234 = vpop.permute.xlu0 %233
    %237 = vst.msk [vmem:[#allocation2 + $0x20] sm:$0xff] %vm116, %v232
    %238 = vst.msk [vmem:[#allocation2 + $0x58] sm:$0x1] %vm118, %v234
    %s239 = scalar_lea.vmem %s0, 208
    %v240 = vld [vmem:[%s239] sm:$0xff]
    %v241 = vld [vmem:[%s239 + $0x8] sm:$0x1]
    %244 = vrot.lane.b32.xlu0 %v240, 68
    %v245 = vpop.permute.xlu0 %244
    %246 = vrot.lane.b32.xlu0 %v241, 68
    %v247 = vpop.permute.xlu0 %246
    %250 = vst.msk [vmem:[#allocation2 + $0x20] sm:$0xff] %vm131, %v245
    %251 = vst.msk [vmem:[#allocation2 + $0x58] sm:$0x1] %vm133, %v247
    %s252 = scalar_lea.vmem %s0, 224
    %v253 = vld [vmem:[%s252] sm:$0xff]
    %v254 = vld [vmem:[%s252 + $0x8] sm:$0x1]
    %257 = vrot.lane.b32.xlu0 %v253, 85
    %v258 = vpop.permute.xlu0 %257
    %259 = vrot.lane.b32.xlu0 %v254, 85
    %v260 = vpop.permute.xlu0 %259
    %263 = vst.msk [vmem:[#allocation2 + $0x20] sm:$0xff] %vm146, %v258
    %264 = vst.msk [vmem:[#allocation2 + $0x58] sm:$0x1] %vm148, %v260
    %s265 = scalar_lea.vmem %s0, 240
    %v266 = vld [vmem:[%s265] sm:$0xff]
    %v267 = vld [vmem:[%s265 + $0x8] sm:$0x1]
    %270 = vrot.lane.b32.xlu0 %v266, 102
    %v271 = vpop.permute.xlu0 %270
    %272 = vrot.lane.b32.xlu0 %v267, 102
    %v273 = vpop.permute.xlu0 %272
    %276 = vst.msk [vmem:[#allocation2 + $0x20] sm:$0xff] %vm161, %v271
    %277 = vst.msk [vmem:[#allocation2 + $0x58] sm:$0x1] %vm163, %v273
    %s278 = scalar_lea.vmem %s0, 256
    %v279 = vld [vmem:[%s278] sm:$0xff]
    %v280 = vld [vmem:[%s278 + $0x8] sm:$0x1]
    %283 = vrot.lane.b32.xlu0 %v279, 119
    %v284 = vpop.permute.xlu0 %283
    %285 = vrot.lane.b32.xlu0 %v280, 119
    %v286 = vpop.permute.xlu0 %285
    %289 = vst.msk [vmem:[#allocation2 + $0x20] sm:$0xff] %vm176, %v284
    %290 = vst.msk [vmem:[#allocation2 + $0x58] sm:$0x1] %vm178, %v286
    %s291 = scalar_lea.vmem %s0, 272
    %v292 = vld [vmem:[%s291] sm:$0xff]
    %v293 = vld [vmem:[%s291 + $0x8] sm:$0x1]
    %296 = vrot.lane.b32.xlu0 %v292, 8
    %v297 = vpop.permute.xlu0 %296
    %298 = vrot.lane.b32.xlu0 %v293, 8
    %v299 = vpop.permute.xlu0 %298
    %302 = vst.msk [vmem:[#allocation2 + $0x28] sm:$0xff] %vm191, %v297
    %303 = vst.msk [vmem:[#allocation2 + $0x60] sm:$0x1] %vm193, %v299
    %v304 = vld [vmem:[#allocation2] sm:$0xff]
    %v305 = vld [vmem:[#allocation2 + $0x8] sm:$0xff]
    %v306 = vld [vmem:[#allocation2 + $0x10] sm:$0xff]
    %v307 = vld [vmem:[#allocation2 + $0x18] sm:$0xff]
    %v308 = vld [vmem:[#allocation2 + $0x20] sm:$0xff]
    %v309 = vld [vmem:[#allocation2 + $0x28] sm:$0xff]
    %v310 = vld [vmem:[#allocation2 + $0x30] sm:$0xff]
    %v311 = vld [vmem:[#allocation2 + $0x38] sm:$0xff]
    %v312 = vld [vmem:[#allocation2 + $0x40] sm:$0xff]
    %v313 = vld [vmem:[#allocation2 + $0x48] sm:$0xff]
    %v314 = vld [vmem:[#allocation2 + $0x50] sm:$0xff]
    %v315 = vld [vmem:[#allocation2 + $0x58] sm:$0xff]
    %v316 = vld [vmem:[#allocation2 + $0x60] sm:$0xff]
    %v317 = vld [vmem:[#allocation2 + $0x68] sm:$0xff]
    %332 = vrot.lane.b32.xlu0 %v304, 36
    %v333 = vpop.permute.xlu0 %332
    %334 = vrot.lane.b32.xlu0 %v305, 36
    %v335 = vpop.permute.xlu0 %334
    %336 = vrot.lane.b32.xlu0 %v306, 36
    %v337 = vpop.permute.xlu0 %336
    %338 = vrot.lane.b32.xlu0 %v307, 36
    %v339 = vpop.permute.xlu0 %338
    %340 = vrot.lane.b32.xlu0 %v308, 36
    %v341 = vpop.permute.xlu0 %340
    %342 = vrot.lane.b32.xlu0 %v309, 36
    %v343 = vpop.permute.xlu0 %342
    %344 = vrot.lane.b32.xlu0 %v310, 36
    %v345 = vpop.permute.xlu0 %344
    %346 = vrot.lane.b32.xlu0 %v311, 36
    %v347 = vpop.permute.xlu0 %346
    %348 = vrot.lane.b32.xlu0 %v312, 36
    %v349 = vpop.permute.xlu0 %348
    %350 = vrot.lane.b32.xlu0 %v313, 36
    %v351 = vpop.permute.xlu0 %350
    %352 = vrot.lane.b32.xlu0 %v314, 36
    %v353 = vpop.permute.xlu0 %352
    %354 = vrot.lane.b32.xlu0 %v315, 36
    %v355 = vpop.permute.xlu0 %354
    %356 = vrot.lane.b32.xlu0 %v316, 36
    %v357 = vpop.permute.xlu0 %356
    %358 = vrot.lane.b32.xlu0 %v317, 36
    %v359 = vpop.permute.xlu0 %358
    %vm360 = vcmask 293888
    %v361 = vsel %vm360, %v333, %v335
    %v362 = vsel %vm360, %v335, %v337
    %v363 = vsel %vm360, %v337, %v339
    %v364 = vsel %vm360, %v339, %v341
    %v365 = vsel %vm360, %v341, %v343
    %v366 = vsel %vm360, %v343, %v345
    %v367 = vsel %vm360, %v347, %v349
    %v368 = vsel %vm360, %v349, %v351
    %v369 = vsel %vm360, %v351, %v353
    %v370 = vsel %vm360, %v353, %v355
    %v371 = vsel %vm360, %v355, %v357
    %v372 = vsel %vm360, %v357, %v359
    %385 = vst [vmem:[#allocation3] sm:$0xff] %v361
    %386 = vst [vmem:[#allocation3 + $0x8] sm:$0xff] %v362
    %387 = vst [vmem:[#allocation3 + $0x10] sm:$0xff] %v363
    %388 = vst [vmem:[#allocation3 + $0x18] sm:$0xff] %v364
    %389 = vst [vmem:[#allocation3 + $0x20] sm:$0xff] %v365
    %390 = vst [vmem:[#allocation3 + $0x28] sm:$0xff] %v366
    %391 = vst [vmem:[#allocation3 + $0x30] sm:$0xff] %v367
    %392 = vst [vmem:[#allocation3 + $0x38] sm:$0xff] %v368
    %393 = vst [vmem:[#allocation3 + $0x40] sm:$0xff] %v369
    %394 = vst [vmem:[#allocation3 + $0x48] sm:$0xff] %v370
    %395 = vst [vmem:[#allocation3 + $0x50] sm:$0xff] %v371
    %396 = vst [vmem:[#allocation3 + $0x58] sm:$0xff] %v372
    %v397 = vld [vmem:[#allocation2] sm:$0xff]
    %v398 = vld [vmem:[#allocation2 + $0x8] sm:$0xff]
    %v399 = vld [vmem:[#allocation2 + $0x10] sm:$0xff]
    %v400 = vld [vmem:[#allocation2 + $0x18] sm:$0xff]
    %v401 = vld [vmem:[#allocation2 + $0x20] sm:$0xff]
    %v402 = vld [vmem:[#allocation2 + $0x28] sm:$0xff]
    %v403 = vld [vmem:[#allocation2 + $0x30] sm:$0xff]
    %v404 = vld [vmem:[#allocation2 + $0x38] sm:$0xff]
    %v405 = vld [vmem:[#allocation2 + $0x40] sm:$0xff]
    %v406 = vld [vmem:[#allocation2 + $0x48] sm:$0xff]
    %v407 = vld [vmem:[#allocation2 + $0x50] sm:$0xff]
    %v408 = vld [vmem:[#allocation2 + $0x58] sm:$0xff]
    %v409 = vld [vmem:[#allocation2 + $0x60] sm:$0xff]
    %v410 = vld [vmem:[#allocation2 + $0x68] sm:$0xff]
    %425 = vrot.lane.b32.xlu0 %v397, 35
    %v426 = vpop.permute.xlu0 %425
    %427 = vrot.lane.b32.xlu0 %v398, 35
    %v428 = vpop.permute.xlu0 %427
    %429 = vrot.lane.b32.xlu0 %v399, 35
    %v430 = vpop.permute.xlu0 %429
    %431 = vrot.lane.b32.xlu0 %v400, 35
    %v432 = vpop.permute.xlu0 %431
    %433 = vrot.lane.b32.xlu0 %v401, 35
    %v434 = vpop.permute.xlu0 %433
    %435 = vrot.lane.b32.xlu0 %v402, 35
    %v436 = vpop.permute.xlu0 %435
    %437 = vrot.lane.b32.xlu0 %v403, 35
    %v438 = vpop.permute.xlu0 %437
    %439 = vrot.lane.b32.xlu0 %v404, 35
    %v440 = vpop.permute.xlu0 %439
    %441 = vrot.lane.b32.xlu0 %v405, 35
    %v442 = vpop.permute.xlu0 %441
    %443 = vrot.lane.b32.xlu0 %v406, 35
    %v444 = vpop.permute.xlu0 %443
    %445 = vrot.lane.b32.xlu0 %v407, 35
    %v446 = vpop.permute.xlu0 %445
    %447 = vrot.lane.b32.xlu0 %v408, 35
    %v448 = vpop.permute.xlu0 %447
    %449 = vrot.lane.b32.xlu0 %v409, 35
    %v450 = vpop.permute.xlu0 %449
    %451 = vrot.lane.b32.xlu0 %v410, 35
    %v452 = vpop.permute.xlu0 %451
    %vm453 = vcmask 285696
    %v454 = vsel %vm453, %v426, %v428
    %v455 = vsel %vm453, %v428, %v430
    %v456 = vsel %vm453, %v430, %v432
    %v457 = vsel %vm453, %v432, %v434
    %v458 = vsel %vm453, %v434, %v436
    %v459 = vsel %vm453, %v436, %v438
    %v460 = vsel %vm453, %v440, %v442
    %v461 = vsel %vm453, %v442, %v444
    %v462 = vsel %vm453, %v444, %v446
    %v463 = vsel %vm453, %v446, %v448
    %v464 = vsel %vm453, %v448, %v450
    %v465 = vsel %vm453, %v450, %v452
    %478 = vst [vmem:[#allocation3 + $0x60] sm:$0xff] %v454
    %479 = vst [vmem:[#allocation3 + $0x68] sm:$0xff] %v455
    %480 = vst [vmem:[#allocation3 + $0x70] sm:$0xff] %v456
    %481 = vst [vmem:[#allocation3 + $0x78] sm:$0xff] %v457
    %482 = vst [vmem:[#allocation3 + $0x80] sm:$0xff] %v458
    %483 = vst [vmem:[#allocation3 + $0x88] sm:$0xff] %v459
    %484 = vst [vmem:[#allocation3 + $0x90] sm:$0xff] %v460
    %485 = vst [vmem:[#allocation3 + $0x98] sm:$0xff] %v461
    %486 = vst [vmem:[#allocation3 + $0xa0] sm:$0xff] %v462
    %487 = vst [vmem:[#allocation3 + $0xa8] sm:$0xff] %v463
    %488 = vst [vmem:[#allocation3 + $0xb0] sm:$0xff] %v464
    %489 = vst [vmem:[#allocation3 + $0xb8] sm:$0xff] %v465
    %v490 = vld [vmem:[#allocation2] sm:$0xff]
    %v491 = vld [vmem:[#allocation2 + $0x8] sm:$0xff]
    %v492 = vld [vmem:[#allocation2 + $0x10] sm:$0xff]
    %v493 = vld [vmem:[#allocation2 + $0x18] sm:$0xff]
    %v494 = vld [vmem:[#allocation2 + $0x20] sm:$0xff]
    %v495 = vld [vmem:[#allocation2 + $0x28] sm:$0xff]
    %v496 = vld [vmem:[#allocation2 + $0x30] sm:$0xff]
    %v497 = vld [vmem:[#allocation2 + $0x38] sm:$0xff]
    %v498 = vld [vmem:[#allocation2 + $0x40] sm:$0xff]
    %v499 = vld [vmem:[#allocation2 + $0x48] sm:$0xff]
    %v500 = vld [vmem:[#allocation2 + $0x50] sm:$0xff]
    %v501 = vld [vmem:[#allocation2 + $0x58] sm:$0xff]
    %v502 = vld [vmem:[#allocation2 + $0x60] sm:$0xff]
    %v503 = vld [vmem:[#allocation2 + $0x68] sm:$0xff]
    %518 = vrot.lane.b32.xlu0 %v490, 34
    %v519 = vpop.permute.xlu0 %518
    %520 = vrot.lane.b32.xlu0 %v491, 34
    %v521 = vpop.permute.xlu0 %520
    %522 = vrot.lane.b32.xlu0 %v492, 34
    %v523 = vpop.permute.xlu0 %522
    %524 = vrot.lane.b32.xlu0 %v493, 34
    %v525 = vpop.permute.xlu0 %524
    %526 = vrot.lane.b32.xlu0 %v494, 34
    %v527 = vpop.permute.xlu0 %526
    %528 = vrot.lane.b32.xlu0 %v495, 34
    %v529 = vpop.permute.xlu0 %528
    %530 = vrot.lane.b32.xlu0 %v496, 34
    %v531 = vpop.permute.xlu0 %530
    %532 = vrot.lane.b32.xlu0 %v497, 34
    %v533 = vpop.permute.xlu0 %532
    %534 = vrot.lane.b32.xlu0 %v498, 34
    %v535 = vpop.permute.xlu0 %534
    %536 = vrot.lane.b32.xlu0 %v499, 34
    %v537 = vpop.permute.xlu0 %536
    %538 = vrot.lane.b32.xlu0 %v500, 34
    %v539 = vpop.permute.xlu0 %538
    %540 = vrot.lane.b32.xlu0 %v501, 34
    %v541 = vpop.permute.xlu0 %540
    %542 = vrot.lane.b32.xlu0 %v502, 34
    %v543 = vpop.permute.xlu0 %542
    %544 = vrot.lane.b32.xlu0 %v503, 34
    %v545 = vpop.permute.xlu0 %544
    %vm546 = vcmask 277504
    %v547 = vsel %vm546, %v519, %v521
    %v548 = vsel %vm546, %v521, %v523
    %v549 = vsel %vm546, %v523, %v525
    %v550 = vsel %vm546, %v525, %v527
    %v551 = vsel %vm546, %v527, %v529
    %v552 = vsel %vm546, %v529, %v531
    %v553 = vsel %vm546, %v533, %v535
    %v554 = vsel %vm546, %v535, %v537
    %v555 = vsel %vm546, %v537, %v539
    %v556 = vsel %vm546, %v539, %v541
    %v557 = vsel %vm546, %v541, %v543
    %v558 = vsel %vm546, %v543, %v545
    %571 = vst [vmem:[#allocation3 + $0xc0] sm:$0xff] %v547
    %572 = vst [vmem:[#allocation3 + $0xc8] sm:$0xff] %v548
    %573 = vst [vmem:[#allocation3 + $0xd0] sm:$0xff] %v549
    %574 = vst [vmem:[#allocation3 + $0xd8] sm:$0xff] %v550
    %575 = vst [vmem:[#allocation3 + $0xe0] sm:$0xff] %v551
    %576 = vst [vmem:[#allocation3 + $0xe8] sm:$0xff] %v552
    %577 = vst [vmem:[#allocation3 + $0xf0] sm:$0xff] %v553
    %578 = vst [vmem:[#allocation3 + $0xf8] sm:$0xff] %v554
    %579 = vst [vmem:[#allocation3 + $0x100] sm:$0xff] %v555
    %580 = vst [vmem:[#allocation3 + $0x108] sm:$0xff] %v556
    %581 = vst [vmem:[#allocation3 + $0x110] sm:$0xff] %v557
    %582 = vst [vmem:[#allocation3 + $0x118] sm:$0xff] %v558
    %v583 = vld [vmem:[#allocation2] sm:$0xff]
    %v584 = vld [vmem:[#allocation2 + $0x8] sm:$0xff]
    %v585 = vld [vmem:[#allocation2 + $0x10] sm:$0xff]
    %v586 = vld [vmem:[#allocation2 + $0x18] sm:$0xff]
    %v587 = vld [vmem:[#allocation2 + $0x20] sm:$0xff]
    %v588 = vld [vmem:[#allocation2 + $0x28] sm:$0xff]
    %v589 = vld [vmem:[#allocation2 + $0x30] sm:$0xff]
    %v590 = vld [vmem:[#allocation2 + $0x38] sm:$0xff]
    %v591 = vld [vmem:[#allocation2 + $0x40] sm:$0xff]
    %v592 = vld [vmem:[#allocation2 + $0x48] sm:$0xff]
    %v593 = vld [vmem:[#allocation2 + $0x50] sm:$0xff]
    %v594 = vld [vmem:[#allocation2 + $0x58] sm:$0xff]
    %v595 = vld [vmem:[#allocation2 + $0x60] sm:$0xff]
    %v596 = vld [vmem:[#allocation2 + $0x68] sm:$0xff]
    %611 = vrot.lane.b32.xlu0 %v583, 19
    %v612 = vpop.permute.xlu0 %611
    %613 = vrot.lane.b32.xlu0 %v584, 19
    %v614 = vpop.permute.xlu0 %613
    %615 = vrot.lane.b32.xlu0 %v585, 19
    %v616 = vpop.permute.xlu0 %615
    %617 = vrot.lane.b32.xlu0 %v586, 19
    %v618 = vpop.permute.xlu0 %617
    %619 = vrot.lane.b32.xlu0 %v587, 19
    %v620 = vpop.permute.xlu0 %619
    %621 = vrot.lane.b32.xlu0 %v588, 19
    %v622 = vpop.permute.xlu0 %621
    %623 = vrot.lane.b32.xlu0 %v589, 19
    %v624 = vpop.permute.xlu0 %623
    %625 = vrot.lane.b32.xlu0 %v590, 19
    %v626 = vpop.permute.xlu0 %625
    %627 = vrot.lane.b32.xlu0 %v591, 19
    %v628 = vpop.permute.xlu0 %627
    %629 = vrot.lane.b32.xlu0 %v592, 19
    %v630 = vpop.permute.xlu0 %629
    %631 = vrot.lane.b32.xlu0 %v593, 19
    %v632 = vpop.permute.xlu0 %631
    %633 = vrot.lane.b32.xlu0 %v594, 19
    %v634 = vpop.permute.xlu0 %633
    %635 = vrot.lane.b32.xlu0 %v595, 19
    %v636 = vpop.permute.xlu0 %635
    %637 = vrot.lane.b32.xlu0 %v596, 19
    %v638 = vpop.permute.xlu0 %637
    %vm639 = vcmask 154624
    %v640 = vsel %vm639, %v612, %v614
    %v641 = vsel %vm639, %v614, %v616
    %v642 = vsel %vm639, %v616, %v618
    %v643 = vsel %vm639, %v618, %v620
    %v644 = vsel %vm639, %v620, %v622
    %v645 = vsel %vm639, %v622, %v624
    %v646 = vsel %vm639, %v626, %v628
    %v647 = vsel %vm639, %v628, %v630
    %v648 = vsel %vm639, %v630, %v632
    %v649 = vsel %vm639, %v632, %v634
    %v650 = vsel %vm639, %v634, %v636
    %v651 = vsel %vm639, %v636, %v638
    %664 = vst [vmem:[#allocation3 + $0x120] sm:$0xff] %v640
    %665 = vst [vmem:[#allocation3 + $0x128] sm:$0xff] %v641
    %666 = vst [vmem:[#allocation3 + $0x130] sm:$0xff] %v642
    %667 = vst [vmem:[#allocation3 + $0x138] sm:$0xff] %v643
    %668 = vst [vmem:[#allocation3 + $0x140] sm:$0xff] %v644
    %669 = vst [vmem:[#allocation3 + $0x148] sm:$0xff] %v645
    %670 = vst [vmem:[#allocation3 + $0x150] sm:$0xff] %v646
    %671 = vst [vmem:[#allocation3 + $0x158] sm:$0xff] %v647
    %672 = vst [vmem:[#allocation3 + $0x160] sm:$0xff] %v648
    %673 = vst [vmem:[#allocation3 + $0x168] sm:$0xff] %v649
    %674 = vst [vmem:[#allocation3 + $0x170] sm:$0xff] %v650
    %675 = vst [vmem:[#allocation3 + $0x178] sm:$0xff] %v651
    %v676 = vld [vmem:[#allocation2] sm:$0xff]
    %v677 = vld [vmem:[#allocation2 + $0x8] sm:$0xff]
    %v678 = vld [vmem:[#allocation2 + $0x10] sm:$0xff]
    %v679 = vld [vmem:[#allocation2 + $0x18] sm:$0xff]
    %v680 = vld [vmem:[#allocation2 + $0x20] sm:$0xff]
    %v681 = vld [vmem:[#allocation2 + $0x28] sm:$0xff]
    %v682 = vld [vmem:[#allocation2 + $0x30] sm:$0xff]
    %v683 = vld [vmem:[#allocation2 + $0x38] sm:$0xff]
    %v684 = vld [vmem:[#allocation2 + $0x40] sm:$0xff]
    %v685 = vld [vmem:[#allocation2 + $0x48] sm:$0xff]
    %v686 = vld [vmem:[#allocation2 + $0x50] sm:$0xff]
    %v687 = vld [vmem:[#allocation2 + $0x58] sm:$0xff]
    %v688 = vld [vmem:[#allocation2 + $0x60] sm:$0xff]
    %v689 = vld [vmem:[#allocation2 + $0x68] sm:$0xff]
    %704 = vrot.lane.b32.xlu0 %v676, 18
    %v705 = vpop.permute.xlu0 %704
    %706 = vrot.lane.b32.xlu0 %v677, 18
    %v707 = vpop.permute.xlu0 %706
    %708 = vrot.lane.b32.xlu0 %v678, 18
    %v709 = vpop.permute.xlu0 %708
    %710 = vrot.lane.b32.xlu0 %v679, 18
    %v711 = vpop.permute.xlu0 %710
    %712 = vrot.lane.b32.xlu0 %v680, 18
    %v713 = vpop.permute.xlu0 %712
    %714 = vrot.lane.b32.xlu0 %v681, 18
    %v715 = vpop.permute.xlu0 %714
    %716 = vrot.lane.b32.xlu0 %v682, 18
    %v717 = vpop.permute.xlu0 %716
    %718 = vrot.lane.b32.xlu0 %v683, 18
    %v719 = vpop.permute.xlu0 %718
    %720 = vrot.lane.b32.xlu0 %v684, 18
    %v721 = vpop.permute.xlu0 %720
    %722 = vrot.lane.b32.xlu0 %v685, 18
    %v723 = vpop.permute.xlu0 %722
    %724 = vrot.lane.b32.xlu0 %v686, 18
    %v725 = vpop.permute.xlu0 %724
    %726 = vrot.lane.b32.xlu0 %v687, 18
    %v727 = vpop.permute.xlu0 %726
    %728 = vrot.lane.b32.xlu0 %v688, 18
    %v729 = vpop.permute.xlu0 %728
    %730 = vrot.lane.b32.xlu0 %v689, 18
    %v731 = vpop.permute.xlu0 %730
    %vm732 = vcmask 146432
    %v733 = vsel %vm732, %v705, %v707
    %v734 = vsel %vm732, %v707, %v709
    %v735 = vsel %vm732, %v709, %v711
    %v736 = vsel %vm732, %v711, %v713
    %v737 = vsel %vm732, %v713, %v715
    %v738 = vsel %vm732, %v715, %v717
    %v739 = vsel %vm732, %v719, %v721
    %v740 = vsel %vm732, %v721, %v723
    %v741 = vsel %vm732, %v723, %v725
    %v742 = vsel %vm732, %v725, %v727
    %v743 = vsel %vm732, %v727, %v729
    %v744 = vsel %vm732, %v729, %v731
    %757 = vst [vmem:[#allocation3 + $0x180] sm:$0xff] %v733
    %758 = vst [vmem:[#allocation3 + $0x188] sm:$0xff] %v734
    %759 = vst [vmem:[#allocation3 + $0x190] sm:$0xff] %v735
    %760 = vst [vmem:[#allocation3 + $0x198] sm:$0xff] %v736
    %761 = vst [vmem:[#allocation3 + $0x1a0] sm:$0xff] %v737
    %762 = vst [vmem:[#allocation3 + $0x1a8] sm:$0xff] %v738
    %763 = vst [vmem:[#allocation3 + $0x1b0] sm:$0xff] %v739
    %764 = vst [vmem:[#allocation3 + $0x1b8] sm:$0xff] %v740
    %765 = vst [vmem:[#allocation3 + $0x1c0] sm:$0xff] %v741
    %766 = vst [vmem:[#allocation3 + $0x1c8] sm:$0xff] %v742
    %767 = vst [vmem:[#allocation3 + $0x1d0] sm:$0xff] %v743
    %768 = vst [vmem:[#allocation3 + $0x1d8] sm:$0xff] %v744
    %v769 = vld [vmem:[#allocation2] sm:$0xff]
    %v770 = vld [vmem:[#allocation2 + $0x8] sm:$0xff]
    %v771 = vld [vmem:[#allocation2 + $0x10] sm:$0xff]
    %v772 = vld [vmem:[#allocation2 + $0x18] sm:$0xff]
    %v773 = vld [vmem:[#allocation2 + $0x20] sm:$0xff]
    %v774 = vld [vmem:[#allocation2 + $0x28] sm:$0xff]
    %v775 = vld [vmem:[#allocation2 + $0x30] sm:$0xff]
    %v776 = vld [vmem:[#allocation2 + $0x38] sm:$0xff]
    %v777 = vld [vmem:[#allocation2 + $0x40] sm:$0xff]
    %v778 = vld [vmem:[#allocation2 + $0x48] sm:$0xff]
    %v779 = vld [vmem:[#allocation2 + $0x50] sm:$0xff]
    %v780 = vld [vmem:[#allocation2 + $0x58] sm:$0xff]
    %v781 = vld [vmem:[#allocation2 + $0x60] sm:$0xff]
    %v782 = vld [vmem:[#allocation2 + $0x68] sm:$0xff]
    %797 = vrot.lane.b32.xlu0 %v769, 17
    %v798 = vpop.permute.xlu0 %797
    %799 = vrot.lane.b32.xlu0 %v770, 17
    %v800 = vpop.permute.xlu0 %799
    %801 = vrot.lane.b32.xlu0 %v771, 17
    %v802 = vpop.permute.xlu0 %801
    %803 = vrot.lane.b32.xlu0 %v772, 17
    %v804 = vpop.permute.xlu0 %803
    %805 = vrot.lane.b32.xlu0 %v773, 17
    %v806 = vpop.permute.xlu0 %805
    %807 = vrot.lane.b32.xlu0 %v774, 17
    %v808 = vpop.permute.xlu0 %807
    %809 = vrot.lane.b32.xlu0 %v775, 17
    %v810 = vpop.permute.xlu0 %809
    %811 = vrot.lane.b32.xlu0 %v776, 17
    %v812 = vpop.permute.xlu0 %811
    %813 = vrot.lane.b32.xlu0 %v777, 17
    %v814 = vpop.permute.xlu0 %813
    %815 = vrot.lane.b32.xlu0 %v778, 17
    %v816 = vpop.permute.xlu0 %815
    %817 = vrot.lane.b32.xlu0 %v779, 17
    %v818 = vpop.permute.xlu0 %817
    %819 = vrot.lane.b32.xlu0 %v780, 17
    %v820 = vpop.permute.xlu0 %819
    %821 = vrot.lane.b32.xlu0 %v781, 17
    %v822 = vpop.permute.xlu0 %821
    %823 = vrot.lane.b32.xlu0 %v782, 17
    %v824 = vpop.permute.xlu0 %823
    %vm825 = vcmask 138240
    %v826 = vsel %vm825, %v798, %v800
    %v827 = vsel %vm825, %v800, %v802
    %v828 = vsel %vm825, %v802, %v804
    %v829 = vsel %vm825, %v804, %v806
    %v830 = vsel %vm825, %v806, %v808
    %v831 = vsel %vm825, %v808, %v810
    %v832 = vsel %vm825, %v812, %v814
    %v833 = vsel %vm825, %v814, %v816
    %v834 = vsel %vm825, %v816, %v818
    %v835 = vsel %vm825, %v818, %v820
    %v836 = vsel %vm825, %v820, %v822
    %v837 = vsel %vm825, %v822, %v824
    %850 = vst [vmem:[#allocation3 + $0x1e0] sm:$0xff] %v826
    %851 = vst [vmem:[#allocation3 + $0x1e8] sm:$0xff] %v827
    %852 = vst [vmem:[#allocation3 + $0x1f0] sm:$0xff] %v828
    %853 = vst [vmem:[#allocation3 + $0x1f8] sm:$0xff] %v829
    %854 = vst [vmem:[#allocation3 + $0x200] sm:$0xff] %v830
    %855 = vst [vmem:[#allocation3 + $0x208] sm:$0xff] %v831
    %856 = vst [vmem:[#allocation3 + $0x210] sm:$0xff] %v832
    %857 = vst [vmem:[#allocation3 + $0x218] sm:$0xff] %v833
    %858 = vst [vmem:[#allocation3 + $0x220] sm:$0xff] %v834
    %859 = vst [vmem:[#allocation3 + $0x228] sm:$0xff] %v835
    %860 = vst [vmem:[#allocation3 + $0x230] sm:$0xff] %v836
    %861 = vst [vmem:[#allocation3 + $0x238] sm:$0xff] %v837
    %v862 = vld [vmem:[#allocation2] sm:$0xff]
    %v863 = vld [vmem:[#allocation2 + $0x8] sm:$0xff]
    %v864 = vld [vmem:[#allocation2 + $0x10] sm:$0xff]
    %v865 = vld [vmem:[#allocation2 + $0x18] sm:$0xff]
    %v866 = vld [vmem:[#allocation2 + $0x20] sm:$0xff]
    %v867 = vld [vmem:[#allocation2 + $0x28] sm:$0xff]
    %v868 = vld [vmem:[#allocation2 + $0x30] sm:$0xff]
    %v869 = vld [vmem:[#allocation2 + $0x38] sm:$0xff]
    %v870 = vld [vmem:[#allocation2 + $0x40] sm:$0xff]
    %v871 = vld [vmem:[#allocation2 + $0x48] sm:$0xff]
    %v872 = vld [vmem:[#allocation2 + $0x50] sm:$0xff]
    %v873 = vld [vmem:[#allocation2 + $0x58] sm:$0xff]
    %v874 = vld [vmem:[#allocation2 + $0x60] sm:$0xff]
    %v875 = vld [vmem:[#allocation2 + $0x68] sm:$0xff]
    %890 = vrot.lane.b32.xlu0 %v862, 2
    %v891 = vpop.permute.xlu0 %890
    %892 = vrot.lane.b32.xlu0 %v863, 2
    %v893 = vpop.permute.xlu0 %892
    %894 = vrot.lane.b32.xlu0 %v864, 2
    %v895 = vpop.permute.xlu0 %894
    %896 = vrot.lane.b32.xlu0 %v865, 2
    %v897 = vpop.permute.xlu0 %896
    %898 = vrot.lane.b32.xlu0 %v866, 2
    %v899 = vpop.permute.xlu0 %898
    %900 = vrot.lane.b32.xlu0 %v867, 2
    %v901 = vpop.permute.xlu0 %900
    %902 = vrot.lane.b32.xlu0 %v868, 2
    %v903 = vpop.permute.xlu0 %902
    %904 = vrot.lane.b32.xlu0 %v869, 2
    %v905 = vpop.permute.xlu0 %904
    %906 = vrot.lane.b32.xlu0 %v870, 2
    %v907 = vpop.permute.xlu0 %906
    %908 = vrot.lane.b32.xlu0 %v871, 2
    %v909 = vpop.permute.xlu0 %908
    %910 = vrot.lane.b32.xlu0 %v872, 2
    %v911 = vpop.permute.xlu0 %910
    %912 = vrot.lane.b32.xlu0 %v873, 2
    %v913 = vpop.permute.xlu0 %912
    %914 = vrot.lane.b32.xlu0 %v874, 2
    %v915 = vpop.permute.xlu0 %914
    %916 = vrot.lane.b32.xlu0 %v875, 2
    %v917 = vpop.permute.xlu0 %916
    %vm918 = vcmask 15360
    %v919 = vsel %vm918, %v891, %v893
    %v920 = vsel %vm918, %v893, %v895
    %v921 = vsel %vm918, %v895, %v897
    %v922 = vsel %vm918, %v897, %v899
    %v923 = vsel %vm918, %v899, %v901
    %v924 = vsel %vm918, %v901, %v903
    %v925 = vsel %vm918, %v905, %v907
    %v926 = vsel %vm918, %v907, %v909
    %v927 = vsel %vm918, %v909, %v911
    %v928 = vsel %vm918, %v911, %v913
    %v929 = vsel %vm918, %v913, %v915
    %v930 = vsel %vm918, %v915, %v917
    %943 = vst [vmem:[#allocation3 + $0x240] sm:$0xff] %v919
    %944 = vst [vmem:[#allocation3 + $0x248] sm:$0xff] %v920
    %945 = vst [vmem:[#allocation3 + $0x250] sm:$0xff] %v921
    %946 = vst [vmem:[#allocation3 + $0x258] sm:$0xff] %v922
    %947 = vst [vmem:[#allocation3 + $0x260] sm:$0xff] %v923
    %948 = vst [vmem:[#allocation3 + $0x268] sm:$0xff] %v924
    %949 = vst [vmem:[#allocation3 + $0x270] sm:$0xff] %v925
    %950 = vst [vmem:[#allocation3 + $0x278] sm:$0xff] %v926
    %951 = vst [vmem:[#allocation3 + $0x280] sm:$0xff] %v927
    %952 = vst [vmem:[#allocation3 + $0x288] sm:$0xff] %v928
    %953 = vst [vmem:[#allocation3 + $0x290] sm:$0xff] %v929
    %954 = vst [vmem:[#allocation3 + $0x298] sm:$0xff] %v930
    %v955 = vld [vmem:[#allocation2] sm:$0xff]
    %v956 = vld [vmem:[#allocation2 + $0x8] sm:$0xff]
    %v957 = vld [vmem:[#allocation2 + $0x10] sm:$0xff]
    %v958 = vld [vmem:[#allocation2 + $0x18] sm:$0xff]
    %v959 = vld [vmem:[#allocation2 + $0x20] sm:$0xff]
    %v960 = vld [vmem:[#allocation2 + $0x28] sm:$0xff]
    %v961 = vld [vmem:[#allocation2 + $0x30] sm:$0xff]
    %v962 = vld [vmem:[#allocation2 + $0x38] sm:$0xff]
    %v963 = vld [vmem:[#allocation2 + $0x40] sm:$0xff]
    %v964 = vld [vmem:[#allocation2 + $0x48] sm:$0xff]
    %v965 = vld [vmem:[#allocation2 + $0x50] sm:$0xff]
    %v966 = vld [vmem:[#allocation2 + $0x58] sm:$0xff]
    %v967 = vld [vmem:[#allocation2 + $0x60] sm:$0xff]
    %v968 = vld [vmem:[#allocation2 + $0x68] sm:$0xff]
    %983 = vrot.lane.b32.xlu0 %v955, 1
    %v984 = vpop.permute.xlu0 %983
    %985 = vrot.lane.b32.xlu0 %v956, 1
    %v986 = vpop.permute.xlu0 %985
    %987 = vrot.lane.b32.xlu0 %v957, 1
    %v988 = vpop.permute.xlu0 %987
    %989 = vrot.lane.b32.xlu0 %v958, 1
    %v990 = vpop.permute.xlu0 %989
    %991 = vrot.lane.b32.xlu0 %v959, 1
    %v992 = vpop.permute.xlu0 %991
    %993 = vrot.lane.b32.xlu0 %v960, 1
    %v994 = vpop.permute.xlu0 %993
    %995 = vrot.lane.b32.xlu0 %v961, 1
    %v996 = vpop.permute.xlu0 %995
    %997 = vrot.lane.b32.xlu0 %v962, 1
    %v998 = vpop.permute.xlu0 %997
    %999 = vrot.lane.b32.xlu0 %v963, 1
    %v1000 = vpop.permute.xlu0 %999
    %1001 = vrot.lane.b32.xlu0 %v964, 1
    %v1002 = vpop.permute.xlu0 %1001
    %1003 = vrot.lane.b32.xlu0 %v965, 1
    %v1004 = vpop.permute.xlu0 %1003
    %1005 = vrot.lane.b32.xlu0 %v966, 1
    %v1006 = vpop.permute.xlu0 %1005
    %1007 = vrot.lane.b32.xlu0 %v967, 1
    %v1008 = vpop.permute.xlu0 %1007
    %1009 = vrot.lane.b32.xlu0 %v968, 1
    %v1010 = vpop.permute.xlu0 %1009
    %vm1011 = vcmask 7168
    %v1012 = vsel %vm1011, %v984, %v986
    %v1013 = vsel %vm1011, %v986, %v988
    %v1014 = vsel %vm1011, %v988, %v990
    %v1015 = vsel %vm1011, %v990, %v992
    %v1016 = vsel %vm1011, %v992, %v994
    %v1017 = vsel %vm1011, %v994, %v996
    %v1018 = vsel %vm1011, %v998, %v1000
    %v1019 = vsel %vm1011, %v1000, %v1002
    %v1020 = vsel %vm1011, %v1002, %v1004
    %v1021 = vsel %vm1011, %v1004, %v1006
    %v1022 = vsel %vm1011, %v1006, %v1008
    %v1023 = vsel %vm1011, %v1008, %v1010
    %1036 = vst [vmem:[#allocation3 + $0x2a0] sm:$0xff] %v1012
    %1037 = vst [vmem:[#allocation3 + $0x2a8] sm:$0xff] %v1013
    %1038 = vst [vmem:[#allocation3 + $0x2b0] sm:$0xff] %v1014
    %1039 = vst [vmem:[#allocation3 + $0x2b8] sm:$0xff] %v1015
    %1040 = vst [vmem:[#allocation3 + $0x2c0] sm:$0xff] %v1016
    %1041 = vst [vmem:[#allocation3 + $0x2c8] sm:$0xff] %v1017
    %1042 = vst [vmem:[#allocation3 + $0x2d0] sm:$0xff] %v1018
    %1043 = vst [vmem:[#allocation3 + $0x2d8] sm:$0xff] %v1019
    %1044 = vst [vmem:[#allocation3 + $0x2e0] sm:$0xff] %v1020
    %1045 = vst [vmem:[#allocation3 + $0x2e8] sm:$0xff] %v1021
    %1046 = vst [vmem:[#allocation3 + $0x2f0] sm:$0xff] %v1022
    %1047 = vst [vmem:[#allocation3 + $0x2f8] sm:$0xff] %v1023
    %v1048 = vld [vmem:[#allocation2 + $0x8] sm:$0xff]
    %v1049 = vld [vmem:[#allocation2 + $0x10] sm:$0xff]
    %v1050 = vld [vmem:[#allocation2 + $0x18] sm:$0xff]
    %v1051 = vld [vmem:[#allocation2 + $0x20] sm:$0xff]
    %v1052 = vld [vmem:[#allocation2 + $0x28] sm:$0xff]
    %v1053 = vld [vmem:[#allocation2 + $0x30] sm:$0xff]
    %v1054 = vld [vmem:[#allocation2 + $0x40] sm:$0xff]
    %v1055 = vld [vmem:[#allocation2 + $0x48] sm:$0xff]
    %v1056 = vld [vmem:[#allocation2 + $0x50] sm:$0xff]
    %v1057 = vld [vmem:[#allocation2 + $0x58] sm:$0xff]
    %v1058 = vld [vmem:[#allocation2 + $0x60] sm:$0xff]
    %v1059 = vld [vmem:[#allocation2 + $0x68] sm:$0xff]
    %1060 = vst [vmem:[#allocation3 + $0x300] sm:$0xff] %v1048
    %1061 = vst [vmem:[#allocation3 + $0x308] sm:$0xff] %v1049
    %1062 = vst [vmem:[#allocation3 + $0x310] sm:$0xff] %v1050
    %1063 = vst [vmem:[#allocation3 + $0x318] sm:$0xff] %v1051
    %1064 = vst [vmem:[#allocation3 + $0x320] sm:$0xff] %v1052
    %1065 = vst [vmem:[#allocation3 + $0x328] sm:$0xff] %v1053
    %1066 = vst [vmem:[#allocation3 + $0x330] sm:$0xff] %v1054
    %1067 = vst [vmem:[#allocation3 + $0x338] sm:$0xff] %v1055
    %1068 = vst [vmem:[#allocation3 + $0x340] sm:$0xff] %v1056
    %1069 = vst [vmem:[#allocation3 + $0x348] sm:$0xff] %v1057
    %1070 = vst [vmem:[#allocation3 + $0x350] sm:$0xff] %v1058
    %1071 = vst [vmem:[#allocation3 + $0x358] sm:$0xff] %v1059
    %v1072 = vld [vmem:[%s1] sm:$0xff]
    %v1073 = vld [vmem:[%s1 + $0x8] sm:$0xff]
    %v1074 = vld [vmem:[%s1 + $0x10] sm:$0xff]
    %v1075 = vld [vmem:[%s1 + $0x18] sm:$0xff]
    %v1076 = vld [vmem:[#allocation3] sm:$0xff]
    %v1077 = vld [vmem:[#allocation3 + $0x8] sm:$0xff]
    %v1078 = vld [vmem:[#allocation3 + $0x10] sm:$0xff]
    %v1079 = vld [vmem:[#allocation3 + $0x18] sm:$0xff]
    %v1080 = vld [vmem:[#allocation3 + $0x20] sm:$0xff]
    %v1081 = vld [vmem:[#allocation3 + $0x28] sm:$0xff]
    %v1082 = vld [vmem:[#allocation3 + $0x30] sm:$0xff]
    %v1083 = vld [vmem:[#allocation3 + $0x38] sm:$0xff]
    %v1084 = vld [vmem:[#allocation3 + $0x40] sm:$0xff]
    %v1085 = vld [vmem:[#allocation3 + $0x48] sm:$0xff]
    %v1086 = vld [vmem:[#allocation3 + $0x50] sm:$0xff]
    %v1087 = vld [vmem:[#allocation3 + $0x58] sm:$0xff]
    %v1088 = vld [vmem:[#allocation3 + $0x60] sm:$0xff]
    %v1089 = vld [vmem:[#allocation3 + $0x68] sm:$0xff]
    %v1090 = vld [vmem:[#allocation3 + $0x70] sm:$0xff]
    %v1091 = vld [vmem:[#allocation3 + $0x78] sm:$0xff]
    %v1092 = vld [vmem:[#allocation3 + $0x80] sm:$0xff]
    %v1093 = vld [vmem:[#allocation3 + $0x88] sm:$0xff]
    %v1094 = vld [vmem:[#allocation3 + $0x90] sm:$0xff]
    %v1095 = vld [vmem:[#allocation3 + $0x98] sm:$0xff]
    %v1096 = vld [vmem:[#allocation3 + $0xa0] sm:$0xff]
    %v1097 = vld [vmem:[#allocation3 + $0xa8] sm:$0xff]
    %v1098 = vld [vmem:[#allocation3 + $0xb0] sm:$0xff]
    %v1099 = vld [vmem:[#allocation3 + $0xb8] sm:$0xff]
    %v1100 = vld [vmem:[#allocation3 + $0xc0] sm:$0xff]
    %v1101 = vld [vmem:[#allocation3 + $0xc8] sm:$0xff]
    %v1102 = vld [vmem:[#allocation3 + $0xd0] sm:$0xff]
    %v1103 = vld [vmem:[#allocation3 + $0xd8] sm:$0xff]
    %v1104 = vld [vmem:[#allocation3 + $0xe0] sm:$0xff]
    %v1105 = vld [vmem:[#allocation3 + $0xe8] sm:$0xff]
    %v1106 = vld [vmem:[#allocation3 + $0xf0] sm:$0xff]
    %v1107 = vld [vmem:[#allocation3 + $0xf8] sm:$0xff]
    %v1108 = vld [vmem:[#allocation3 + $0x100] sm:$0xff]
    %v1109 = vld [vmem:[#allocation3 + $0x108] sm:$0xff]
    %v1110 = vld [vmem:[#allocation3 + $0x110] sm:$0xff]
    %v1111 = vld [vmem:[#allocation3 + $0x118] sm:$0xff]
    %v1112 = vld [vmem:[#allocation3 + $0x120] sm:$0xff]
    %v1113 = vld [vmem:[#allocation3 + $0x128] sm:$0xff]
    %v1114 = vld [vmem:[#allocation3 + $0x130] sm:$0xff]
    %v1115 = vld [vmem:[#allocation3 + $0x138] sm:$0xff]
    %v1116 = vld [vmem:[#allocation3 + $0x140] sm:$0xff]
    %v1117 = vld [vmem:[#allocation3 + $0x148] sm:$0xff]
    %v1118 = vld [vmem:[#allocation3 + $0x150] sm:$0xff]
    %v1119 = vld [vmem:[#allocation3 + $0x158] sm:$0xff]
    %v1120 = vld [vmem:[#allocation3 + $0x160] sm:$0xff]
    %v1121 = vld [vmem:[#allocation3 + $0x168] sm:$0xff]
    %v1122 = vld [vmem:[#allocation3 + $0x170] sm:$0xff]
    %v1123 = vld [vmem:[#allocation3 + $0x178] sm:$0xff]
    %v1124 = vld [vmem:[#allocation3 + $0x180] sm:$0xff]
    %v1125 = vld [vmem:[#allocation3 + $0x188] sm:$0xff]
    %v1126 = vld [vmem:[#allocation3 + $0x190] sm:$0xff]
    %v1127 = vld [vmem:[#allocation3 + $0x198] sm:$0xff]
    %v1128 = vld [vmem:[#allocation3 + $0x1a0] sm:$0xff]
    %v1129 = vld [vmem:[#allocation3 + $0x1a8] sm:$0xff]
    %v1130 = vld [vmem:[#allocation3 + $0x1b0] sm:$0xff]
    %v1131 = vld [vmem:[#allocation3 + $0x1b8] sm:$0xff]
    %v1132 = vld [vmem:[#allocation3 + $0x1c0] sm:$0xff]
    %v1133 = vld [vmem:[#allocation3 + $0x1c8] sm:$0xff]
    %v1134 = vld [vmem:[#allocation3 + $0x1d0] sm:$0xff]
    %v1135 = vld [vmem:[#allocation3 + $0x1d8] sm:$0xff]
    %v1136 = vld [vmem:[#allocation3 + $0x1e0] sm:$0xff]
    %v1137 = vld [vmem:[#allocation3 + $0x1e8] sm:$0xff]
    %v1138 = vld [vmem:[#allocation3 + $0x1f0] sm:$0xff]
    %v1139 = vld [vmem:[#allocation3 + $0x1f8] sm:$0xff]
    %v1140 = vld [vmem:[#allocation3 + $0x200] sm:$0xff]
    %v1141 = vld [vmem:[#allocation3 + $0x208] sm:$0xff]
    %v1142 = vld [vmem:[#allocation3 + $0x210] sm:$0xff]
    %v1143 = vld [vmem:[#allocation3 + $0x218] sm:$0xff]
    %v1144 = vld [vmem:[#allocation3 + $0x220] sm:$0xff]
    %v1145 = vld [vmem:[#allocation3 + $0x228] sm:$0xff]
    %v1146 = vld [vmem:[#allocation3 + $0x230] sm:$0xff]
    %v1147 = vld [vmem:[#allocation3 + $0x238] sm:$0xff]
    %v1148 = vld [vmem:[#allocation3 + $0x240] sm:$0xff]
    %v1149 = vld [vmem:[#allocation3 + $0x248] sm:$0xff]
    %v1150 = vld [vmem:[#allocation3 + $0x250] sm:$0xff]
    %v1151 = vld [vmem:[#allocation3 + $0x258] sm:$0xff]
    %v1152 = vld [vmem:[#allocation3 + $0x260] sm:$0xff]
    %v1153 = vld [vmem:[#allocation3 + $0x268] sm:$0xff]
    %v1154 = vld [vmem:[#allocation3 + $0x270] sm:$0xff]
    %v1155 = vld [vmem:[#allocation3 + $0x278] sm:$0xff]
    %v1156 = vld [vmem:[#allocation3 + $0x280] sm:$0xff]
    %v1157 = vld [vmem:[#allocation3 + $0x288] sm:$0xff]
    %v1158 = vld [vmem:[#allocation3 + $0x290] sm:$0xff]
    %v1159 = vld [vmem:[#allocation3 + $0x298] sm:$0xff]
    %v1160 = vld [vmem:[#allocation3 + $0x2a0] sm:$0xff]
    %v1161 = vld [vmem:[#allocation3 + $0x2a8] sm:$0xff]
    %v1162 = vld [vmem:[#allocation3 + $0x2b0] sm:$0xff]
    %v1163 = vld [vmem:[#allocation3 + $0x2b8] sm:$0xff]
    %v1164 = vld [vmem:[#allocation3 + $0x2c0] sm:$0xff]
    %v1165 = vld [vmem:[#allocation3 + $0x2c8] sm:$0xff]
    %v1166 = vld [vmem:[#allocation3 + $0x2d0] sm:$0xff]
    %v1167 = vld [vmem:[#allocation3 + $0x2d8] sm:$0xff]
    %v1168 = vld [vmem:[#allocation3 + $0x2e0] sm:$0xff]
    %v1169 = vld [vmem:[#allocation3 + $0x2e8] sm:$0xff]
    %v1170 = vld [vmem:[#allocation3 + $0x2f0] sm:$0xff]
    %v1171 = vld [vmem:[#allocation3 + $0x2f8] sm:$0xff]
    %v1172 = vld [vmem:[#allocation3 + $0x300] sm:$0xff]
    %v1173 = vld [vmem:[#allocation3 + $0x308] sm:$0xff]
    %v1174 = vld [vmem:[#allocation3 + $0x310] sm:$0xff]
    %v1175 = vld [vmem:[#allocation3 + $0x318] sm:$0xff]
    %v1176 = vld [vmem:[#allocation3 + $0x320] sm:$0xff]
    %v1177 = vld [vmem:[#allocation3 + $0x328] sm:$0xff]
    %v1178 = vld [vmem:[#allocation3 + $0x330] sm:$0xff]
    %v1179 = vld [vmem:[#allocation3 + $0x338] sm:$0xff]
    %v1180 = vld [vmem:[#allocation3 + $0x340] sm:$0xff]
    %v1181 = vld [vmem:[#allocation3 + $0x348] sm:$0xff]
    %v1182 = vld [vmem:[#allocation3 + $0x350] sm:$0xff]
    %v1183 = vld [vmem:[#allocation3 + $0x358] sm:$0xff]
    %v1184 = vld [vmem:[%s2] sm:$0xff]
    %v1185 = vld [vmem:[%s2 + $0x8] sm:$0xff]
    %1187 = vset.pattern.permute.xlu0 0
    %1188 = vperm.xlu0 %1187, %v1184
    %v1189 = vpop.permute.xlu0 %1188
    %1192 = vset.pattern.permute.xlu0 0
    %1193 = vperm.xlu0 %1192, %v1185
    %v1194 = vpop.permute.xlu0 %1193
    %vm1196 = vcmask 130048
    %v1198 = vsel %vm1196, %v1073, 0
    %v1201 = vsel %vm1196, %v1075, 0
    %1203 = vmatprep.subr.mxu0 %v1077
    %1204 = vmatpush1.msra.mxu0 %v1076
    %1205 = vmatprep.subr.mxu0 %v1083
    %1206 = vmatpush1.msra.mxu0 %v1082
    %1207 = vmatprep.subr.mxu0 %v1089
    %1208 = vmatpush1.msra.mxu0 %v1088
    %1209 = vmatprep.subr.mxu0 %v1095
    %1210 = vmatpush1.msra.mxu0 %v1094
    %1211 = vmatprep.subr.mxu0 %v1101
    %1212 = vmatpush1.msra.mxu0 %v1100
    %1213 = vmatprep.subr.mxu0 %v1107
    %1214 = vmatpush1.msra.mxu0 %v1106
    %1215 = vmatprep.subr.mxu0 %v1113
    %1216 = vmatpush1.msra.mxu0 %v1112
    %1217 = vmatprep.subr.mxu0 %v1119
    %1218 = vmatpush1.msra.mxu0 %v1118
    %1219 = vmatprep.subr.mxu0 %v1125
    %1220 = vmatpush1.msra.mxu0 %v1124
    %1221 = vmatprep.subr.mxu0 %v1131
    %1222 = vmatpush1.msra.mxu0 %v1130
    %1223 = vmatprep.subr.mxu0 %v1137
    %1224 = vmatpush1.msra.mxu0 %v1136
    %1225 = vmatprep.subr.mxu0 %v1143
    %1226 = vmatpush1.msra.mxu0 %v1142
    %1227 = vmatprep.subr.mxu0 %v1149
    %1228 = vmatpush1.msra.mxu0 %v1148
    %1229 = vmatprep.subr.mxu0 %v1155
    %1230 = vmatpush1.msra.mxu0 %v1154
    %1231 = vmatprep.subr.mxu0 %v1161
    %1232 = vmatpush1.msra.mxu0 %v1160
    %1233 = vmatprep.subr.mxu0 %v1167
    %1234 = vmatpush1.msra.mxu0 %v1166
    %1235 = vmatprep.subr.mxu0 %v1173
    %1236 = vmatpush1.msra.mxu0 %v1172
    %1237 = vmatprep.subr.mxu0 %v1179
    %1238 = vmatpush1.msra.mxu0 %v1178
    %1239 = vmatprep.subr.mxu0 0.0
    %1240 = vmatpush1.msra.mxu0 0.0
    %1241 = vmatprep.subr.mxu0 0.0
    %1242 = vmatpush1.msra.mxu0 0.0
    %1243 = vmatprep.subr.mxu0 0.0
    %1244 = vmatpush1.msra.mxu0 0.0
    %1245 = vmatprep.subr.mxu0 0.0
    %1246 = vmatpush1.msra.mxu0 0.0
    %1247 = vmatprep.subr.mxu0 0.0
    %1248 = vmatpush1.msra.mxu0 0.0
    %1249 = vmatprep.subr.mxu0 0.0
    %1250 = vmatpush1.msra.mxu0 0.0
    %1251 = vmatprep.subr.mxu0 0.0
    %1252 = vmatpush1.msra.mxu0 0.0
    %1253 = vmatprep.subr.mxu0 0.0
    %1254 = vmatpush1.msra.mxu0 0.0
    %1255 = vmatprep.subr.mxu0 0.0
    %1256 = vmatpush1.msra.mxu0 0.0
    %1257 = vmatprep.subr.mxu0 0.0
    %1258 = vmatpush1.msra.mxu0 0.0
    %1259 = vmatprep.subr.mxu0 0.0
    %1260 = vmatpush1.msra.mxu0 0.0
    %1261 = vmatprep.subr.mxu0 0.0
    %1262 = vmatpush1.msra.mxu0 0.0
    %1263 = vmatprep.subr.mxu0 0.0
    %1264 = vmatpush1.msra.mxu0 0.0
    %1265 = vmatprep.subr.mxu0 0.0
    %1266 = vmatpush1.msra.mxu0 0.0
    %1267 = vmatprep.mubr.f32.mxu0 %v1198
    %1268 = vmatmul.mubr.f32.gmra.mrb[0].mxu0 %v1072
    %v1269 = vpop.f32.mrb[0].mxu0
    %v1270 = vadd.f32 %v1189, %v1269
    %v1271 = vpop.f32.mrb[0].mxu0
    %v1272 = vadd.f32 %v1189, %v1271
    %1273 = vmatprep.mubr.f32.mxu0 %v1201
    %1274 = vmatmul.mubr.f32.gmra.mrb[0].mxu0 %v1074
    %v1275 = vpop.f32.mrb[0].mxu0
    %v1276 = vadd.f32 %v1194, %v1275
    %v1277 = vpop.f32.mrb[0].mxu0
    %v1278 = vadd.f32 %v1194, %v1277
    %1279 = vdwg.mxu0
    %1280 = vmatprep.subr.mxu0 %v1079
    %1281 = vmatpush1.msra.mxu0 %v1078
    %1282 = vmatprep.subr.mxu0 %v1085
    %1283 = vmatpush1.msra.mxu0 %v1084
    %1284 = vmatprep.subr.mxu0 %v1091
    %1285 = vmatpush1.msra.mxu0 %v1090
    %1286 = vmatprep.subr.mxu0 %v1097
    %1287 = vmatpush1.msra.mxu0 %v1096
    %1288 = vmatprep.subr.mxu0 %v1103
    %1289 = vmatpush1.msra.mxu0 %v1102
    %1290 = vmatprep.subr.mxu0 %v1109
    %1291 = vmatpush1.msra.mxu0 %v1108
    %1292 = vmatprep.subr.mxu0 %v1115
    %1293 = vmatpush1.msra.mxu0 %v1114
    %1294 = vmatprep.subr.mxu0 %v1121
    %1295 = vmatpush1.msra.mxu0 %v1120
    %1296 = vmatprep.subr.mxu0 %v1127
    %1297 = vmatpush1.msra.mxu0 %v1126
    %1298 = vmatprep.subr.mxu0 %v1133
    %1299 = vmatpush1.msra.mxu0 %v1132
    %1300 = vmatprep.subr.mxu0 %v1139
    %1301 = vmatpush1.msra.mxu0 %v1138
    %1302 = vmatprep.subr.mxu0 %v1145
    %1303 = vmatpush1.msra.mxu0 %v1144
    %1304 = vmatprep.subr.mxu0 %v1151
    %1305 = vmatpush1.msra.mxu0 %v1150
    %1306 = vmatprep.subr.mxu0 %v1157
    %1307 = vmatpush1.msra.mxu0 %v1156
    %1308 = vmatprep.subr.mxu0 %v1163
    %1309 = vmatpush1.msra.mxu0 %v1162
    %1310 = vmatprep.subr.mxu0 %v1169
    %1311 = vmatpush1.msra.mxu0 %v1168
    %1312 = vmatprep.subr.mxu0 %v1175
    %1313 = vmatpush1.msra.mxu0 %v1174
    %1314 = vmatprep.subr.mxu0 %v1181
    %1315 = vmatpush1.msra.mxu0 %v1180
    %1316 = vmatprep.subr.mxu0 0.0
    %1317 = vmatpush1.msra.mxu0 0.0
    %1318 = vmatprep.subr.mxu0 0.0
    %1319 = vmatpush1.msra.mxu0 0.0
    %1320 = vmatprep.subr.mxu0 0.0
    %1321 = vmatpush1.msra.mxu0 0.0
    %1322 = vmatprep.subr.mxu0 0.0
    %1323 = vmatpush1.msra.mxu0 0.0
    %1324 = vmatprep.subr.mxu0 0.0
    %1325 = vmatpush1.msra.mxu0 0.0
    %1326 = vmatprep.subr.mxu0 0.0
    %1327 = vmatpush1.msra.mxu0 0.0
    %1328 = vmatprep.subr.mxu0 0.0
    %1329 = vmatpush1.msra.mxu0 0.0
    %1330 = vmatprep.subr.mxu0 0.0
    %1331 = vmatpush1.msra.mxu0 0.0
    %1332 = vmatprep.subr.mxu0 0.0
    %1333 = vmatpush1.msra.mxu0 0.0
    %1334 = vmatprep.subr.mxu0 0.0
    %1335 = vmatpush1.msra.mxu0 0.0
    %1336 = vmatprep.subr.mxu0 0.0
    %1337 = vmatpush1.msra.mxu0 0.0
    %1338 = vmatprep.subr.mxu0 0.0
    %1339 = vmatpush1.msra.mxu0 0.0
    %1340 = vmatprep.subr.mxu0 0.0
    %1341 = vmatpush1.msra.mxu0 0.0
    %1342 = vmatprep.subr.mxu0 0.0
    %1343 = vmatpush1.msra.mxu0 0.0
    %1344 = vmatprep.mubr.f32.mxu0 %v1198
    %1345 = vmatmul.mubr.f32.gmra.mrb[0].mxu0 %v1072
    %v1346 = vpop.f32.mrb[0].mxu0
    %v1347 = vadd.f32 %v1189, %v1346
    %v1348 = vpop.f32.mrb[0].mxu0
    %v1349 = vadd.f32 %v1189, %v1348
    %1350 = vmatprep.mubr.f32.mxu0 %v1201
    %1351 = vmatmul.mubr.f32.gmra.mrb[0].mxu0 %v1074
    %v1352 = vpop.f32.mrb[0].mxu0
    %v1353 = vadd.f32 %v1194, %v1352
    %v1354 = vpop.f32.mrb[0].mxu0
    %v1355 = vadd.f32 %v1194, %v1354
    %1356 = vdwg.mxu0
    %1357 = vmatprep.subr.mxu0 %v1081
    %1358 = vmatpush1.msra.mxu0 %v1080
    %1359 = vmatprep.subr.mxu0 %v1087
    %1360 = vmatpush1.msra.mxu0 %v1086
    %1361 = vmatprep.subr.mxu0 %v1093
    %1362 = vmatpush1.msra.mxu0 %v1092
    %1363 = vmatprep.subr.mxu0 %v1099
    %1364 = vmatpush1.msra.mxu0 %v1098
    %1365 = vmatprep.subr.mxu0 %v1105
    %1366 = vmatpush1.msra.mxu0 %v1104
    %1367 = vmatprep.subr.mxu0 %v1111
    %1368 = vmatpush1.msra.mxu0 %v1110
    %1369 = vmatprep.subr.mxu0 %v1117
    %1370 = vmatpush1.msra.mxu0 %v1116
    %1371 = vmatprep.subr.mxu0 %v1123
    %1372 = vmatpush1.msra.mxu0 %v1122
    %1373 = vmatprep.subr.mxu0 %v1129
    %1374 = vmatpush1.msra.mxu0 %v1128
    %1375 = vmatprep.subr.mxu0 %v1135
    %1376 = vmatpush1.msra.mxu0 %v1134
    %1377 = vmatprep.subr.mxu0 %v1141
    %1378 = vmatpush1.msra.mxu0 %v1140
    %1379 = vmatprep.subr.mxu0 %v1147
    %1380 = vmatpush1.msra.mxu0 %v1146
    %1381 = vmatprep.subr.mxu0 %v1153
    %1382 = vmatpush1.msra.mxu0 %v1152
    %1383 = vmatprep.subr.mxu0 %v1159
    %1384 = vmatpush1.msra.mxu0 %v1158
    %1385 = vmatprep.subr.mxu0 %v1165
    %1386 = vmatpush1.msra.mxu0 %v1164
    %1387 = vmatprep.subr.mxu0 %v1171
    %1388 = vmatpush1.msra.mxu0 %v1170
    %1389 = vmatprep.subr.mxu0 %v1177
    %1390 = vmatpush1.msra.mxu0 %v1176
    %1391 = vmatprep.subr.mxu0 %v1183
    %1392 = vmatpush1.msra.mxu0 %v1182
    %1393 = vmatprep.subr.mxu0 0.0
    %1394 = vmatpush1.msra.mxu0 0.0
    %1395 = vmatprep.subr.mxu0 0.0
    %1396 = vmatpush1.msra.mxu0 0.0
    %1397 = vmatprep.subr.mxu0 0.0
    %1398 = vmatpush1.msra.mxu0 0.0
    %1399 = vmatprep.subr.mxu0 0.0
    %1400 = vmatpush1.msra.mxu0 0.0
    %1401 = vmatprep.subr.mxu0 0.0
    %1402 = vmatpush1.msra.mxu0 0.0
    %1403 = vmatprep.subr.mxu0 0.0
    %1404 = vmatpush1.msra.mxu0 0.0
    %1405 = vmatprep.subr.mxu0 0.0
    %1406 = vmatpush1.msra.mxu0 0.0
    %1407 = vmatprep.subr.mxu0 0.0
    %1408 = vmatpush1.msra.mxu0 0.0
    %1409 = vmatprep.subr.mxu0 0.0
    %1410 = vmatpush1.msra.mxu0 0.0
    %1411 = vmatprep.subr.mxu0 0.0
    %1412 = vmatpush1.msra.mxu0 0.0
    %1413 = vmatprep.subr.mxu0 0.0
    %1414 = vmatpush1.msra.mxu0 0.0
    %1415 = vmatprep.subr.mxu0 0.0
    %1416 = vmatpush1.msra.mxu0 0.0
    %1417 = vmatprep.subr.mxu0 0.0
    %1418 = vmatpush1.msra.mxu0 0.0
    %1419 = vmatprep.subr.mxu0 0.0
    %1420 = vmatpush1.msra.mxu0 0.0
    %1421 = vmatprep.mubr.f32.mxu0 %v1198
    %1422 = vmatmul.mubr.f32.gmra.mrb[0].mxu0 %v1072
    %v1423 = vpop.f32.mrb[0].mxu0
    %v1424 = vadd.f32 %v1189, %v1423
    %v1425 = vpop.f32.mrb[0].mxu0
    %v1426 = vadd.f32 %v1189, %v1425
    %1427 = vmatprep.mubr.f32.mxu0 %v1201
    %1428 = vmatmul.mubr.f32.gmra.mrb[0].mxu0 %v1074
    %v1429 = vpop.f32.mrb[0].mxu0
    %v1430 = vadd.f32 %v1194, %v1429
    %v1431 = vpop.f32.mrb[0].mxu0
    %v1432 = vadd.f32 %v1194, %v1431
    %1433 = vdwg.mxu0
    %v1434 = vld [vmem:[%s7] ss:$4 sm:$0x3f]
    %v1436 = vlaneseq
    %v1437 = vshrl.u32 %v1436, 7
    %v1438 = vsub.s32 0, %v1437
    %v1439 = vrot.slane %v1434, %v1438
    %v1440 = vlaneseq
    %v1441 = vshrl.u32 %v1440, 7
    %v1442 = vsub.s32 1, %v1441
    %v1443 = vrot.slane %v1434, %v1442
    %v1444 = vlaneseq
    %v1445 = vshrl.u32 %v1444, 7
    %v1446 = vsub.s32 2, %v1445
    %v1447 = vrot.slane %v1434, %v1446
    %v1448 = vlaneseq
    %v1449 = vshrl.u32 %v1448, 7
    %v1450 = vsub.s32 3, %v1449
    %v1451 = vrot.slane %v1434, %v1450
    %v1452 = vlaneseq
    %v1453 = vshrl.u32 %v1452, 7
    %v1454 = vsub.s32 4, %v1453
    %v1455 = vrot.slane %v1434, %v1454
    %v1456 = vlaneseq
    %v1457 = vshrl.u32 %v1456, 7
    %v1458 = vsub.s32 5, %v1457
    %v1459 = vrot.slane %v1434, %v1458
    %v1466 = vmul.f32 %v1270, %v1439
    %v1467 = vmul.f32 %v1272, %v1443
    %v1468 = vmul.f32 %v1347, %v1447
    %v1469 = vmul.f32 %v1349, %v1451
    %v1470 = vmul.f32 %v1424, %v1455
    %v1471 = vmul.f32 %v1426, %v1459
    %v1472 = vmul.f32 %v1276, %v1439
    %v1473 = vmul.f32 %v1278, %v1443
    %v1474 = vmul.f32 %v1353, %v1447
    %v1475 = vmul.f32 %v1355, %v1451
    %v1476 = vmul.f32 %v1430, %v1455
    %v1477 = vmul.f32 %v1432, %v1459
    %v1478 = vmul.f32 %v1466, %v1270
    %v1479 = vmul.f32 %v1467, %v1272
    %v1480 = vmul.f32 %v1468, %v1347
    %v1481 = vmul.f32 %v1469, %v1349
    %v1482 = vmul.f32 %v1470, %v1424
    %v1483 = vmul.f32 %v1471, %v1426
    %v1484 = vmul.f32 %v1472, %v1276
    %v1485 = vmul.f32 %v1473, %v1278
    %v1486 = vmul.f32 %v1474, %v1353
    %v1487 = vmul.f32 %v1475, %v1355
    %v1488 = vmul.f32 %v1476, %v1430
    %v1489 = vmul.f32 %v1477, %v1432
    %v1490 = vadd.f32 %v1466, %v1467
    %v1491 = vadd.f32 %v1490, %v1468
    %v1492 = vadd.f32 %v1491, %v1469
    %v1493 = vadd.f32 %v1492, %v1470
    %v1494 = vadd.f32 %v1493, %v1471
    %1495 = vadd.xlane.f32.xlu0 %v1494
    %v1496 = vpop.xlane.xlu0 %1495
    %v1497 = vadd.f32 %v1472, %v1473
    %v1498 = vadd.f32 %v1497, %v1474
    %v1499 = vadd.f32 %v1498, %v1475
    %v1500 = vadd.f32 %v1499, %v1476
    %v1501 = vadd.f32 %v1500, %v1477
    %1502 = vadd.xlane.f32.xlu0 %v1501
    %v1503 = vpop.xlane.xlu0 %1502
    %v1504 = vadd.f32 %v1478, %v1479
    %v1505 = vadd.f32 %v1504, %v1480
    %v1506 = vadd.f32 %v1505, %v1481
    %v1507 = vadd.f32 %v1506, %v1482
    %v1508 = vadd.f32 %v1507, %v1483
    %1509 = vadd.xlane.f32.xlu0 %v1508
    %v1510 = vpop.xlane.xlu0 %1509
    %v1511 = vadd.f32 %v1484, %v1485
    %v1512 = vadd.f32 %v1511, %v1486
    %v1513 = vadd.f32 %v1512, %v1487
    %v1514 = vadd.f32 %v1513, %v1488
    %v1515 = vadd.f32 %v1514, %v1489
    %1516 = vadd.xlane.f32.xlu0 %v1515
    %v1517 = vpop.xlane.xlu0 %1516
    %v1518 = vmul.f32 %v1496, 0.004132231
    %v1519 = vmul.f32 %v1503, 0.004132231
    %v1520 = vmul.f32 %v1510, 0.004132231
    %v1521 = vmul.f32 %v1517, 0.004132231
    %v1522 = vmul.f32 %v1518, %v1518
    %v1523 = vmul.f32 %v1519, %v1519
    %v1524 = vsub.f32 %v1520, %v1522
    %v1525 = vsub.f32 %v1521, %v1523
    %v1526 = vmax.f32 %v1524, 0.0
    %v1527 = vmax.f32 %v1525, 0.0
    %v1528 = vsub.f32 %v1270, %v1518
    %v1529 = vsub.f32 %v1272, %v1518
    %v1530 = vsub.f32 %v1347, %v1518
    %v1531 = vsub.f32 %v1349, %v1518
    %v1532 = vsub.f32 %v1424, %v1518
    %v1533 = vsub.f32 %v1426, %v1518
    %v1534 = vsub.f32 %v1276, %v1519
    %v1535 = vsub.f32 %v1278, %v1519
    %v1536 = vsub.f32 %v1353, %v1519
    %v1537 = vsub.f32 %v1355, %v1519
    %v1538 = vsub.f32 %v1430, %v1519
    %v1539 = vsub.f32 %v1432, %v1519
    %v1540 = vadd.f32 %v1526, 1e-05
    %v1541 = vadd.f32 %v1527, 1e-05
    %v1542 = vrsqrt.pop %v1540
    %v1543 = vrsqrt.pop %v1541
    %v1544 = vmul.f32 %v1528, %v1542
    %v1545 = vmul.f32 %v1529, %v1542
    %v1546 = vmul.f32 %v1530, %v1542
    %v1547 = vmul.f32 %v1531, %v1542
    %v1548 = vmul.f32 %v1532, %v1542
    %v1549 = vmul.f32 %v1533, %v1542
    %v1550 = vmul.f32 %v1534, %v1543
    %v1551 = vmul.f32 %v1535, %v1543
    %v1552 = vmul.f32 %v1536, %v1543
    %v1553 = vmul.f32 %v1537, %v1543
    %v1554 = vmul.f32 %v1538, %v1543
    %v1555 = vmul.f32 %v1539, %v1543
    %1556 = vset.pattern.permute.xlu0 1
    %1557 = vperm.xlu0 %1556, %v1184
    %v1558 = vpop.permute.xlu0 %1557
    %1560 = vset.pattern.permute.xlu0 1
    %1561 = vperm.xlu0 %1560, %v1185
    %v1562 = vpop.permute.xlu0 %1561
    %v1564 = vmul.f32 %v1544, %v1558
    %v1565 = vmul.f32 %v1545, %v1558
    %v1566 = vmul.f32 %v1546, %v1558
    %v1567 = vmul.f32 %v1547, %v1558
    %v1568 = vmul.f32 %v1548, %v1558
    %v1569 = vmul.f32 %v1549, %v1558
    %v1570 = vmul.f32 %v1550, %v1562
    %v1571 = vmul.f32 %v1551, %v1562
    %v1572 = vmul.f32 %v1552, %v1562
    %v1573 = vmul.f32 %v1553, %v1562
    %v1574 = vmul.f32 %v1554, %v1562
    %v1575 = vmul.f32 %v1555, %v1562
    %1576 = vset.pattern.permute.xlu0 2
    %1577 = vperm.xlu0 %1576, %v1184
    %v1578 = vpop.permute.xlu0 %1577
    %1580 = vset.pattern.permute.xlu0 2
    %1581 = vperm.xlu0 %1580, %v1185
    %v1582 = vpop.permute.xlu0 %1581
    %v1584 = vadd.f32 %v1564, %v1578
    %v1585 = vadd.f32 %v1565, %v1578
    %v1586 = vadd.f32 %v1566, %v1578
    %v1587 = vadd.f32 %v1567, %v1578
    %v1588 = vadd.f32 %v1568, %v1578
    %v1589 = vadd.f32 %v1569, %v1578
    %v1590 = vadd.f32 %v1570, %v1582
    %v1591 = vadd.f32 %v1571, %v1582
    %v1592 = vadd.f32 %v1572, %v1582
    %v1593 = vadd.f32 %v1573, %v1582
    %v1594 = vadd.f32 %v1574, %v1582
    %v1595 = vadd.f32 %v1575, %v1582
    %v1596 = vmax.f32 %v1584, 0.0
    %v1597 = vmax.f32 %v1585, 0.0
    %v1598 = vmax.f32 %v1586, 0.0
    %v1599 = vmax.f32 %v1587, 0.0
    %v1600 = vmax.f32 %v1588, 0.0
    %v1601 = vmax.f32 %v1589, 0.0
    %v1602 = vmax.f32 %v1590, 0.0
    %v1603 = vmax.f32 %v1591, 0.0
    %v1604 = vmax.f32 %v1592, 0.0
    %v1605 = vmax.f32 %v1593, 0.0
    %v1606 = vmax.f32 %v1594, 0.0
    %v1607 = vmax.f32 %v1595, 0.0
    %v1608 = vmul.f32 %v1596, %v1439
    %v1609 = vmul.f32 %v1597, %v1443
    %v1610 = vmul.f32 %v1598, %v1447
    %v1611 = vmul.f32 %v1599, %v1451
    %v1612 = vmul.f32 %v1600, %v1455
    %v1613 = vmul.f32 %v1601, %v1459
    %v1614 = vmul.f32 %v1602, %v1439
    %v1615 = vmul.f32 %v1603, %v1443
    %v1616 = vmul.f32 %v1604, %v1447
    %v1617 = vmul.f32 %v1605, %v1451
    %v1618 = vmul.f32 %v1606, %v1455
    %v1619 = vmul.f32 %v1607, %v1459
    %1620 = vst [vmem:[#allocation2 + $0x8] sm:$0xff] %v1608
    %1621 = vst [vmem:[#allocation2 + $0x10] sm:$0xff] %v1609
    %1622 = vst [vmem:[#allocation2 + $0x18] sm:$0xff] %v1610
    %1623 = vst [vmem:[#allocation2 + $0x20] sm:$0xff] %v1611
    %1624 = vst [vmem:[#allocation2 + $0x28] sm:$0xff] %v1612
    %1625 = vst [vmem:[#allocation2 + $0x30] sm:$0xff] %v1613
    %1626 = vst [vmem:[#allocation2 + $0x40] sm:$0xff] %v1614
    %1627 = vst [vmem:[#allocation2 + $0x48] sm:$0xff] %v1615
    %1628 = vst [vmem:[#allocation2 + $0x50] sm:$0xff] %v1616
    %1629 = vst [vmem:[#allocation2 + $0x58] sm:$0xff] %v1617
    %1630 = vst [vmem:[#allocation2 + $0x60] sm:$0xff] %v1618
    %1631 = vst [vmem:[#allocation2 + $0x68] sm:$0xff] %v1619
    %v1632 = vld [vmem:[#allocation2] sm:$0xff]
    %v1633 = vld [vmem:[#allocation2 + $0x8] sm:$0xff]
    %v1634 = vld [vmem:[#allocation2 + $0x10] sm:$0xff]
    %v1635 = vld [vmem:[#allocation2 + $0x18] sm:$0xff]
    %v1636 = vld [vmem:[#allocation2 + $0x20] sm:$0xff]
    %v1637 = vld [vmem:[#allocation2 + $0x28] sm:$0xff]
    %v1638 = vld [vmem:[#allocation2 + $0x30] sm:$0xff]
    %v1639 = vld [vmem:[#allocation2 + $0x38] sm:$0xff]
    %v1640 = vld [vmem:[#allocation2 + $0x40] sm:$0xff]
    %v1641 = vld [vmem:[#allocation2 + $0x48] sm:$0xff]
    %v1642 = vld [vmem:[#allocation2 + $0x50] sm:$0xff]
    %v1643 = vld [vmem:[#allocation2 + $0x58] sm:$0xff]
    %v1644 = vld [vmem:[#allocation2 + $0x60] sm:$0xff]
    %v1645 = vld [vmem:[#allocation2 + $0x68] sm:$0xff]
    %1660 = vrot.lane.b32.xlu0 %v1632, 36
    %v1661 = vpop.permute.xlu0 %1660
    %1662 = vrot.lane.b32.xlu0 %v1633, 36
    %v1663 = vpop.permute.xlu0 %1662
    %1664 = vrot.lane.b32.xlu0 %v1634, 36
    %v1665 = vpop.permute.xlu0 %1664
    %1666 = vrot.lane.b32.xlu0 %v1635, 36
    %v1667 = vpop.permute.xlu0 %1666
    %1668 = vrot.lane.b32.xlu0 %v1636, 36
    %v1669 = vpop.permute.xlu0 %1668
    %1670 = vrot.lane.b32.xlu0 %v1637, 36
    %v1671 = vpop.permute.xlu0 %1670
    %1672 = vrot.lane.b32.xlu0 %v1638, 36
    %v1673 = vpop.permute.xlu0 %1672
    %1674 = vrot.lane.b32.xlu0 %v1639, 36
    %v1675 = vpop.permute.xlu0 %1674
    %1676 = vrot.lane.b32.xlu0 %v1640, 36
    %v1677 = vpop.permute.xlu0 %1676
    %1678 = vrot.lane.b32.xlu0 %v1641, 36
    %v1679 = vpop.permute.xlu0 %1678
    %1680 = vrot.lane.b32.xlu0 %v1642, 36
    %v1681 = vpop.permute.xlu0 %1680
    %1682 = vrot.lane.b32.xlu0 %v1643, 36
    %v1683 = vpop.permute.xlu0 %1682
    %1684 = vrot.lane.b32.xlu0 %v1644, 36
    %v1685 = vpop.permute.xlu0 %1684
    %1686 = vrot.lane.b32.xlu0 %v1645, 36
    %v1687 = vpop.permute.xlu0 %1686
    %v1688 = vsel %vm360, %v1661, %v1663
    %v1689 = vsel %vm360, %v1663, %v1665
    %v1690 = vsel %vm360, %v1665, %v1667
    %v1691 = vsel %vm360, %v1667, %v1669
    %v1692 = vsel %vm360, %v1669, %v1671
    %v1693 = vsel %vm360, %v1671, %v1673
    %v1694 = vsel %vm360, %v1675, %v1677
    %v1695 = vsel %vm360, %v1677, %v1679
    %v1696 = vsel %vm360, %v1679, %v1681
    %v1697 = vsel %vm360, %v1681, %v1683
    %v1698 = vsel %vm360, %v1683, %v1685
    %v1699 = vsel %vm360, %v1685, %v1687
    %1712 = vst [vmem:[#allocation3] sm:$0xff] %v1688
    %1713 = vst [vmem:[#allocation3 + $0x8] sm:$0xff] %v1689
    %1714 = vst [vmem:[#allocation3 + $0x10] sm:$0xff] %v1690
    %1715 = vst [vmem:[#allocation3 + $0x18] sm:$0xff] %v1691
    %1716 = vst [vmem:[#allocation3 + $0x20] sm:$0xff] %v1692
    %1717 = vst [vmem:[#allocation3 + $0x28] sm:$0xff] %v1693
    %1718 = vst [vmem:[#allocation3 + $0x30] sm:$0xff] %v1694
    %1719 = vst [vmem:[#allocation3 + $0x38] sm:$0xff] %v1695
    %1720 = vst [vmem:[#allocation3 + $0x40] sm:$0xff] %v1696
    %1721 = vst [vmem:[#allocation3 + $0x48] sm:$0xff] %v1697
    %1722 = vst [vmem:[#allocation3 + $0x50] sm:$0xff] %v1698
    %1723 = vst [vmem:[#allocation3 + $0x58] sm:$0xff] %v1699
    %v1724 = vld [vmem:[#allocation2] sm:$0xff]
    %v1725 = vld [vmem:[#allocation2 + $0x8] sm:$0xff]
    %v1726 = vld [vmem:[#allocation2 + $0x10] sm:$0xff]
    %v1727 = vld [vmem:[#allocation2 + $0x18] sm:$0xff]
    %v1728 = vld [vmem:[#allocation2 + $0x20] sm:$0xff]
    %v1729 = vld [vmem:[#allocation2 + $0x28] sm:$0xff]
    %v1730 = vld [vmem:[#allocation2 + $0x30] sm:$0xff]
    %v1731 = vld [vmem:[#allocation2 + $0x38] sm:$0xff]
    %v1732 = vld [vmem:[#allocation2 + $0x40] sm:$0xff]
    %v1733 = vld [vmem:[#allocation2 + $0x48] sm:$0xff]
    %v1734 = vld [vmem:[#allocation2 + $0x50] sm:$0xff]
    %v1735 = vld [vmem:[#allocation2 + $0x58] sm:$0xff]
    %v1736 = vld [vmem:[#allocation2 + $0x60] sm:$0xff]
    %v1737 = vld [vmem:[#allocation2 + $0x68] sm:$0xff]
    %1752 = vrot.lane.b32.xlu0 %v1724, 35
    %v1753 = vpop.permute.xlu0 %1752
    %1754 = vrot.lane.b32.xlu0 %v1725, 35
    %v1755 = vpop.permute.xlu0 %1754
    %1756 = vrot.lane.b32.xlu0 %v1726, 35
    %v1757 = vpop.permute.xlu0 %1756
    %1758 = vrot.lane.b32.xlu0 %v1727, 35
    %v1759 = vpop.permute.xlu0 %1758
    %1760 = vrot.lane.b32.xlu0 %v1728, 35
    %v1761 = vpop.permute.xlu0 %1760
    %1762 = vrot.lane.b32.xlu0 %v1729, 35
    %v1763 = vpop.permute.xlu0 %1762
    %1764 = vrot.lane.b32.xlu0 %v1730, 35
    %v1765 = vpop.permute.xlu0 %1764
    %1766 = vrot.lane.b32.xlu0 %v1731, 35
    %v1767 = vpop.permute.xlu0 %1766
    %1768 = vrot.lane.b32.xlu0 %v1732, 35
    %v1769 = vpop.permute.xlu0 %1768
    %1770 = vrot.lane.b32.xlu0 %v1733, 35
    %v1771 = vpop.permute.xlu0 %1770
    %1772 = vrot.lane.b32.xlu0 %v1734, 35
    %v1773 = vpop.permute.xlu0 %1772
    %1774 = vrot.lane.b32.xlu0 %v1735, 35
    %v1775 = vpop.permute.xlu0 %1774
    %1776 = vrot.lane.b32.xlu0 %v1736, 35
    %v1777 = vpop.permute.xlu0 %1776
    %1778 = vrot.lane.b32.xlu0 %v1737, 35
    %v1779 = vpop.permute.xlu0 %1778
    %v1780 = vsel %vm453, %v1753, %v1755
    %v1781 = vsel %vm453, %v1755, %v1757
    %v1782 = vsel %vm453, %v1757, %v1759
    %v1783 = vsel %vm453, %v1759, %v1761
    %v1784 = vsel %vm453, %v1761, %v1763
    %v1785 = vsel %vm453, %v1763, %v1765
    %v1786 = vsel %vm453, %v1767, %v1769
    %v1787 = vsel %vm453, %v1769, %v1771
    %v1788 = vsel %vm453, %v1771, %v1773
    %v1789 = vsel %vm453, %v1773, %v1775
    %v1790 = vsel %vm453, %v1775, %v1777
    %v1791 = vsel %vm453, %v1777, %v1779
    %1804 = vst [vmem:[#allocation3 + $0x60] sm:$0xff] %v1780
    %1805 = vst [vmem:[#allocation3 + $0x68] sm:$0xff] %v1781
    %1806 = vst [vmem:[#allocation3 + $0x70] sm:$0xff] %v1782
    %1807 = vst [vmem:[#allocation3 + $0x78] sm:$0xff] %v1783
    %1808 = vst [vmem:[#allocation3 + $0x80] sm:$0xff] %v1784
    %1809 = vst [vmem:[#allocation3 + $0x88] sm:$0xff] %v1785
    %1810 = vst [vmem:[#allocation3 + $0x90] sm:$0xff] %v1786
    %1811 = vst [vmem:[#allocation3 + $0x98] sm:$0xff] %v1787
    %1812 = vst [vmem:[#allocation3 + $0xa0] sm:$0xff] %v1788
    %1813 = vst [vmem:[#allocation3 + $0xa8] sm:$0xff] %v1789
    %1814 = vst [vmem:[#allocation3 + $0xb0] sm:$0xff] %v1790
    %1815 = vst [vmem:[#allocation3 + $0xb8] sm:$0xff] %v1791
    %v1816 = vld [vmem:[#allocation2] sm:$0xff]
    %v1817 = vld [vmem:[#allocation2 + $0x8] sm:$0xff]
    %v1818 = vld [vmem:[#allocation2 + $0x10] sm:$0xff]
    %v1819 = vld [vmem:[#allocation2 + $0x18] sm:$0xff]
    %v1820 = vld [vmem:[#allocation2 + $0x20] sm:$0xff]
    %v1821 = vld [vmem:[#allocation2 + $0x28] sm:$0xff]
    %v1822 = vld [vmem:[#allocation2 + $0x30] sm:$0xff]
    %v1823 = vld [vmem:[#allocation2 + $0x38] sm:$0xff]
    %v1824 = vld [vmem:[#allocation2 + $0x40] sm:$0xff]
    %v1825 = vld [vmem:[#allocation2 + $0x48] sm:$0xff]
    %v1826 = vld [vmem:[#allocation2 + $0x50] sm:$0xff]
    %v1827 = vld [vmem:[#allocation2 + $0x58] sm:$0xff]
    %v1828 = vld [vmem:[#allocation2 + $0x60] sm:$0xff]
    %v1829 = vld [vmem:[#allocation2 + $0x68] sm:$0xff]
    %1844 = vrot.lane.b32.xlu0 %v1816, 34
    %v1845 = vpop.permute.xlu0 %1844
    %1846 = vrot.lane.b32.xlu0 %v1817, 34
    %v1847 = vpop.permute.xlu0 %1846
    %1848 = vrot.lane.b32.xlu0 %v1818, 34
    %v1849 = vpop.permute.xlu0 %1848
    %1850 = vrot.lane.b32.xlu0 %v1819, 34
    %v1851 = vpop.permute.xlu0 %1850
    %1852 = vrot.lane.b32.xlu0 %v1820, 34
    %v1853 = vpop.permute.xlu0 %1852
    %1854 = vrot.lane.b32.xlu0 %v1821, 34
    %v1855 = vpop.permute.xlu0 %1854
    %1856 = vrot.lane.b32.xlu0 %v1822, 34
    %v1857 = vpop.permute.xlu0 %1856
    %1858 = vrot.lane.b32.xlu0 %v1823, 34
    %v1859 = vpop.permute.xlu0 %1858
    %1860 = vrot.lane.b32.xlu0 %v1824, 34
    %v1861 = vpop.permute.xlu0 %1860
    %1862 = vrot.lane.b32.xlu0 %v1825, 34
    %v1863 = vpop.permute.xlu0 %1862
    %1864 = vrot.lane.b32.xlu0 %v1826, 34
    %v1865 = vpop.permute.xlu0 %1864
    %1866 = vrot.lane.b32.xlu0 %v1827, 34
    %v1867 = vpop.permute.xlu0 %1866
    %1868 = vrot.lane.b32.xlu0 %v1828, 34
    %v1869 = vpop.permute.xlu0 %1868
    %1870 = vrot.lane.b32.xlu0 %v1829, 34
    %v1871 = vpop.permute.xlu0 %1870
    %v1872 = vsel %vm546, %v1845, %v1847
    %v1873 = vsel %vm546, %v1847, %v1849
    %v1874 = vsel %vm546, %v1849, %v1851
    %v1875 = vsel %vm546, %v1851, %v1853
    %v1876 = vsel %vm546, %v1853, %v1855
    %v1877 = vsel %vm546, %v1855, %v1857
    %v1878 = vsel %vm546, %v1859, %v1861
    %v1879 = vsel %vm546, %v1861, %v1863
    %v1880 = vsel %vm546, %v1863, %v1865
    %v1881 = vsel %vm546, %v1865, %v1867
    %v1882 = vsel %vm546, %v1867, %v1869
    %v1883 = vsel %vm546, %v1869, %v1871
    %1896 = vst [vmem:[#allocation3 + $0xc0] sm:$0xff] %v1872
    %1897 = vst [vmem:[#allocation3 + $0xc8] sm:$0xff] %v1873
    %1898 = vst [vmem:[#allocation3 + $0xd0] sm:$0xff] %v1874
    %1899 = vst [vmem:[#allocation3 + $0xd8] sm:$0xff] %v1875
    %1900 = vst [vmem:[#allocation3 + $0xe0] sm:$0xff] %v1876
    %1901 = vst [vmem:[#allocation3 + $0xe8] sm:$0xff] %v1877
    %1902 = vst [vmem:[#allocation3 + $0xf0] sm:$0xff] %v1878
    %1903 = vst [vmem:[#allocation3 + $0xf8] sm:$0xff] %v1879
    %1904 = vst [vmem:[#allocation3 + $0x100] sm:$0xff] %v1880
    %1905 = vst [vmem:[#allocation3 + $0x108] sm:$0xff] %v1881
    %1906 = vst [vmem:[#allocation3 + $0x110] sm:$0xff] %v1882
    %1907 = vst [vmem:[#allocation3 + $0x118] sm:$0xff] %v1883
    %v1908 = vld [vmem:[#allocation2] sm:$0xff]
    %v1909 = vld [vmem:[#allocation2 + $0x8] sm:$0xff]
    %v1910 = vld [vmem:[#allocation2 + $0x10] sm:$0xff]
    %v1911 = vld [vmem:[#allocation2 + $0x18] sm:$0xff]
    %v1912 = vld [vmem:[#allocation2 + $0x20] sm:$0xff]
    %v1913 = vld [vmem:[#allocation2 + $0x28] sm:$0xff]
    %v1914 = vld [vmem:[#allocation2 + $0x30] sm:$0xff]
    %v1915 = vld [vmem:[#allocation2 + $0x38] sm:$0xff]
    %v1916 = vld [vmem:[#allocation2 + $0x40] sm:$0xff]
    %v1917 = vld [vmem:[#allocation2 + $0x48] sm:$0xff]
    %v1918 = vld [vmem:[#allocation2 + $0x50] sm:$0xff]
    %v1919 = vld [vmem:[#allocation2 + $0x58] sm:$0xff]
    %v1920 = vld [vmem:[#allocation2 + $0x60] sm:$0xff]
    %v1921 = vld [vmem:[#allocation2 + $0x68] sm:$0xff]
    %1936 = vrot.lane.b32.xlu0 %v1908, 19
    %v1937 = vpop.permute.xlu0 %1936
    %1938 = vrot.lane.b32.xlu0 %v1909, 19
    %v1939 = vpop.permute.xlu0 %1938
    %1940 = vrot.lane.b32.xlu0 %v1910, 19
    %v1941 = vpop.permute.xlu0 %1940
    %1942 = vrot.lane.b32.xlu0 %v1911, 19
    %v1943 = vpop.permute.xlu0 %1942
    %1944 = vrot.lane.b32.xlu0 %v1912, 19
    %v1945 = vpop.permute.xlu0 %1944
    %1946 = vrot.lane.b32.xlu0 %v1913, 19
    %v1947 = vpop.permute.xlu0 %1946
    %1948 = vrot.lane.b32.xlu0 %v1914, 19
    %v1949 = vpop.permute.xlu0 %1948
    %1950 = vrot.lane.b32.xlu0 %v1915, 19
    %v1951 = vpop.permute.xlu0 %1950
    %1952 = vrot.lane.b32.xlu0 %v1916, 19
    %v1953 = vpop.permute.xlu0 %1952
    %1954 = vrot.lane.b32.xlu0 %v1917, 19
    %v1955 = vpop.permute.xlu0 %1954
    %1956 = vrot.lane.b32.xlu0 %v1918, 19
    %v1957 = vpop.permute.xlu0 %1956
    %1958 = vrot.lane.b32.xlu0 %v1919, 19
    %v1959 = vpop.permute.xlu0 %1958
    %1960 = vrot.lane.b32.xlu0 %v1920, 19
    %v1961 = vpop.permute.xlu0 %1960
    %1962 = vrot.lane.b32.xlu0 %v1921, 19
    %v1963 = vpop.permute.xlu0 %1962
    %v1964 = vsel %vm639, %v1937, %v1939
    %v1965 = vsel %vm639, %v1939, %v1941
    %v1966 = vsel %vm639, %v1941, %v1943
    %v1967 = vsel %vm639, %v1943, %v1945
    %v1968 = vsel %vm639, %v1945, %v1947
    %v1969 = vsel %vm639, %v1947, %v1949
    %v1970 = vsel %vm639, %v1951, %v1953
    %v1971 = vsel %vm639, %v1953, %v1955
    %v1972 = vsel %vm639, %v1955, %v1957
    %v1973 = vsel %vm639, %v1957, %v1959
    %v1974 = vsel %vm639, %v1959, %v1961
    %v1975 = vsel %vm639, %v1961, %v1963
    %1988 = vst [vmem:[#allocation3 + $0x120] sm:$0xff] %v1964
    %1989 = vst [vmem:[#allocation3 + $0x128] sm:$0xff] %v1965
    %1990 = vst [vmem:[#allocation3 + $0x130] sm:$0xff] %v1966
    %1991 = vst [vmem:[#allocation3 + $0x138] sm:$0xff] %v1967
    %1992 = vst [vmem:[#allocation3 + $0x140] sm:$0xff] %v1968
    %1993 = vst [vmem:[#allocation3 + $0x148] sm:$0xff] %v1969
    %1994 = vst [vmem:[#allocation3 + $0x150] sm:$0xff] %v1970
    %1995 = vst [vmem:[#allocation3 + $0x158] sm:$0xff] %v1971
    %1996 = vst [vmem:[#allocation3 + $0x160] sm:$0xff] %v1972
    %1997 = vst [vmem:[#allocation3 + $0x168] sm:$0xff] %v1973
    %1998 = vst [vmem:[#allocation3 + $0x170] sm:$0xff] %v1974
    %1999 = vst [vmem:[#allocation3 + $0x178] sm:$0xff] %v1975
    %v2000 = vld [vmem:[#allocation2] sm:$0xff]
    %v2001 = vld [vmem:[#allocation2 + $0x8] sm:$0xff]
    %v2002 = vld [vmem:[#allocation2 + $0x10] sm:$0xff]
    %v2003 = vld [vmem:[#allocation2 + $0x18] sm:$0xff]
    %v2004 = vld [vmem:[#allocation2 + $0x20] sm:$0xff]
    %v2005 = vld [vmem:[#allocation2 + $0x28] sm:$0xff]
    %v2006 = vld [vmem:[#allocation2 + $0x30] sm:$0xff]
    %v2007 = vld [vmem:[#allocation2 + $0x38] sm:$0xff]
    %v2008 = vld [vmem:[#allocation2 + $0x40] sm:$0xff]
    %v2009 = vld [vmem:[#allocation2 + $0x48] sm:$0xff]
    %v2010 = vld [vmem:[#allocation2 + $0x50] sm:$0xff]
    %v2011 = vld [vmem:[#allocation2 + $0x58] sm:$0xff]
    %v2012 = vld [vmem:[#allocation2 + $0x60] sm:$0xff]
    %v2013 = vld [vmem:[#allocation2 + $0x68] sm:$0xff]
    %2028 = vrot.lane.b32.xlu0 %v2000, 18
    %v2029 = vpop.permute.xlu0 %2028
    %2030 = vrot.lane.b32.xlu0 %v2001, 18
    %v2031 = vpop.permute.xlu0 %2030
    %2032 = vrot.lane.b32.xlu0 %v2002, 18
    %v2033 = vpop.permute.xlu0 %2032
    %2034 = vrot.lane.b32.xlu0 %v2003, 18
    %v2035 = vpop.permute.xlu0 %2034
    %2036 = vrot.lane.b32.xlu0 %v2004, 18
    %v2037 = vpop.permute.xlu0 %2036
    %2038 = vrot.lane.b32.xlu0 %v2005, 18
    %v2039 = vpop.permute.xlu0 %2038
    %2040 = vrot.lane.b32.xlu0 %v2006, 18
    %v2041 = vpop.permute.xlu0 %2040
    %2042 = vrot.lane.b32.xlu0 %v2007, 18
    %v2043 = vpop.permute.xlu0 %2042
    %2044 = vrot.lane.b32.xlu0 %v2008, 18
    %v2045 = vpop.permute.xlu0 %2044
    %2046 = vrot.lane.b32.xlu0 %v2009, 18
    %v2047 = vpop.permute.xlu0 %2046
    %2048 = vrot.lane.b32.xlu0 %v2010, 18
    %v2049 = vpop.permute.xlu0 %2048
    %2050 = vrot.lane.b32.xlu0 %v2011, 18
    %v2051 = vpop.permute.xlu0 %2050
    %2052 = vrot.lane.b32.xlu0 %v2012, 18
    %v2053 = vpop.permute.xlu0 %2052
    %2054 = vrot.lane.b32.xlu0 %v2013, 18
    %v2055 = vpop.permute.xlu0 %2054
    %v2056 = vsel %vm732, %v2029, %v2031
    %v2057 = vsel %vm732, %v2031, %v2033
    %v2058 = vsel %vm732, %v2033, %v2035
    %v2059 = vsel %vm732, %v2035, %v2037
    %v2060 = vsel %vm732, %v2037, %v2039
    %v2061 = vsel %vm732, %v2039, %v2041
    %v2062 = vsel %vm732, %v2043, %v2045
    %v2063 = vsel %vm732, %v2045, %v2047
    %v2064 = vsel %vm732, %v2047, %v2049
    %v2065 = vsel %vm732, %v2049, %v2051
    %v2066 = vsel %vm732, %v2051, %v2053
    %v2067 = vsel %vm732, %v2053, %v2055
    %2080 = vst [vmem:[#allocation3 + $0x180] sm:$0xff] %v2056
    %2081 = vst [vmem:[#allocation3 + $0x188] sm:$0xff] %v2057
    %2082 = vst [vmem:[#allocation3 + $0x190] sm:$0xff] %v2058
    %2083 = vst [vmem:[#allocation3 + $0x198] sm:$0xff] %v2059
    %2084 = vst [vmem:[#allocation3 + $0x1a0] sm:$0xff] %v2060
    %2085 = vst [vmem:[#allocation3 + $0x1a8] sm:$0xff] %v2061
    %2086 = vst [vmem:[#allocation3 + $0x1b0] sm:$0xff] %v2062
    %2087 = vst [vmem:[#allocation3 + $0x1b8] sm:$0xff] %v2063
    %2088 = vst [vmem:[#allocation3 + $0x1c0] sm:$0xff] %v2064
    %2089 = vst [vmem:[#allocation3 + $0x1c8] sm:$0xff] %v2065
    %2090 = vst [vmem:[#allocation3 + $0x1d0] sm:$0xff] %v2066
    %2091 = vst [vmem:[#allocation3 + $0x1d8] sm:$0xff] %v2067
    %v2092 = vld [vmem:[#allocation2] sm:$0xff]
    %v2093 = vld [vmem:[#allocation2 + $0x8] sm:$0xff]
    %v2094 = vld [vmem:[#allocation2 + $0x10] sm:$0xff]
    %v2095 = vld [vmem:[#allocation2 + $0x18] sm:$0xff]
    %v2096 = vld [vmem:[#allocation2 + $0x20] sm:$0xff]
    %v2097 = vld [vmem:[#allocation2 + $0x28] sm:$0xff]
    %v2098 = vld [vmem:[#allocation2 + $0x30] sm:$0xff]
    %v2099 = vld [vmem:[#allocation2 + $0x38] sm:$0xff]
    %v2100 = vld [vmem:[#allocation2 + $0x40] sm:$0xff]
    %v2101 = vld [vmem:[#allocation2 + $0x48] sm:$0xff]
    %v2102 = vld [vmem:[#allocation2 + $0x50] sm:$0xff]
    %v2103 = vld [vmem:[#allocation2 + $0x58] sm:$0xff]
    %v2104 = vld [vmem:[#allocation2 + $0x60] sm:$0xff]
    %v2105 = vld [vmem:[#allocation2 + $0x68] sm:$0xff]
    %2120 = vrot.lane.b32.xlu0 %v2092, 17
    %v2121 = vpop.permute.xlu0 %2120
    %2122 = vrot.lane.b32.xlu0 %v2093, 17
    %v2123 = vpop.permute.xlu0 %2122
    %2124 = vrot.lane.b32.xlu0 %v2094, 17
    %v2125 = vpop.permute.xlu0 %2124
    %2126 = vrot.lane.b32.xlu0 %v2095, 17
    %v2127 = vpop.permute.xlu0 %2126
    %2128 = vrot.lane.b32.xlu0 %v2096, 17
    %v2129 = vpop.permute.xlu0 %2128
    %2130 = vrot.lane.b32.xlu0 %v2097, 17
    %v2131 = vpop.permute.xlu0 %2130
    %2132 = vrot.lane.b32.xlu0 %v2098, 17
    %v2133 = vpop.permute.xlu0 %2132
    %2134 = vrot.lane.b32.xlu0 %v2099, 17
    %v2135 = vpop.permute.xlu0 %2134
    %2136 = vrot.lane.b32.xlu0 %v2100, 17
    %v2137 = vpop.permute.xlu0 %2136
    %2138 = vrot.lane.b32.xlu0 %v2101, 17
    %v2139 = vpop.permute.xlu0 %2138
    %2140 = vrot.lane.b32.xlu0 %v2102, 17
    %v2141 = vpop.permute.xlu0 %2140
    %2142 = vrot.lane.b32.xlu0 %v2103, 17
    %v2143 = vpop.permute.xlu0 %2142
    %2144 = vrot.lane.b32.xlu0 %v2104, 17
    %v2145 = vpop.permute.xlu0 %2144
    %2146 = vrot.lane.b32.xlu0 %v2105, 17
    %v2147 = vpop.permute.xlu0 %2146
    %v2148 = vsel %vm825, %v2121, %v2123
    %v2149 = vsel %vm825, %v2123, %v2125
    %v2150 = vsel %vm825, %v2125, %v2127
    %v2151 = vsel %vm825, %v2127, %v2129
    %v2152 = vsel %vm825, %v2129, %v2131
    %v2153 = vsel %vm825, %v2131, %v2133
    %v2154 = vsel %vm825, %v2135, %v2137
    %v2155 = vsel %vm825, %v2137, %v2139
    %v2156 = vsel %vm825, %v2139, %v2141
    %v2157 = vsel %vm825, %v2141, %v2143
    %v2158 = vsel %vm825, %v2143, %v2145
    %v2159 = vsel %vm825, %v2145, %v2147
    %2172 = vst [vmem:[#allocation3 + $0x1e0] sm:$0xff] %v2148
    %2173 = vst [vmem:[#allocation3 + $0x1e8] sm:$0xff] %v2149
    %2174 = vst [vmem:[#allocation3 + $0x1f0] sm:$0xff] %v2150
    %2175 = vst [vmem:[#allocation3 + $0x1f8] sm:$0xff] %v2151
    %2176 = vst [vmem:[#allocation3 + $0x200] sm:$0xff] %v2152
    %2177 = vst [vmem:[#allocation3 + $0x208] sm:$0xff] %v2153
    %2178 = vst [vmem:[#allocation3 + $0x210] sm:$0xff] %v2154
    %2179 = vst [vmem:[#allocation3 + $0x218] sm:$0xff] %v2155
    %2180 = vst [vmem:[#allocation3 + $0x220] sm:$0xff] %v2156
    %2181 = vst [vmem:[#allocation3 + $0x228] sm:$0xff] %v2157
    %2182 = vst [vmem:[#allocation3 + $0x230] sm:$0xff] %v2158
    %2183 = vst [vmem:[#allocation3 + $0x238] sm:$0xff] %v2159
    %v2184 = vld [vmem:[#allocation2] sm:$0xff]
    %v2185 = vld [vmem:[#allocation2 + $0x8] sm:$0xff]
    %v2186 = vld [vmem:[#allocation2 + $0x10] sm:$0xff]
    %v2187 = vld [vmem:[#allocation2 + $0x18] sm:$0xff]
    %v2188 = vld [vmem:[#allocation2 + $0x20] sm:$0xff]
    %v2189 = vld [vmem:[#allocation2 + $0x28] sm:$0xff]
    %v2190 = vld [vmem:[#allocation2 + $0x30] sm:$0xff]
    %v2191 = vld [vmem:[#allocation2 + $0x38] sm:$0xff]
    %v2192 = vld [vmem:[#allocation2 + $0x40] sm:$0xff]
    %v2193 = vld [vmem:[#allocation2 + $0x48] sm:$0xff]
    %v2194 = vld [vmem:[#allocation2 + $0x50] sm:$0xff]
    %v2195 = vld [vmem:[#allocation2 + $0x58] sm:$0xff]
    %v2196 = vld [vmem:[#allocation2 + $0x60] sm:$0xff]
    %v2197 = vld [vmem:[#allocation2 + $0x68] sm:$0xff]
    %2212 = vrot.lane.b32.xlu0 %v2184, 2
    %v2213 = vpop.permute.xlu0 %2212
    %2214 = vrot.lane.b32.xlu0 %v2185, 2
    %v2215 = vpop.permute.xlu0 %2214
    %2216 = vrot.lane.b32.xlu0 %v2186, 2
    %v2217 = vpop.permute.xlu0 %2216
    %2218 = vrot.lane.b32.xlu0 %v2187, 2
    %v2219 = vpop.permute.xlu0 %2218
    %2220 = vrot.lane.b32.xlu0 %v2188, 2
    %v2221 = vpop.permute.xlu0 %2220
    %2222 = vrot.lane.b32.xlu0 %v2189, 2
    %v2223 = vpop.permute.xlu0 %2222
    %2224 = vrot.lane.b32.xlu0 %v2190, 2
    %v2225 = vpop.permute.xlu0 %2224
    %2226 = vrot.lane.b32.xlu0 %v2191, 2
    %v2227 = vpop.permute.xlu0 %2226
    %2228 = vrot.lane.b32.xlu0 %v2192, 2
    %v2229 = vpop.permute.xlu0 %2228
    %2230 = vrot.lane.b32.xlu0 %v2193, 2
    %v2231 = vpop.permute.xlu0 %2230
    %2232 = vrot.lane.b32.xlu0 %v2194, 2
    %v2233 = vpop.permute.xlu0 %2232
    %2234 = vrot.lane.b32.xlu0 %v2195, 2
    %v2235 = vpop.permute.xlu0 %2234
    %2236 = vrot.lane.b32.xlu0 %v2196, 2
    %v2237 = vpop.permute.xlu0 %2236
    %2238 = vrot.lane.b32.xlu0 %v2197, 2
    %v2239 = vpop.permute.xlu0 %2238
    %v2240 = vsel %vm918, %v2213, %v2215
    %v2241 = vsel %vm918, %v2215, %v2217
    %v2242 = vsel %vm918, %v2217, %v2219
    %v2243 = vsel %vm918, %v2219, %v2221
    %v2244 = vsel %vm918, %v2221, %v2223
    %v2245 = vsel %vm918, %v2223, %v2225
    %v2246 = vsel %vm918, %v2227, %v2229
    %v2247 = vsel %vm918, %v2229, %v2231
    %v2248 = vsel %vm918, %v2231, %v2233
    %v2249 = vsel %vm918, %v2233, %v2235
    %v2250 = vsel %vm918, %v2235, %v2237
    %v2251 = vsel %vm918, %v2237, %v2239
    %2264 = vst [vmem:[#allocation3 + $0x240] sm:$0xff] %v2240
    %2265 = vst [vmem:[#allocation3 + $0x248] sm:$0xff] %v2241
    %2266 = vst [vmem:[#allocation3 + $0x250] sm:$0xff] %v2242
    %2267 = vst [vmem:[#allocation3 + $0x258] sm:$0xff] %v2243
    %2268 = vst [vmem:[#allocation3 + $0x260] sm:$0xff] %v2244
    %2269 = vst [vmem:[#allocation3 + $0x268] sm:$0xff] %v2245
    %2270 = vst [vmem:[#allocation3 + $0x270] sm:$0xff] %v2246
    %2271 = vst [vmem:[#allocation3 + $0x278] sm:$0xff] %v2247
    %2272 = vst [vmem:[#allocation3 + $0x280] sm:$0xff] %v2248
    %2273 = vst [vmem:[#allocation3 + $0x288] sm:$0xff] %v2249
    %2274 = vst [vmem:[#allocation3 + $0x290] sm:$0xff] %v2250
    %2275 = vst [vmem:[#allocation3 + $0x298] sm:$0xff] %v2251
    %v2276 = vld [vmem:[#allocation2] sm:$0xff]
    %v2277 = vld [vmem:[#allocation2 + $0x8] sm:$0xff]
    %v2278 = vld [vmem:[#allocation2 + $0x10] sm:$0xff]
    %v2279 = vld [vmem:[#allocation2 + $0x18] sm:$0xff]
    %v2280 = vld [vmem:[#allocation2 + $0x20] sm:$0xff]
    %v2281 = vld [vmem:[#allocation2 + $0x28] sm:$0xff]
    %v2282 = vld [vmem:[#allocation2 + $0x30] sm:$0xff]
    %v2283 = vld [vmem:[#allocation2 + $0x38] sm:$0xff]
    %v2284 = vld [vmem:[#allocation2 + $0x40] sm:$0xff]
    %v2285 = vld [vmem:[#allocation2 + $0x48] sm:$0xff]
    %v2286 = vld [vmem:[#allocation2 + $0x50] sm:$0xff]
    %v2287 = vld [vmem:[#allocation2 + $0x58] sm:$0xff]
    %v2288 = vld [vmem:[#allocation2 + $0x60] sm:$0xff]
    %v2289 = vld [vmem:[#allocation2 + $0x68] sm:$0xff]
    %2304 = vrot.lane.b32.xlu0 %v2276, 1
    %v2305 = vpop.permute.xlu0 %2304
    %2306 = vrot.lane.b32.xlu0 %v2277, 1
    %v2307 = vpop.permute.xlu0 %2306
    %2308 = vrot.lane.b32.xlu0 %v2278, 1
    %v2309 = vpop.permute.xlu0 %2308
    %2310 = vrot.lane.b32.xlu0 %v2279, 1
    %v2311 = vpop.permute.xlu0 %2310
    %2312 = vrot.lane.b32.xlu0 %v2280, 1
    %v2313 = vpop.permute.xlu0 %2312
    %2314 = vrot.lane.b32.xlu0 %v2281, 1
    %v2315 = vpop.permute.xlu0 %2314
    %2316 = vrot.lane.b32.xlu0 %v2282, 1
    %v2317 = vpop.permute.xlu0 %2316
    %2318 = vrot.lane.b32.xlu0 %v2283, 1
    %v2319 = vpop.permute.xlu0 %2318
    %2320 = vrot.lane.b32.xlu0 %v2284, 1
    %v2321 = vpop.permute.xlu0 %2320
    %2322 = vrot.lane.b32.xlu0 %v2285, 1
    %v2323 = vpop.permute.xlu0 %2322
    %2324 = vrot.lane.b32.xlu0 %v2286, 1
    %v2325 = vpop.permute.xlu0 %2324
    %2326 = vrot.lane.b32.xlu0 %v2287, 1
    %v2327 = vpop.permute.xlu0 %2326
    %2328 = vrot.lane.b32.xlu0 %v2288, 1
    %v2329 = vpop.permute.xlu0 %2328
    %2330 = vrot.lane.b32.xlu0 %v2289, 1
    %v2331 = vpop.permute.xlu0 %2330
    %v2332 = vsel %vm1011, %v2305, %v2307
    %v2333 = vsel %vm1011, %v2307, %v2309
    %v2334 = vsel %vm1011, %v2309, %v2311
    %v2335 = vsel %vm1011, %v2311, %v2313
    %v2336 = vsel %vm1011, %v2313, %v2315
    %v2337 = vsel %vm1011, %v2315, %v2317
    %v2338 = vsel %vm1011, %v2319, %v2321
    %v2339 = vsel %vm1011, %v2321, %v2323
    %v2340 = vsel %vm1011, %v2323, %v2325
    %v2341 = vsel %vm1011, %v2325, %v2327
    %v2342 = vsel %vm1011, %v2327, %v2329
    %v2343 = vsel %vm1011, %v2329, %v2331
    %2356 = vst [vmem:[#allocation3 + $0x2a0] sm:$0xff] %v2332
    %2357 = vst [vmem:[#allocation3 + $0x2a8] sm:$0xff] %v2333
    %2358 = vst [vmem:[#allocation3 + $0x2b0] sm:$0xff] %v2334
    %2359 = vst [vmem:[#allocation3 + $0x2b8] sm:$0xff] %v2335
    %2360 = vst [vmem:[#allocation3 + $0x2c0] sm:$0xff] %v2336
    %2361 = vst [vmem:[#allocation3 + $0x2c8] sm:$0xff] %v2337
    %2362 = vst [vmem:[#allocation3 + $0x2d0] sm:$0xff] %v2338
    %2363 = vst [vmem:[#allocation3 + $0x2d8] sm:$0xff] %v2339
    %2364 = vst [vmem:[#allocation3 + $0x2e0] sm:$0xff] %v2340
    %2365 = vst [vmem:[#allocation3 + $0x2e8] sm:$0xff] %v2341
    %2366 = vst [vmem:[#allocation3 + $0x2f0] sm:$0xff] %v2342
    %2367 = vst [vmem:[#allocation3 + $0x2f8] sm:$0xff] %v2343
    %v2368 = vld [vmem:[#allocation2 + $0x8] sm:$0xff]
    %v2369 = vld [vmem:[#allocation2 + $0x10] sm:$0xff]
    %v2370 = vld [vmem:[#allocation2 + $0x18] sm:$0xff]
    %v2371 = vld [vmem:[#allocation2 + $0x20] sm:$0xff]
    %v2372 = vld [vmem:[#allocation2 + $0x28] sm:$0xff]
    %v2373 = vld [vmem:[#allocation2 + $0x30] sm:$0xff]
    %v2374 = vld [vmem:[#allocation2 + $0x40] sm:$0xff]
    %v2375 = vld [vmem:[#allocation2 + $0x48] sm:$0xff]
    %v2376 = vld [vmem:[#allocation2 + $0x50] sm:$0xff]
    %v2377 = vld [vmem:[#allocation2 + $0x58] sm:$0xff]
    %v2378 = vld [vmem:[#allocation2 + $0x60] sm:$0xff]
    %v2379 = vld [vmem:[#allocation2 + $0x68] sm:$0xff]
    %2380 = vst [vmem:[#allocation3 + $0x300] sm:$0xff] %v2368
    %2381 = vst [vmem:[#allocation3 + $0x308] sm:$0xff] %v2369
    %2382 = vst [vmem:[#allocation3 + $0x310] sm:$0xff] %v2370
    %2383 = vst [vmem:[#allocation3 + $0x318] sm:$0xff] %v2371
    %2384 = vst [vmem:[#allocation3 + $0x320] sm:$0xff] %v2372
    %2385 = vst [vmem:[#allocation3 + $0x328] sm:$0xff] %v2373
    %2386 = vst [vmem:[#allocation3 + $0x330] sm:$0xff] %v2374
    %2387 = vst [vmem:[#allocation3 + $0x338] sm:$0xff] %v2375
    %2388 = vst [vmem:[#allocation3 + $0x340] sm:$0xff] %v2376
    %2389 = vst [vmem:[#allocation3 + $0x348] sm:$0xff] %v2377
    %2390 = vst [vmem:[#allocation3 + $0x350] sm:$0xff] %v2378
    %2391 = vst [vmem:[#allocation3 + $0x358] sm:$0xff] %v2379
    %v2392 = vld [vmem:[%s3] sm:$0xff]
    %v2393 = vld [vmem:[%s3 + $0x8] sm:$0xff]
    %v2394 = vld [vmem:[%s3 + $0x10] sm:$0xff]
    %v2395 = vld [vmem:[%s3 + $0x18] sm:$0xff]
    %v2396 = vld [vmem:[#allocation3] sm:$0xff]
    %v2397 = vld [vmem:[#allocation3 + $0x8] sm:$0xff]
    %v2398 = vld [vmem:[#allocation3 + $0x10] sm:$0xff]
    %v2399 = vld [vmem:[#allocation3 + $0x18] sm:$0xff]
    %v2400 = vld [vmem:[#allocation3 + $0x20] sm:$0xff]
    %v2401 = vld [vmem:[#allocation3 + $0x28] sm:$0xff]
    %v2402 = vld [vmem:[#allocation3 + $0x30] sm:$0xff]
    %v2403 = vld [vmem:[#allocation3 + $0x38] sm:$0xff]
    %v2404 = vld [vmem:[#allocation3 + $0x40] sm:$0xff]
    %v2405 = vld [vmem:[#allocation3 + $0x48] sm:$0xff]
    %v2406 = vld [vmem:[#allocation3 + $0x50] sm:$0xff]
    %v2407 = vld [vmem:[#allocation3 + $0x58] sm:$0xff]
    %v2408 = vld [vmem:[#allocation3 + $0x60] sm:$0xff]
    %v2409 = vld [vmem:[#allocation3 + $0x68] sm:$0xff]
    %v2410 = vld [vmem:[#allocation3 + $0x70] sm:$0xff]
    %v2411 = vld [vmem:[#allocation3 + $0x78] sm:$0xff]
    %v2412 = vld [vmem:[#allocation3 + $0x80] sm:$0xff]
    %v2413 = vld [vmem:[#allocation3 + $0x88] sm:$0xff]
    %v2414 = vld [vmem:[#allocation3 + $0x90] sm:$0xff]
    %v2415 = vld [vmem:[#allocation3 + $0x98] sm:$0xff]
    %v2416 = vld [vmem:[#allocation3 + $0xa0] sm:$0xff]
    %v2417 = vld [vmem:[#allocation3 + $0xa8] sm:$0xff]
    %v2418 = vld [vmem:[#allocation3 + $0xb0] sm:$0xff]
    %v2419 = vld [vmem:[#allocation3 + $0xb8] sm:$0xff]
    %v2420 = vld [vmem:[#allocation3 + $0xc0] sm:$0xff]
    %v2421 = vld [vmem:[#allocation3 + $0xc8] sm:$0xff]
    %v2422 = vld [vmem:[#allocation3 + $0xd0] sm:$0xff]
    %v2423 = vld [vmem:[#allocation3 + $0xd8] sm:$0xff]
    %v2424 = vld [vmem:[#allocation3 + $0xe0] sm:$0xff]
    %v2425 = vld [vmem:[#allocation3 + $0xe8] sm:$0xff]
    %v2426 = vld [vmem:[#allocation3 + $0xf0] sm:$0xff]
    %v2427 = vld [vmem:[#allocation3 + $0xf8] sm:$0xff]
    %v2428 = vld [vmem:[#allocation3 + $0x100] sm:$0xff]
    %v2429 = vld [vmem:[#allocation3 + $0x108] sm:$0xff]
    %v2430 = vld [vmem:[#allocation3 + $0x110] sm:$0xff]
    %v2431 = vld [vmem:[#allocation3 + $0x118] sm:$0xff]
    %v2432 = vld [vmem:[#allocation3 + $0x120] sm:$0xff]
    %v2433 = vld [vmem:[#allocation3 + $0x128] sm:$0xff]
    %v2434 = vld [vmem:[#allocation3 + $0x130] sm:$0xff]
    %v2435 = vld [vmem:[#allocation3 + $0x138] sm:$0xff]
    %v2436 = vld [vmem:[#allocation3 + $0x140] sm:$0xff]
    %v2437 = vld [vmem:[#allocation3 + $0x148] sm:$0xff]
    %v2438 = vld [vmem:[#allocation3 + $0x150] sm:$0xff]
    %v2439 = vld [vmem:[#allocation3 + $0x158] sm:$0xff]
    %v2440 = vld [vmem:[#allocation3 + $0x160] sm:$0xff]
    %v2441 = vld [vmem:[#allocation3 + $0x168] sm:$0xff]
    %v2442 = vld [vmem:[#allocation3 + $0x170] sm:$0xff]
    %v2443 = vld [vmem:[#allocation3 + $0x178] sm:$0xff]
    %v2444 = vld [vmem:[#allocation3 + $0x180] sm:$0xff]
    %v2445 = vld [vmem:[#allocation3 + $0x188] sm:$0xff]
    %v2446 = vld [vmem:[#allocation3 + $0x190] sm:$0xff]
    %v2447 = vld [vmem:[#allocation3 + $0x198] sm:$0xff]
    %v2448 = vld [vmem:[#allocation3 + $0x1a0] sm:$0xff]
    %v2449 = vld [vmem:[#allocation3 + $0x1a8] sm:$0xff]
    %v2450 = vld [vmem:[#allocation3 + $0x1b0] sm:$0xff]
    %v2451 = vld [vmem:[#allocation3 + $0x1b8] sm:$0xff]
    %v2452 = vld [vmem:[#allocation3 + $0x1c0] sm:$0xff]
    %v2453 = vld [vmem:[#allocation3 + $0x1c8] sm:$0xff]
    %v2454 = vld [vmem:[#allocation3 + $0x1d0] sm:$0xff]
    %v2455 = vld [vmem:[#allocation3 + $0x1d8] sm:$0xff]
    %v2456 = vld [vmem:[#allocation3 + $0x1e0] sm:$0xff]
    %v2457 = vld [vmem:[#allocation3 + $0x1e8] sm:$0xff]
    %v2458 = vld [vmem:[#allocation3 + $0x1f0] sm:$0xff]
    %v2459 = vld [vmem:[#allocation3 + $0x1f8] sm:$0xff]
    %v2460 = vld [vmem:[#allocation3 + $0x200] sm:$0xff]
    %v2461 = vld [vmem:[#allocation3 + $0x208] sm:$0xff]
    %v2462 = vld [vmem:[#allocation3 + $0x210] sm:$0xff]
    %v2463 = vld [vmem:[#allocation3 + $0x218] sm:$0xff]
    %v2464 = vld [vmem:[#allocation3 + $0x220] sm:$0xff]
    %v2465 = vld [vmem:[#allocation3 + $0x228] sm:$0xff]
    %v2466 = vld [vmem:[#allocation3 + $0x230] sm:$0xff]
    %v2467 = vld [vmem:[#allocation3 + $0x238] sm:$0xff]
    %v2468 = vld [vmem:[#allocation3 + $0x240] sm:$0xff]
    %v2469 = vld [vmem:[#allocation3 + $0x248] sm:$0xff]
    %v2470 = vld [vmem:[#allocation3 + $0x250] sm:$0xff]
    %v2471 = vld [vmem:[#allocation3 + $0x258] sm:$0xff]
    %v2472 = vld [vmem:[#allocation3 + $0x260] sm:$0xff]
    %v2473 = vld [vmem:[#allocation3 + $0x268] sm:$0xff]
    %v2474 = vld [vmem:[#allocation3 + $0x270] sm:$0xff]
    %v2475 = vld [vmem:[#allocation3 + $0x278] sm:$0xff]
    %v2476 = vld [vmem:[#allocation3 + $0x280] sm:$0xff]
    %v2477 = vld [vmem:[#allocation3 + $0x288] sm:$0xff]
    %v2478 = vld [vmem:[#allocation3 + $0x290] sm:$0xff]
    %v2479 = vld [vmem:[#allocation3 + $0x298] sm:$0xff]
    %v2480 = vld [vmem:[#allocation3 + $0x2a0] sm:$0xff]
    %v2481 = vld [vmem:[#allocation3 + $0x2a8] sm:$0xff]
    %v2482 = vld [vmem:[#allocation3 + $0x2b0] sm:$0xff]
    %v2483 = vld [vmem:[#allocation3 + $0x2b8] sm:$0xff]
    %v2484 = vld [vmem:[#allocation3 + $0x2c0] sm:$0xff]
    %v2485 = vld [vmem:[#allocation3 + $0x2c8] sm:$0xff]
    %v2486 = vld [vmem:[#allocation3 + $0x2d0] sm:$0xff]
    %v2487 = vld [vmem:[#allocation3 + $0x2d8] sm:$0xff]
    %v2488 = vld [vmem:[#allocation3 + $0x2e0] sm:$0xff]
    %v2489 = vld [vmem:[#allocation3 + $0x2e8] sm:$0xff]
    %v2490 = vld [vmem:[#allocation3 + $0x2f0] sm:$0xff]
    %v2491 = vld [vmem:[#allocation3 + $0x2f8] sm:$0xff]
    %v2492 = vld [vmem:[#allocation3 + $0x300] sm:$0xff]
    %v2493 = vld [vmem:[#allocation3 + $0x308] sm:$0xff]
    %v2494 = vld [vmem:[#allocation3 + $0x310] sm:$0xff]
    %v2495 = vld [vmem:[#allocation3 + $0x318] sm:$0xff]
    %v2496 = vld [vmem:[#allocation3 + $0x320] sm:$0xff]
    %v2497 = vld [vmem:[#allocation3 + $0x328] sm:$0xff]
    %v2498 = vld [vmem:[#allocation3 + $0x330] sm:$0xff]
    %v2499 = vld [vmem:[#allocation3 + $0x338] sm:$0xff]
    %v2500 = vld [vmem:[#allocation3 + $0x340] sm:$0xff]
    %v2501 = vld [vmem:[#allocation3 + $0x348] sm:$0xff]
    %v2502 = vld [vmem:[#allocation3 + $0x350] sm:$0xff]
    %v2503 = vld [vmem:[#allocation3 + $0x358] sm:$0xff]
    %v2504 = vld [vmem:[%s4] sm:$0xff]
    %v2505 = vld [vmem:[%s4 + $0x8] sm:$0xff]
    %2507 = vset.pattern.permute.xlu0 0
    %2508 = vperm.xlu0 %2507, %v2504
    %v2509 = vpop.permute.xlu0 %2508
    %2512 = vset.pattern.permute.xlu0 0
    %2513 = vperm.xlu0 %2512, %v2505
    %v2514 = vpop.permute.xlu0 %2513
    %v2517 = vsel %vm1196, %v2393, 0
    %v2520 = vsel %vm1196, %v2395, 0
    %2522 = vmatprep.subr.mxu0 %v2397
    %2523 = vmatpush1.msra.mxu0 %v2396
    %2524 = vmatprep.subr.mxu0 %v2403
    %2525 = vmatpush1.msra.mxu0 %v2402
    %2526 = vmatprep.subr.mxu0 %v2409
    %2527 = vmatpush1.msra.mxu0 %v2408
    %2528 = vmatprep.subr.mxu0 %v2415
    %2529 = vmatpush1.msra.mxu0 %v2414
    %2530 = vmatprep.subr.mxu0 %v2421
    %2531 = vmatpush1.msra.mxu0 %v2420
    %2532 = vmatprep.subr.mxu0 %v2427
    %2533 = vmatpush1.msra.mxu0 %v2426
    %2534 = vmatprep.subr.mxu0 %v2433
    %2535 = vmatpush1.msra.mxu0 %v2432
    %2536 = vmatprep.subr.mxu0 %v2439
    %2537 = vmatpush1.msra.mxu0 %v2438
    %2538 = vmatprep.subr.mxu0 %v2445
    %2539 = vmatpush1.msra.mxu0 %v2444
    %2540 = vmatprep.subr.mxu0 %v2451
    %2541 = vmatpush1.msra.mxu0 %v2450
    %2542 = vmatprep.subr.mxu0 %v2457
    %2543 = vmatpush1.msra.mxu0 %v2456
    %2544 = vmatprep.subr.mxu0 %v2463
    %2545 = vmatpush1.msra.mxu0 %v2462
    %2546 = vmatprep.subr.mxu0 %v2469
    %2547 = vmatpush1.msra.mxu0 %v2468
    %2548 = vmatprep.subr.mxu0 %v2475
    %2549 = vmatpush1.msra.mxu0 %v2474
    %2550 = vmatprep.subr.mxu0 %v2481
    %2551 = vmatpush1.msra.mxu0 %v2480
    %2552 = vmatprep.subr.mxu0 %v2487
    %2553 = vmatpush1.msra.mxu0 %v2486
    %2554 = vmatprep.subr.mxu0 %v2493
    %2555 = vmatpush1.msra.mxu0 %v2492
    %2556 = vmatprep.subr.mxu0 %v2499
    %2557 = vmatpush1.msra.mxu0 %v2498
    %2558 = vmatprep.subr.mxu0 0.0
    %2559 = vmatpush1.msra.mxu0 0.0
    %2560 = vmatprep.subr.mxu0 0.0
    %2561 = vmatpush1.msra.mxu0 0.0
    %2562 = vmatprep.subr.mxu0 0.0
    %2563 = vmatpush1.msra.mxu0 0.0
    %2564 = vmatprep.subr.mxu0 0.0
    %2565 = vmatpush1.msra.mxu0 0.0
    %2566 = vmatprep.subr.mxu0 0.0
    %2567 = vmatpush1.msra.mxu0 0.0
    %2568 = vmatprep.subr.mxu0 0.0
    %2569 = vmatpush1.msra.mxu0 0.0
    %2570 = vmatprep.subr.mxu0 0.0
    %2571 = vmatpush1.msra.mxu0 0.0
    %2572 = vmatprep.subr.mxu0 0.0
    %2573 = vmatpush1.msra.mxu0 0.0
    %2574 = vmatprep.subr.mxu0 0.0
    %2575 = vmatpush1.msra.mxu0 0.0
    %2576 = vmatprep.subr.mxu0 0.0
    %2577 = vmatpush1.msra.mxu0 0.0
    %2578 = vmatprep.subr.mxu0 0.0
    %2579 = vmatpush1.msra.mxu0 0.0
    %2580 = vmatprep.subr.mxu0 0.0
    %2581 = vmatpush1.msra.mxu0 0.0
    %2582 = vmatprep.subr.mxu0 0.0
    %2583 = vmatpush1.msra.mxu0 0.0
    %2584 = vmatprep.subr.mxu0 0.0
    %2585 = vmatpush1.msra.mxu0 0.0
    %2586 = vmatprep.mubr.f32.mxu0 %v2517
    %2587 = vmatmul.mubr.f32.gmra.mrb[0].mxu0 %v2392
    %v2588 = vpop.f32.mrb[0].mxu0
    %v2589 = vadd.f32 %v2509, %v2588
    %v2590 = vpop.f32.mrb[0].mxu0
    %v2591 = vadd.f32 %v2509, %v2590
    %2592 = vmatprep.mubr.f32.mxu0 %v2520
    %2593 = vmatmul.mubr.f32.gmra.mrb[0].mxu0 %v2394
    %v2594 = vpop.f32.mrb[0].mxu0
    %v2595 = vadd.f32 %v2514, %v2594
    %v2596 = vpop.f32.mrb[0].mxu0
    %v2597 = vadd.f32 %v2514, %v2596
    %2598 = vdwg.mxu0
    %2599 = vmatprep.subr.mxu0 %v2399
    %2600 = vmatpush1.msra.mxu0 %v2398
    %2601 = vmatprep.subr.mxu0 %v2405
    %2602 = vmatpush1.msra.mxu0 %v2404
    %2603 = vmatprep.subr.mxu0 %v2411
    %2604 = vmatpush1.msra.mxu0 %v2410
    %2605 = vmatprep.subr.mxu0 %v2417
    %2606 = vmatpush1.msra.mxu0 %v2416
    %2607 = vmatprep.subr.mxu0 %v2423
    %2608 = vmatpush1.msra.mxu0 %v2422
    %2609 = vmatprep.subr.mxu0 %v2429
    %2610 = vmatpush1.msra.mxu0 %v2428
    %2611 = vmatprep.subr.mxu0 %v2435
    %2612 = vmatpush1.msra.mxu0 %v2434
    %2613 = vmatprep.subr.mxu0 %v2441
    %2614 = vmatpush1.msra.mxu0 %v2440
    %2615 = vmatprep.subr.mxu0 %v2447
    %2616 = vmatpush1.msra.mxu0 %v2446
    %2617 = vmatprep.subr.mxu0 %v2453
    %2618 = vmatpush1.msra.mxu0 %v2452
    %2619 = vmatprep.subr.mxu0 %v2459
    %2620 = vmatpush1.msra.mxu0 %v2458
    %2621 = vmatprep.subr.mxu0 %v2465
    %2622 = vmatpush1.msra.mxu0 %v2464
    %2623 = vmatprep.subr.mxu0 %v2471
    %2624 = vmatpush1.msra.mxu0 %v2470
    %2625 = vmatprep.subr.mxu0 %v2477
    %2626 = vmatpush1.msra.mxu0 %v2476
    %2627 = vmatprep.subr.mxu0 %v2483
    %2628 = vmatpush1.msra.mxu0 %v2482
    %2629 = vmatprep.subr.mxu0 %v2489
    %2630 = vmatpush1.msra.mxu0 %v2488
    %2631 = vmatprep.subr.mxu0 %v2495
    %2632 = vmatpush1.msra.mxu0 %v2494
    %2633 = vmatprep.subr.mxu0 %v2501
    %2634 = vmatpush1.msra.mxu0 %v2500
    %2635 = vmatprep.subr.mxu0 0.0
    %2636 = vmatpush1.msra.mxu0 0.0
    %2637 = vmatprep.subr.mxu0 0.0
    %2638 = vmatpush1.msra.mxu0 0.0
    %2639 = vmatprep.subr.mxu0 0.0
    %2640 = vmatpush1.msra.mxu0 0.0
    %2641 = vmatprep.subr.mxu0 0.0
    %2642 = vmatpush1.msra.mxu0 0.0
    %2643 = vmatprep.subr.mxu0 0.0
    %2644 = vmatpush1.msra.mxu0 0.0
    %2645 = vmatprep.subr.mxu0 0.0
    %2646 = vmatpush1.msra.mxu0 0.0
    %2647 = vmatprep.subr.mxu0 0.0
    %2648 = vmatpush1.msra.mxu0 0.0
    %2649 = vmatprep.subr.mxu0 0.0
    %2650 = vmatpush1.msra.mxu0 0.0
    %2651 = vmatprep.subr.mxu0 0.0
    %2652 = vmatpush1.msra.mxu0 0.0
    %2653 = vmatprep.subr.mxu0 0.0
    %2654 = vmatpush1.msra.mxu0 0.0
    %2655 = vmatprep.subr.mxu0 0.0
    %2656 = vmatpush1.msra.mxu0 0.0
    %2657 = vmatprep.subr.mxu0 0.0
    %2658 = vmatpush1.msra.mxu0 0.0
    %2659 = vmatprep.subr.mxu0 0.0
    %2660 = vmatpush1.msra.mxu0 0.0
    %2661 = vmatprep.subr.mxu0 0.0
    %2662 = vmatpush1.msra.mxu0 0.0
    %2663 = vmatprep.mubr.f32.mxu0 %v2517
    %2664 = vmatmul.mubr.f32.gmra.mrb[0].mxu0 %v2392
    %v2665 = vpop.f32.mrb[0].mxu0
    %v2666 = vadd.f32 %v2509, %v2665
    %v2667 = vpop.f32.mrb[0].mxu0
    %v2668 = vadd.f32 %v2509, %v2667
    %2669 = vmatprep.mubr.f32.mxu0 %v2520
    %2670 = vmatmul.mubr.f32.gmra.mrb[0].mxu0 %v2394
    %v2671 = vpop.f32.mrb[0].mxu0
    %v2672 = vadd.f32 %v2514, %v2671
    %v2673 = vpop.f32.mrb[0].mxu0
    %v2674 = vadd.f32 %v2514, %v2673
    %2675 = vdwg.mxu0
    %2676 = vmatprep.subr.mxu0 %v2401
    %2677 = vmatpush1.msra.mxu0 %v2400
    %2678 = vmatprep.subr.mxu0 %v2407
    %2679 = vmatpush1.msra.mxu0 %v2406
    %2680 = vmatprep.subr.mxu0 %v2413
    %2681 = vmatpush1.msra.mxu0 %v2412
    %2682 = vmatprep.subr.mxu0 %v2419
    %2683 = vmatpush1.msra.mxu0 %v2418
    %2684 = vmatprep.subr.mxu0 %v2425
    %2685 = vmatpush1.msra.mxu0 %v2424
    %2686 = vmatprep.subr.mxu0 %v2431
    %2687 = vmatpush1.msra.mxu0 %v2430
    %2688 = vmatprep.subr.mxu0 %v2437
    %2689 = vmatpush1.msra.mxu0 %v2436
    %2690 = vmatprep.subr.mxu0 %v2443
    %2691 = vmatpush1.msra.mxu0 %v2442
    %2692 = vmatprep.subr.mxu0 %v2449
    %2693 = vmatpush1.msra.mxu0 %v2448
    %2694 = vmatprep.subr.mxu0 %v2455
    %2695 = vmatpush1.msra.mxu0 %v2454
    %2696 = vmatprep.subr.mxu0 %v2461
    %2697 = vmatpush1.msra.mxu0 %v2460
    %2698 = vmatprep.subr.mxu0 %v2467
    %2699 = vmatpush1.msra.mxu0 %v2466
    %2700 = vmatprep.subr.mxu0 %v2473
    %2701 = vmatpush1.msra.mxu0 %v2472
    %2702 = vmatprep.subr.mxu0 %v2479
    %2703 = vmatpush1.msra.mxu0 %v2478
    %2704 = vmatprep.subr.mxu0 %v2485
    %2705 = vmatpush1.msra.mxu0 %v2484
    %2706 = vmatprep.subr.mxu0 %v2491
    %2707 = vmatpush1.msra.mxu0 %v2490
    %2708 = vmatprep.subr.mxu0 %v2497
    %2709 = vmatpush1.msra.mxu0 %v2496
    %2710 = vmatprep.subr.mxu0 %v2503
    %2711 = vmatpush1.msra.mxu0 %v2502
    %2712 = vmatprep.subr.mxu0 0.0
    %2713 = vmatpush1.msra.mxu0 0.0
    %2714 = vmatprep.subr.mxu0 0.0
    %2715 = vmatpush1.msra.mxu0 0.0
    %2716 = vmatprep.subr.mxu0 0.0
    %2717 = vmatpush1.msra.mxu0 0.0
    %2718 = vmatprep.subr.mxu0 0.0
    %2719 = vmatpush1.msra.mxu0 0.0
    %2720 = vmatprep.subr.mxu0 0.0
    %2721 = vmatpush1.msra.mxu0 0.0
    %2722 = vmatprep.subr.mxu0 0.0
    %2723 = vmatpush1.msra.mxu0 0.0
    %2724 = vmatprep.subr.mxu0 0.0
    %2725 = vmatpush1.msra.mxu0 0.0
    %2726 = vmatprep.subr.mxu0 0.0
    %2727 = vmatpush1.msra.mxu0 0.0
    %2728 = vmatprep.subr.mxu0 0.0
    %2729 = vmatpush1.msra.mxu0 0.0
    %2730 = vmatprep.subr.mxu0 0.0
    %2731 = vmatpush1.msra.mxu0 0.0
    %2732 = vmatprep.subr.mxu0 0.0
    %2733 = vmatpush1.msra.mxu0 0.0
    %2734 = vmatprep.subr.mxu0 0.0
    %2735 = vmatpush1.msra.mxu0 0.0
    %2736 = vmatprep.subr.mxu0 0.0
    %2737 = vmatpush1.msra.mxu0 0.0
    %2738 = vmatprep.subr.mxu0 0.0
    %2739 = vmatpush1.msra.mxu0 0.0
    %2740 = vmatprep.mubr.f32.mxu0 %v2517
    %2741 = vmatmul.mubr.f32.gmra.mrb[0].mxu0 %v2392
    %v2742 = vpop.f32.mrb[0].mxu0
    %v2743 = vadd.f32 %v2509, %v2742
    %v2744 = vpop.f32.mrb[0].mxu0
    %v2745 = vadd.f32 %v2509, %v2744
    %2746 = vmatprep.mubr.f32.mxu0 %v2520
    %2747 = vmatmul.mubr.f32.gmra.mrb[0].mxu0 %v2394
    %v2748 = vpop.f32.mrb[0].mxu0
    %v2749 = vadd.f32 %v2514, %v2748
    %v2750 = vpop.f32.mrb[0].mxu0
    %v2751 = vadd.f32 %v2514, %v2750
    %2752 = vdwg.mxu0
    %s2753 = scalar_lea.vmem %s7, 1
    %v2754 = vld [vmem:[%s2753] ss:$4 sm:$0x3f]
    %v2756 = vlaneseq
    %v2757 = vshrl.u32 %v2756, 7
    %v2758 = vsub.s32 0, %v2757
    %v2759 = vrot.slane %v2754, %v2758
    %v2760 = vlaneseq
    %v2761 = vshrl.u32 %v2760, 7
    %v2762 = vsub.s32 1, %v2761
    %v2763 = vrot.slane %v2754, %v2762
    %v2764 = vlaneseq
    %v2765 = vshrl.u32 %v2764, 7
    %v2766 = vsub.s32 2, %v2765
    %v2767 = vrot.slane %v2754, %v2766
    %v2768 = vlaneseq
    %v2769 = vshrl.u32 %v2768, 7
    %v2770 = vsub.s32 3, %v2769
    %v2771 = vrot.slane %v2754, %v2770
    %v2772 = vlaneseq
    %v2773 = vshrl.u32 %v2772, 7
    %v2774 = vsub.s32 4, %v2773
    %v2775 = vrot.slane %v2754, %v2774
    %v2776 = vlaneseq
    %v2777 = vshrl.u32 %v2776, 7
    %v2778 = vsub.s32 5, %v2777
    %v2779 = vrot.slane %v2754, %v2778
    %v2786 = vmul.f32 %v2589, %v2759
    %v2787 = vmul.f32 %v2591, %v2763
    %v2788 = vmul.f32 %v2666, %v2767
    %v2789 = vmul.f32 %v2668, %v2771
    %v2790 = vmul.f32 %v2743, %v2775
    %v2791 = vmul.f32 %v2745, %v2779
    %v2792 = vmul.f32 %v2595, %v2759
    %v2793 = vmul.f32 %v2597, %v2763
    %v2794 = vmul.f32 %v2672, %v2767
    %v2795 = vmul.f32 %v2674, %v2771
    %v2796 = vmul.f32 %v2749, %v2775
    %v2797 = vmul.f32 %v2751, %v2779
    %v2798 = vmul.f32 %v2786, %v2589
    %v2799 = vmul.f32 %v2787, %v2591
    %v2800 = vmul.f32 %v2788, %v2666
    %v2801 = vmul.f32 %v2789, %v2668
    %v2802 = vmul.f32 %v2790, %v2743
    %v2803 = vmul.f32 %v2791, %v2745
    %v2804 = vmul.f32 %v2792, %v2595
    %v2805 = vmul.f32 %v2793, %v2597
    %v2806 = vmul.f32 %v2794, %v2672
    %v2807 = vmul.f32 %v2795, %v2674
    %v2808 = vmul.f32 %v2796, %v2749
    %v2809 = vmul.f32 %v2797, %v2751
    %v2810 = vadd.f32 %v2786, %v2787
    %v2811 = vadd.f32 %v2810, %v2788
    %v2812 = vadd.f32 %v2811, %v2789
    %v2813 = vadd.f32 %v2812, %v2790
    %v2814 = vadd.f32 %v2813, %v2791
    %2815 = vadd.xlane.f32.xlu0 %v2814
    %v2816 = vpop.xlane.xlu0 %2815
    %v2817 = vadd.f32 %v2792, %v2793
    %v2818 = vadd.f32 %v2817, %v2794
    %v2819 = vadd.f32 %v2818, %v2795
    %v2820 = vadd.f32 %v2819, %v2796
    %v2821 = vadd.f32 %v2820, %v2797
    %2822 = vadd.xlane.f32.xlu0 %v2821
    %v2823 = vpop.xlane.xlu0 %2822
    %v2824 = vadd.f32 %v2798, %v2799
    %v2825 = vadd.f32 %v2824, %v2800
    %v2826 = vadd.f32 %v2825, %v2801
    %v2827 = vadd.f32 %v2826, %v2802
    %v2828 = vadd.f32 %v2827, %v2803
    %2829 = vadd.xlane.f32.xlu0 %v2828
    %v2830 = vpop.xlane.xlu0 %2829
    %v2831 = vadd.f32 %v2804, %v2805
    %v2832 = vadd.f32 %v2831, %v2806
    %v2833 = vadd.f32 %v2832, %v2807
    %v2834 = vadd.f32 %v2833, %v2808
    %v2835 = vadd.f32 %v2834, %v2809
    %2836 = vadd.xlane.f32.xlu0 %v2835
    %v2837 = vpop.xlane.xlu0 %2836
    %v2838 = vmul.f32 %v2816, 0.00295858
    %v2839 = vmul.f32 %v2823, 0.00295858
    %v2840 = vmul.f32 %v2830, 0.00295858
    %v2841 = vmul.f32 %v2837, 0.00295858
    %v2842 = vmul.f32 %v2838, %v2838
    %v2843 = vmul.f32 %v2839, %v2839
    %v2844 = vsub.f32 %v2840, %v2842
    %v2845 = vsub.f32 %v2841, %v2843
    %v2846 = vmax.f32 %v2844, 0.0
    %v2847 = vmax.f32 %v2845, 0.0
    %v2848 = vsub.f32 %v2589, %v2838
    %v2849 = vsub.f32 %v2591, %v2838
    %v2850 = vsub.f32 %v2666, %v2838
    %v2851 = vsub.f32 %v2668, %v2838
    %v2852 = vsub.f32 %v2743, %v2838
    %v2853 = vsub.f32 %v2745, %v2838
    %v2854 = vsub.f32 %v2595, %v2839
    %v2855 = vsub.f32 %v2597, %v2839
    %v2856 = vsub.f32 %v2672, %v2839
    %v2857 = vsub.f32 %v2674, %v2839
    %v2858 = vsub.f32 %v2749, %v2839
    %v2859 = vsub.f32 %v2751, %v2839
    %v2860 = vadd.f32 %v2846, 1e-05
    %v2861 = vadd.f32 %v2847, 1e-05
    %v2862 = vrsqrt.pop %v2860
    %v2863 = vrsqrt.pop %v2861
    %v2864 = vmul.f32 %v2848, %v2862
    %v2865 = vmul.f32 %v2849, %v2862
    %v2866 = vmul.f32 %v2850, %v2862
    %v2867 = vmul.f32 %v2851, %v2862
    %v2868 = vmul.f32 %v2852, %v2862
    %v2869 = vmul.f32 %v2853, %v2862
    %v2870 = vmul.f32 %v2854, %v2863
    %v2871 = vmul.f32 %v2855, %v2863
    %v2872 = vmul.f32 %v2856, %v2863
    %v2873 = vmul.f32 %v2857, %v2863
    %v2874 = vmul.f32 %v2858, %v2863
    %v2875 = vmul.f32 %v2859, %v2863
    %2876 = vset.pattern.permute.xlu0 1
    %2877 = vperm.xlu0 %2876, %v2504
    %v2878 = vpop.permute.xlu0 %2877
    %2880 = vset.pattern.permute.xlu0 1
    %2881 = vperm.xlu0 %2880, %v2505
    %v2882 = vpop.permute.xlu0 %2881
    %v2884 = vmul.f32 %v2864, %v2878
    %v2885 = vmul.f32 %v2865, %v2878
    %v2886 = vmul.f32 %v2866, %v2878
    %v2887 = vmul.f32 %v2867, %v2878
    %v2888 = vmul.f32 %v2868, %v2878
    %v2889 = vmul.f32 %v2869, %v2878
    %v2890 = vmul.f32 %v2870, %v2882
    %v2891 = vmul.f32 %v2871, %v2882
    %v2892 = vmul.f32 %v2872, %v2882
    %v2893 = vmul.f32 %v2873, %v2882
    %v2894 = vmul.f32 %v2874, %v2882
    %v2895 = vmul.f32 %v2875, %v2882
    %2896 = vset.pattern.permute.xlu0 2
    %2897 = vperm.xlu0 %2896, %v2504
    %v2898 = vpop.permute.xlu0 %2897
    %2900 = vset.pattern.permute.xlu0 2
    %2901 = vperm.xlu0 %2900, %v2505
    %v2902 = vpop.permute.xlu0 %2901
    %v2904 = vadd.f32 %v2884, %v2898
    %v2905 = vadd.f32 %v2885, %v2898
    %v2906 = vadd.f32 %v2886, %v2898
    %v2907 = vadd.f32 %v2887, %v2898
    %v2908 = vadd.f32 %v2888, %v2898
    %v2909 = vadd.f32 %v2889, %v2898
    %v2910 = vadd.f32 %v2890, %v2902
    %v2911 = vadd.f32 %v2891, %v2902
    %v2912 = vadd.f32 %v2892, %v2902
    %v2913 = vadd.f32 %v2893, %v2902
    %v2914 = vadd.f32 %v2894, %v2902
    %v2915 = vadd.f32 %v2895, %v2902
    %v2916 = vmax.f32 %v2904, 0.0
    %v2917 = vmax.f32 %v2905, 0.0
    %v2918 = vmax.f32 %v2906, 0.0
    %v2919 = vmax.f32 %v2907, 0.0
    %v2920 = vmax.f32 %v2908, 0.0
    %v2921 = vmax.f32 %v2909, 0.0
    %v2922 = vmax.f32 %v2910, 0.0
    %v2923 = vmax.f32 %v2911, 0.0
    %v2924 = vmax.f32 %v2912, 0.0
    %v2925 = vmax.f32 %v2913, 0.0
    %v2926 = vmax.f32 %v2914, 0.0
    %v2927 = vmax.f32 %v2915, 0.0
    %v2928 = vmul.f32 %v2916, %v2759
    %v2929 = vmul.f32 %v2917, %v2763
    %v2930 = vmul.f32 %v2918, %v2767
    %v2931 = vmul.f32 %v2919, %v2771
    %v2932 = vmul.f32 %v2920, %v2775
    %v2933 = vmul.f32 %v2921, %v2779
    %v2934 = vmul.f32 %v2922, %v2759
    %v2935 = vmul.f32 %v2923, %v2763
    %v2936 = vmul.f32 %v2924, %v2767
    %v2937 = vmul.f32 %v2925, %v2771
    %v2938 = vmul.f32 %v2926, %v2775
    %v2939 = vmul.f32 %v2927, %v2779
    %2940 = vst [vmem:[#allocation2 + $0x8] sm:$0xff] %v2928
    %2941 = vst [vmem:[#allocation2 + $0x10] sm:$0xff] %v2929
    %2942 = vst [vmem:[#allocation2 + $0x18] sm:$0xff] %v2930
    %2943 = vst [vmem:[#allocation2 + $0x20] sm:$0xff] %v2931
    %2944 = vst [vmem:[#allocation2 + $0x28] sm:$0xff] %v2932
    %2945 = vst [vmem:[#allocation2 + $0x30] sm:$0xff] %v2933
    %2946 = vst [vmem:[#allocation2 + $0x40] sm:$0xff] %v2934
    %2947 = vst [vmem:[#allocation2 + $0x48] sm:$0xff] %v2935
    %2948 = vst [vmem:[#allocation2 + $0x50] sm:$0xff] %v2936
    %2949 = vst [vmem:[#allocation2 + $0x58] sm:$0xff] %v2937
    %2950 = vst [vmem:[#allocation2 + $0x60] sm:$0xff] %v2938
    %2951 = vst [vmem:[#allocation2 + $0x68] sm:$0xff] %v2939
    %v2952 = vld [vmem:[#allocation2] sm:$0xff]
    %v2953 = vld [vmem:[#allocation2 + $0x8] sm:$0xff]
    %v2954 = vld [vmem:[#allocation2 + $0x10] sm:$0xff]
    %v2955 = vld [vmem:[#allocation2 + $0x18] sm:$0xff]
    %v2956 = vld [vmem:[#allocation2 + $0x20] sm:$0xff]
    %v2957 = vld [vmem:[#allocation2 + $0x28] sm:$0xff]
    %v2958 = vld [vmem:[#allocation2 + $0x30] sm:$0xff]
    %v2959 = vld [vmem:[#allocation2 + $0x38] sm:$0xff]
    %v2960 = vld [vmem:[#allocation2 + $0x40] sm:$0xff]
    %v2961 = vld [vmem:[#allocation2 + $0x48] sm:$0xff]
    %v2962 = vld [vmem:[#allocation2 + $0x50] sm:$0xff]
    %v2963 = vld [vmem:[#allocation2 + $0x58] sm:$0xff]
    %v2964 = vld [vmem:[#allocation2 + $0x60] sm:$0xff]
    %v2965 = vld [vmem:[#allocation2 + $0x68] sm:$0xff]
    %2980 = vrot.lane.b32.xlu0 %v2952, 36
    %v2981 = vpop.permute.xlu0 %2980
    %2982 = vrot.lane.b32.xlu0 %v2953, 36
    %v2983 = vpop.permute.xlu0 %2982
    %2984 = vrot.lane.b32.xlu0 %v2954, 36
    %v2985 = vpop.permute.xlu0 %2984
    %2986 = vrot.lane.b32.xlu0 %v2955, 36
    %v2987 = vpop.permute.xlu0 %2986
    %2988 = vrot.lane.b32.xlu0 %v2956, 36
    %v2989 = vpop.permute.xlu0 %2988
    %2990 = vrot.lane.b32.xlu0 %v2957, 36
    %v2991 = vpop.permute.xlu0 %2990
    %2992 = vrot.lane.b32.xlu0 %v2958, 36
    %v2993 = vpop.permute.xlu0 %2992
    %2994 = vrot.lane.b32.xlu0 %v2959, 36
    %v2995 = vpop.permute.xlu0 %2994
    %2996 = vrot.lane.b32.xlu0 %v2960, 36
    %v2997 = vpop.permute.xlu0 %2996
    %2998 = vrot.lane.b32.xlu0 %v2961, 36
    %v2999 = vpop.permute.xlu0 %2998
    %3000 = vrot.lane.b32.xlu0 %v2962, 36
    %v3001 = vpop.permute.xlu0 %3000
    %3002 = vrot.lane.b32.xlu0 %v2963, 36
    %v3003 = vpop.permute.xlu0 %3002
    %3004 = vrot.lane.b32.xlu0 %v2964, 36
    %v3005 = vpop.permute.xlu0 %3004
    %3006 = vrot.lane.b32.xlu0 %v2965, 36
    %v3007 = vpop.permute.xlu0 %3006
    %v3008 = vsel %vm360, %v2981, %v2983
    %v3009 = vsel %vm360, %v2983, %v2985
    %v3010 = vsel %vm360, %v2985, %v2987
    %v3011 = vsel %vm360, %v2987, %v2989
    %v3012 = vsel %vm360, %v2989, %v2991
    %v3013 = vsel %vm360, %v2991, %v2993
    %v3014 = vsel %vm360, %v2995, %v2997
    %v3015 = vsel %vm360, %v2997, %v2999
    %v3016 = vsel %vm360, %v2999, %v3001
    %v3017 = vsel %vm360, %v3001, %v3003
    %v3018 = vsel %vm360, %v3003, %v3005
    %v3019 = vsel %vm360, %v3005, %v3007
    %3032 = vst [vmem:[#allocation3] sm:$0xff] %v3008
    %3033 = vst [vmem:[#allocation3 + $0x8] sm:$0xff] %v3009
    %3034 = vst [vmem:[#allocation3 + $0x10] sm:$0xff] %v3010
    %3035 = vst [vmem:[#allocation3 + $0x18] sm:$0xff] %v3011
    %3036 = vst [vmem:[#allocation3 + $0x20] sm:$0xff] %v3012
    %3037 = vst [vmem:[#allocation3 + $0x28] sm:$0xff] %v3013
    %3038 = vst [vmem:[#allocation3 + $0x30] sm:$0xff] %v3014
    %3039 = vst [vmem:[#allocation3 + $0x38] sm:$0xff] %v3015
    %3040 = vst [vmem:[#allocation3 + $0x40] sm:$0xff] %v3016
    %3041 = vst [vmem:[#allocation3 + $0x48] sm:$0xff] %v3017
    %3042 = vst [vmem:[#allocation3 + $0x50] sm:$0xff] %v3018
    %3043 = vst [vmem:[#allocation3 + $0x58] sm:$0xff] %v3019
    %v3044 = vld [vmem:[#allocation2] sm:$0xff]
    %v3045 = vld [vmem:[#allocation2 + $0x8] sm:$0xff]
    %v3046 = vld [vmem:[#allocation2 + $0x10] sm:$0xff]
    %v3047 = vld [vmem:[#allocation2 + $0x18] sm:$0xff]
    %v3048 = vld [vmem:[#allocation2 + $0x20] sm:$0xff]
    %v3049 = vld [vmem:[#allocation2 + $0x28] sm:$0xff]
    %v3050 = vld [vmem:[#allocation2 + $0x30] sm:$0xff]
    %v3051 = vld [vmem:[#allocation2 + $0x38] sm:$0xff]
    %v3052 = vld [vmem:[#allocation2 + $0x40] sm:$0xff]
    %v3053 = vld [vmem:[#allocation2 + $0x48] sm:$0xff]
    %v3054 = vld [vmem:[#allocation2 + $0x50] sm:$0xff]
    %v3055 = vld [vmem:[#allocation2 + $0x58] sm:$0xff]
    %v3056 = vld [vmem:[#allocation2 + $0x60] sm:$0xff]
    %v3057 = vld [vmem:[#allocation2 + $0x68] sm:$0xff]
    %3072 = vrot.lane.b32.xlu0 %v3044, 35
    %v3073 = vpop.permute.xlu0 %3072
    %3074 = vrot.lane.b32.xlu0 %v3045, 35
    %v3075 = vpop.permute.xlu0 %3074
    %3076 = vrot.lane.b32.xlu0 %v3046, 35
    %v3077 = vpop.permute.xlu0 %3076
    %3078 = vrot.lane.b32.xlu0 %v3047, 35
    %v3079 = vpop.permute.xlu0 %3078
    %3080 = vrot.lane.b32.xlu0 %v3048, 35
    %v3081 = vpop.permute.xlu0 %3080
    %3082 = vrot.lane.b32.xlu0 %v3049, 35
    %v3083 = vpop.permute.xlu0 %3082
    %3084 = vrot.lane.b32.xlu0 %v3050, 35
    %v3085 = vpop.permute.xlu0 %3084
    %3086 = vrot.lane.b32.xlu0 %v3051, 35
    %v3087 = vpop.permute.xlu0 %3086
    %3088 = vrot.lane.b32.xlu0 %v3052, 35
    %v3089 = vpop.permute.xlu0 %3088
    %3090 = vrot.lane.b32.xlu0 %v3053, 35
    %v3091 = vpop.permute.xlu0 %3090
    %3092 = vrot.lane.b32.xlu0 %v3054, 35
    %v3093 = vpop.permute.xlu0 %3092
    %3094 = vrot.lane.b32.xlu0 %v3055, 35
    %v3095 = vpop.permute.xlu0 %3094
    %3096 = vrot.lane.b32.xlu0 %v3056, 35
    %v3097 = vpop.permute.xlu0 %3096
    %3098 = vrot.lane.b32.xlu0 %v3057, 35
    %v3099 = vpop.permute.xlu0 %3098
    %v3100 = vsel %vm453, %v3073, %v3075
    %v3101 = vsel %vm453, %v3075, %v3077
    %v3102 = vsel %vm453, %v3077, %v3079
    %v3103 = vsel %vm453, %v3079, %v3081
    %v3104 = vsel %vm453, %v3081, %v3083
    %v3105 = vsel %vm453, %v3083, %v3085
    %v3106 = vsel %vm453, %v3087, %v3089
    %v3107 = vsel %vm453, %v3089, %v3091
    %v3108 = vsel %vm453, %v3091, %v3093
    %v3109 = vsel %vm453, %v3093, %v3095
    %v3110 = vsel %vm453, %v3095, %v3097
    %v3111 = vsel %vm453, %v3097, %v3099
    %3124 = vst [vmem:[#allocation3 + $0x60] sm:$0xff] %v3100
    %3125 = vst [vmem:[#allocation3 + $0x68] sm:$0xff] %v3101
    %3126 = vst [vmem:[#allocation3 + $0x70] sm:$0xff] %v3102
    %3127 = vst [vmem:[#allocation3 + $0x78] sm:$0xff] %v3103
    %3128 = vst [vmem:[#allocation3 + $0x80] sm:$0xff] %v3104
    %3129 = vst [vmem:[#allocation3 + $0x88] sm:$0xff] %v3105
    %3130 = vst [vmem:[#allocation3 + $0x90] sm:$0xff] %v3106
    %3131 = vst [vmem:[#allocation3 + $0x98] sm:$0xff] %v3107
    %3132 = vst [vmem:[#allocation3 + $0xa0] sm:$0xff] %v3108
    %3133 = vst [vmem:[#allocation3 + $0xa8] sm:$0xff] %v3109
    %3134 = vst [vmem:[#allocation3 + $0xb0] sm:$0xff] %v3110
    %3135 = vst [vmem:[#allocation3 + $0xb8] sm:$0xff] %v3111
    %v3136 = vld [vmem:[#allocation2] sm:$0xff]
    %v3137 = vld [vmem:[#allocation2 + $0x8] sm:$0xff]
    %v3138 = vld [vmem:[#allocation2 + $0x10] sm:$0xff]
    %v3139 = vld [vmem:[#allocation2 + $0x18] sm:$0xff]
    %v3140 = vld [vmem:[#allocation2 + $0x20] sm:$0xff]
    %v3141 = vld [vmem:[#allocation2 + $0x28] sm:$0xff]
    %v3142 = vld [vmem:[#allocation2 + $0x30] sm:$0xff]
    %v3143 = vld [vmem:[#allocation2 + $0x38] sm:$0xff]
    %v3144 = vld [vmem:[#allocation2 + $0x40] sm:$0xff]
    %v3145 = vld [vmem:[#allocation2 + $0x48] sm:$0xff]
    %v3146 = vld [vmem:[#allocation2 + $0x50] sm:$0xff]
    %v3147 = vld [vmem:[#allocation2 + $0x58] sm:$0xff]
    %v3148 = vld [vmem:[#allocation2 + $0x60] sm:$0xff]
    %v3149 = vld [vmem:[#allocation2 + $0x68] sm:$0xff]
    %3164 = vrot.lane.b32.xlu0 %v3136, 34
    %v3165 = vpop.permute.xlu0 %3164
    %3166 = vrot.lane.b32.xlu0 %v3137, 34
    %v3167 = vpop.permute.xlu0 %3166
    %3168 = vrot.lane.b32.xlu0 %v3138, 34
    %v3169 = vpop.permute.xlu0 %3168
    %3170 = vrot.lane.b32.xlu0 %v3139, 34
    %v3171 = vpop.permute.xlu0 %3170
    %3172 = vrot.lane.b32.xlu0 %v3140, 34
    %v3173 = vpop.permute.xlu0 %3172
    %3174 = vrot.lane.b32.xlu0 %v3141, 34
    %v3175 = vpop.permute.xlu0 %3174
    %3176 = vrot.lane.b32.xlu0 %v3142, 34
    %v3177 = vpop.permute.xlu0 %3176
    %3178 = vrot.lane.b32.xlu0 %v3143, 34
    %v3179 = vpop.permute.xlu0 %3178
    %3180 = vrot.lane.b32.xlu0 %v3144, 34
    %v3181 = vpop.permute.xlu0 %3180
    %3182 = vrot.lane.b32.xlu0 %v3145, 34
    %v3183 = vpop.permute.xlu0 %3182
    %3184 = vrot.lane.b32.xlu0 %v3146, 34
    %v3185 = vpop.permute.xlu0 %3184
    %3186 = vrot.lane.b32.xlu0 %v3147, 34
    %v3187 = vpop.permute.xlu0 %3186
    %3188 = vrot.lane.b32.xlu0 %v3148, 34
    %v3189 = vpop.permute.xlu0 %3188
    %3190 = vrot.lane.b32.xlu0 %v3149, 34
    %v3191 = vpop.permute.xlu0 %3190
    %v3192 = vsel %vm546, %v3165, %v3167
    %v3193 = vsel %vm546, %v3167, %v3169
    %v3194 = vsel %vm546, %v3169, %v3171
    %v3195 = vsel %vm546, %v3171, %v3173
    %v3196 = vsel %vm546, %v3173, %v3175
    %v3197 = vsel %vm546, %v3175, %v3177
    %v3198 = vsel %vm546, %v3179, %v3181
    %v3199 = vsel %vm546, %v3181, %v3183
    %v3200 = vsel %vm546, %v3183, %v3185
    %v3201 = vsel %vm546, %v3185, %v3187
    %v3202 = vsel %vm546, %v3187, %v3189
    %v3203 = vsel %vm546, %v3189, %v3191
    %3216 = vst [vmem:[#allocation3 + $0xc0] sm:$0xff] %v3192
    %3217 = vst [vmem:[#allocation3 + $0xc8] sm:$0xff] %v3193
    %3218 = vst [vmem:[#allocation3 + $0xd0] sm:$0xff] %v3194
    %3219 = vst [vmem:[#allocation3 + $0xd8] sm:$0xff] %v3195
    %3220 = vst [vmem:[#allocation3 + $0xe0] sm:$0xff] %v3196
    %3221 = vst [vmem:[#allocation3 + $0xe8] sm:$0xff] %v3197
    %3222 = vst [vmem:[#allocation3 + $0xf0] sm:$0xff] %v3198
    %3223 = vst [vmem:[#allocation3 + $0xf8] sm:$0xff] %v3199
    %3224 = vst [vmem:[#allocation3 + $0x100] sm:$0xff] %v3200
    %3225 = vst [vmem:[#allocation3 + $0x108] sm:$0xff] %v3201
    %3226 = vst [vmem:[#allocation3 + $0x110] sm:$0xff] %v3202
    %3227 = vst [vmem:[#allocation3 + $0x118] sm:$0xff] %v3203
    %v3228 = vld [vmem:[#allocation2] sm:$0xff]
    %v3229 = vld [vmem:[#allocation2 + $0x8] sm:$0xff]
    %v3230 = vld [vmem:[#allocation2 + $0x10] sm:$0xff]
    %v3231 = vld [vmem:[#allocation2 + $0x18] sm:$0xff]
    %v3232 = vld [vmem:[#allocation2 + $0x20] sm:$0xff]
    %v3233 = vld [vmem:[#allocation2 + $0x28] sm:$0xff]
    %v3234 = vld [vmem:[#allocation2 + $0x30] sm:$0xff]
    %v3235 = vld [vmem:[#allocation2 + $0x38] sm:$0xff]
    %v3236 = vld [vmem:[#allocation2 + $0x40] sm:$0xff]
    %v3237 = vld [vmem:[#allocation2 + $0x48] sm:$0xff]
    %v3238 = vld [vmem:[#allocation2 + $0x50] sm:$0xff]
    %v3239 = vld [vmem:[#allocation2 + $0x58] sm:$0xff]
    %v3240 = vld [vmem:[#allocation2 + $0x60] sm:$0xff]
    %v3241 = vld [vmem:[#allocation2 + $0x68] sm:$0xff]
    %3256 = vrot.lane.b32.xlu0 %v3228, 19
    %v3257 = vpop.permute.xlu0 %3256
    %3258 = vrot.lane.b32.xlu0 %v3229, 19
    %v3259 = vpop.permute.xlu0 %3258
    %3260 = vrot.lane.b32.xlu0 %v3230, 19
    %v3261 = vpop.permute.xlu0 %3260
    %3262 = vrot.lane.b32.xlu0 %v3231, 19
    %v3263 = vpop.permute.xlu0 %3262
    %3264 = vrot.lane.b32.xlu0 %v3232, 19
    %v3265 = vpop.permute.xlu0 %3264
    %3266 = vrot.lane.b32.xlu0 %v3233, 19
    %v3267 = vpop.permute.xlu0 %3266
    %3268 = vrot.lane.b32.xlu0 %v3234, 19
    %v3269 = vpop.permute.xlu0 %3268
    %3270 = vrot.lane.b32.xlu0 %v3235, 19
    %v3271 = vpop.permute.xlu0 %3270
    %3272 = vrot.lane.b32.xlu0 %v3236, 19
    %v3273 = vpop.permute.xlu0 %3272
    %3274 = vrot.lane.b32.xlu0 %v3237, 19
    %v3275 = vpop.permute.xlu0 %3274
    %3276 = vrot.lane.b32.xlu0 %v3238, 19
    %v3277 = vpop.permute.xlu0 %3276
    %3278 = vrot.lane.b32.xlu0 %v3239, 19
    %v3279 = vpop.permute.xlu0 %3278
    %3280 = vrot.lane.b32.xlu0 %v3240, 19
    %v3281 = vpop.permute.xlu0 %3280
    %3282 = vrot.lane.b32.xlu0 %v3241, 19
    %v3283 = vpop.permute.xlu0 %3282
    %v3284 = vsel %vm639, %v3257, %v3259
    %v3285 = vsel %vm639, %v3259, %v3261
    %v3286 = vsel %vm639, %v3261, %v3263
    %v3287 = vsel %vm639, %v3263, %v3265
    %v3288 = vsel %vm639, %v3265, %v3267
    %v3289 = vsel %vm639, %v3267, %v3269
    %v3290 = vsel %vm639, %v3271, %v3273
    %v3291 = vsel %vm639, %v3273, %v3275
    %v3292 = vsel %vm639, %v3275, %v3277
    %v3293 = vsel %vm639, %v3277, %v3279
    %v3294 = vsel %vm639, %v3279, %v3281
    %v3295 = vsel %vm639, %v3281, %v3283
    %3308 = vst [vmem:[#allocation3 + $0x120] sm:$0xff] %v3284
    %3309 = vst [vmem:[#allocation3 + $0x128] sm:$0xff] %v3285
    %3310 = vst [vmem:[#allocation3 + $0x130] sm:$0xff] %v3286
    %3311 = vst [vmem:[#allocation3 + $0x138] sm:$0xff] %v3287
    %3312 = vst [vmem:[#allocation3 + $0x140] sm:$0xff] %v3288
    %3313 = vst [vmem:[#allocation3 + $0x148] sm:$0xff] %v3289
    %3314 = vst [vmem:[#allocation3 + $0x150] sm:$0xff] %v3290
    %3315 = vst [vmem:[#allocation3 + $0x158] sm:$0xff] %v3291
    %3316 = vst [vmem:[#allocation3 + $0x160] sm:$0xff] %v3292
    %3317 = vst [vmem:[#allocation3 + $0x168] sm:$0xff] %v3293
    %3318 = vst [vmem:[#allocation3 + $0x170] sm:$0xff] %v3294
    %3319 = vst [vmem:[#allocation3 + $0x178] sm:$0xff] %v3295
    %v3320 = vld [vmem:[#allocation2] sm:$0xff]
    %v3321 = vld [vmem:[#allocation2 + $0x8] sm:$0xff]
    %v3322 = vld [vmem:[#allocation2 + $0x10] sm:$0xff]
    %v3323 = vld [vmem:[#allocation2 + $0x18] sm:$0xff]
    %v3324 = vld [vmem:[#allocation2 + $0x20] sm:$0xff]
    %v3325 = vld [vmem:[#allocation2 + $0x28] sm:$0xff]
    %v3326 = vld [vmem:[#allocation2 + $0x30] sm:$0xff]
    %v3327 = vld [vmem:[#allocation2 + $0x38] sm:$0xff]
    %v3328 = vld [vmem:[#allocation2 + $0x40] sm:$0xff]
    %v3329 = vld [vmem:[#allocation2 + $0x48] sm:$0xff]
    %v3330 = vld [vmem:[#allocation2 + $0x50] sm:$0xff]
    %v3331 = vld [vmem:[#allocation2 + $0x58] sm:$0xff]
    %v3332 = vld [vmem:[#allocation2 + $0x60] sm:$0xff]
    %v3333 = vld [vmem:[#allocation2 + $0x68] sm:$0xff]
    %3348 = vrot.lane.b32.xlu0 %v3320, 18
    %v3349 = vpop.permute.xlu0 %3348
    %3350 = vrot.lane.b32.xlu0 %v3321, 18
    %v3351 = vpop.permute.xlu0 %3350
    %3352 = vrot.lane.b32.xlu0 %v3322, 18
    %v3353 = vpop.permute.xlu0 %3352
    %3354 = vrot.lane.b32.xlu0 %v3323, 18
    %v3355 = vpop.permute.xlu0 %3354
    %3356 = vrot.lane.b32.xlu0 %v3324, 18
    %v3357 = vpop.permute.xlu0 %3356
    %3358 = vrot.lane.b32.xlu0 %v3325, 18
    %v3359 = vpop.permute.xlu0 %3358
    %3360 = vrot.lane.b32.xlu0 %v3326, 18
    %v3361 = vpop.permute.xlu0 %3360
    %3362 = vrot.lane.b32.xlu0 %v3327, 18
    %v3363 = vpop.permute.xlu0 %3362
    %3364 = vrot.lane.b32.xlu0 %v3328, 18
    %v3365 = vpop.permute.xlu0 %3364
    %3366 = vrot.lane.b32.xlu0 %v3329, 18
    %v3367 = vpop.permute.xlu0 %3366
    %3368 = vrot.lane.b32.xlu0 %v3330, 18
    %v3369 = vpop.permute.xlu0 %3368
    %3370 = vrot.lane.b32.xlu0 %v3331, 18
    %v3371 = vpop.permute.xlu0 %3370
    %3372 = vrot.lane.b32.xlu0 %v3332, 18
    %v3373 = vpop.permute.xlu0 %3372
    %3374 = vrot.lane.b32.xlu0 %v3333, 18
    %v3375 = vpop.permute.xlu0 %3374
    %v3376 = vsel %vm732, %v3349, %v3351
    %v3377 = vsel %vm732, %v3351, %v3353
    %v3378 = vsel %vm732, %v3353, %v3355
    %v3379 = vsel %vm732, %v3355, %v3357
    %v3380 = vsel %vm732, %v3357, %v3359
    %v3381 = vsel %vm732, %v3359, %v3361
    %v3382 = vsel %vm732, %v3363, %v3365
    %v3383 = vsel %vm732, %v3365, %v3367
    %v3384 = vsel %vm732, %v3367, %v3369
    %v3385 = vsel %vm732, %v3369, %v3371
    %v3386 = vsel %vm732, %v3371, %v3373
    %v3387 = vsel %vm732, %v3373, %v3375
    %3400 = vst [vmem:[#allocation3 + $0x180] sm:$0xff] %v3376
    %3401 = vst [vmem:[#allocation3 + $0x188] sm:$0xff] %v3377
    %3402 = vst [vmem:[#allocation3 + $0x190] sm:$0xff] %v3378
    %3403 = vst [vmem:[#allocation3 + $0x198] sm:$0xff] %v3379
    %3404 = vst [vmem:[#allocation3 + $0x1a0] sm:$0xff] %v3380
    %3405 = vst [vmem:[#allocation3 + $0x1a8] sm:$0xff] %v3381
    %3406 = vst [vmem:[#allocation3 + $0x1b0] sm:$0xff] %v3382
    %3407 = vst [vmem:[#allocation3 + $0x1b8] sm:$0xff] %v3383
    %3408 = vst [vmem:[#allocation3 + $0x1c0] sm:$0xff] %v3384
    %3409 = vst [vmem:[#allocation3 + $0x1c8] sm:$0xff] %v3385
    %3410 = vst [vmem:[#allocation3 + $0x1d0] sm:$0xff] %v3386
    %3411 = vst [vmem:[#allocation3 + $0x1d8] sm:$0xff] %v3387
    %v3412 = vld [vmem:[#allocation2] sm:$0xff]
    %v3413 = vld [vmem:[#allocation2 + $0x8] sm:$0xff]
    %v3414 = vld [vmem:[#allocation2 + $0x10] sm:$0xff]
    %v3415 = vld [vmem:[#allocation2 + $0x18] sm:$0xff]
    %v3416 = vld [vmem:[#allocation2 + $0x20] sm:$0xff]
    %v3417 = vld [vmem:[#allocation2 + $0x28] sm:$0xff]
    %v3418 = vld [vmem:[#allocation2 + $0x30] sm:$0xff]
    %v3419 = vld [vmem:[#allocation2 + $0x38] sm:$0xff]
    %v3420 = vld [vmem:[#allocation2 + $0x40] sm:$0xff]
    %v3421 = vld [vmem:[#allocation2 + $0x48] sm:$0xff]
    %v3422 = vld [vmem:[#allocation2 + $0x50] sm:$0xff]
    %v3423 = vld [vmem:[#allocation2 + $0x58] sm:$0xff]
    %v3424 = vld [vmem:[#allocation2 + $0x60] sm:$0xff]
    %v3425 = vld [vmem:[#allocation2 + $0x68] sm:$0xff]
    %3440 = vrot.lane.b32.xlu0 %v3412, 17
    %v3441 = vpop.permute.xlu0 %3440
    %3442 = vrot.lane.b32.xlu0 %v3413, 17
    %v3443 = vpop.permute.xlu0 %3442
    %3444 = vrot.lane.b32.xlu0 %v3414, 17
    %v3445 = vpop.permute.xlu0 %3444
    %3446 = vrot.lane.b32.xlu0 %v3415, 17
    %v3447 = vpop.permute.xlu0 %3446
    %3448 = vrot.lane.b32.xlu0 %v3416, 17
    %v3449 = vpop.permute.xlu0 %3448
    %3450 = vrot.lane.b32.xlu0 %v3417, 17
    %v3451 = vpop.permute.xlu0 %3450
    %3452 = vrot.lane.b32.xlu0 %v3418, 17
    %v3453 = vpop.permute.xlu0 %3452
    %3454 = vrot.lane.b32.xlu0 %v3419, 17
    %v3455 = vpop.permute.xlu0 %3454
    %3456 = vrot.lane.b32.xlu0 %v3420, 17
    %v3457 = vpop.permute.xlu0 %3456
    %3458 = vrot.lane.b32.xlu0 %v3421, 17
    %v3459 = vpop.permute.xlu0 %3458
    %3460 = vrot.lane.b32.xlu0 %v3422, 17
    %v3461 = vpop.permute.xlu0 %3460
    %3462 = vrot.lane.b32.xlu0 %v3423, 17
    %v3463 = vpop.permute.xlu0 %3462
    %3464 = vrot.lane.b32.xlu0 %v3424, 17
    %v3465 = vpop.permute.xlu0 %3464
    %3466 = vrot.lane.b32.xlu0 %v3425, 17
    %v3467 = vpop.permute.xlu0 %3466
    %v3468 = vsel %vm825, %v3441, %v3443
    %v3469 = vsel %vm825, %v3443, %v3445
    %v3470 = vsel %vm825, %v3445, %v3447
    %v3471 = vsel %vm825, %v3447, %v3449
    %v3472 = vsel %vm825, %v3449, %v3451
    %v3473 = vsel %vm825, %v3451, %v3453
    %v3474 = vsel %vm825, %v3455, %v3457
    %v3475 = vsel %vm825, %v3457, %v3459
    %v3476 = vsel %vm825, %v3459, %v3461
    %v3477 = vsel %vm825, %v3461, %v3463
    %v3478 = vsel %vm825, %v3463, %v3465
    %v3479 = vsel %vm825, %v3465, %v3467
    %3492 = vst [vmem:[#allocation3 + $0x1e0] sm:$0xff] %v3468
    %3493 = vst [vmem:[#allocation3 + $0x1e8] sm:$0xff] %v3469
    %3494 = vst [vmem:[#allocation3 + $0x1f0] sm:$0xff] %v3470
    %3495 = vst [vmem:[#allocation3 + $0x1f8] sm:$0xff] %v3471
    %3496 = vst [vmem:[#allocation3 + $0x200] sm:$0xff] %v3472
    %3497 = vst [vmem:[#allocation3 + $0x208] sm:$0xff] %v3473
    %3498 = vst [vmem:[#allocation3 + $0x210] sm:$0xff] %v3474
    %3499 = vst [vmem:[#allocation3 + $0x218] sm:$0xff] %v3475
    %3500 = vst [vmem:[#allocation3 + $0x220] sm:$0xff] %v3476
    %3501 = vst [vmem:[#allocation3 + $0x228] sm:$0xff] %v3477
    %3502 = vst [vmem:[#allocation3 + $0x230] sm:$0xff] %v3478
    %3503 = vst [vmem:[#allocation3 + $0x238] sm:$0xff] %v3479
    %v3504 = vld [vmem:[#allocation2] sm:$0xff]
    %v3505 = vld [vmem:[#allocation2 + $0x8] sm:$0xff]
    %v3506 = vld [vmem:[#allocation2 + $0x10] sm:$0xff]
    %v3507 = vld [vmem:[#allocation2 + $0x18] sm:$0xff]
    %v3508 = vld [vmem:[#allocation2 + $0x20] sm:$0xff]
    %v3509 = vld [vmem:[#allocation2 + $0x28] sm:$0xff]
    %v3510 = vld [vmem:[#allocation2 + $0x30] sm:$0xff]
    %v3511 = vld [vmem:[#allocation2 + $0x38] sm:$0xff]
    %v3512 = vld [vmem:[#allocation2 + $0x40] sm:$0xff]
    %v3513 = vld [vmem:[#allocation2 + $0x48] sm:$0xff]
    %v3514 = vld [vmem:[#allocation2 + $0x50] sm:$0xff]
    %v3515 = vld [vmem:[#allocation2 + $0x58] sm:$0xff]
    %v3516 = vld [vmem:[#allocation2 + $0x60] sm:$0xff]
    %v3517 = vld [vmem:[#allocation2 + $0x68] sm:$0xff]
    %3532 = vrot.lane.b32.xlu0 %v3504, 2
    %v3533 = vpop.permute.xlu0 %3532
    %3534 = vrot.lane.b32.xlu0 %v3505, 2
    %v3535 = vpop.permute.xlu0 %3534
    %3536 = vrot.lane.b32.xlu0 %v3506, 2
    %v3537 = vpop.permute.xlu0 %3536
    %3538 = vrot.lane.b32.xlu0 %v3507, 2
    %v3539 = vpop.permute.xlu0 %3538
    %3540 = vrot.lane.b32.xlu0 %v3508, 2
    %v3541 = vpop.permute.xlu0 %3540
    %3542 = vrot.lane.b32.xlu0 %v3509, 2
    %v3543 = vpop.permute.xlu0 %3542
    %3544 = vrot.lane.b32.xlu0 %v3510, 2
    %v3545 = vpop.permute.xlu0 %3544
    %3546 = vrot.lane.b32.xlu0 %v3511, 2
    %v3547 = vpop.permute.xlu0 %3546
    %3548 = vrot.lane.b32.xlu0 %v3512, 2
    %v3549 = vpop.permute.xlu0 %3548
    %3550 = vrot.lane.b32.xlu0 %v3513, 2
    %v3551 = vpop.permute.xlu0 %3550
    %3552 = vrot.lane.b32.xlu0 %v3514, 2
    %v3553 = vpop.permute.xlu0 %3552
    %3554 = vrot.lane.b32.xlu0 %v3515, 2
    %v3555 = vpop.permute.xlu0 %3554
    %3556 = vrot.lane.b32.xlu0 %v3516, 2
    %v3557 = vpop.permute.xlu0 %3556
    %3558 = vrot.lane.b32.xlu0 %v3517, 2
    %v3559 = vpop.permute.xlu0 %3558
    %v3560 = vsel %vm918, %v3533, %v3535
    %v3561 = vsel %vm918, %v3535, %v3537
    %v3562 = vsel %vm918, %v3537, %v3539
    %v3563 = vsel %vm918, %v3539, %v3541
    %v3564 = vsel %vm918, %v3541, %v3543
    %v3565 = vsel %vm918, %v3543, %v3545
    %v3566 = vsel %vm918, %v3547, %v3549
    %v3567 = vsel %vm918, %v3549, %v3551
    %v3568 = vsel %vm918, %v3551, %v3553
    %v3569 = vsel %vm918, %v3553, %v3555
    %v3570 = vsel %vm918, %v3555, %v3557
    %v3571 = vsel %vm918, %v3557, %v3559
    %3584 = vst [vmem:[#allocation3 + $0x240] sm:$0xff] %v3560
    %3585 = vst [vmem:[#allocation3 + $0x248] sm:$0xff] %v3561
    %3586 = vst [vmem:[#allocation3 + $0x250] sm:$0xff] %v3562
    %3587 = vst [vmem:[#allocation3 + $0x258] sm:$0xff] %v3563
    %3588 = vst [vmem:[#allocation3 + $0x260] sm:$0xff] %v3564
    %3589 = vst [vmem:[#allocation3 + $0x268] sm:$0xff] %v3565
    %3590 = vst [vmem:[#allocation3 + $0x270] sm:$0xff] %v3566
    %3591 = vst [vmem:[#allocation3 + $0x278] sm:$0xff] %v3567
    %3592 = vst [vmem:[#allocation3 + $0x280] sm:$0xff] %v3568
    %3593 = vst [vmem:[#allocation3 + $0x288] sm:$0xff] %v3569
    %3594 = vst [vmem:[#allocation3 + $0x290] sm:$0xff] %v3570
    %3595 = vst [vmem:[#allocation3 + $0x298] sm:$0xff] %v3571
    %v3596 = vld [vmem:[#allocation2] sm:$0xff]
    %v3597 = vld [vmem:[#allocation2 + $0x8] sm:$0xff]
    %v3598 = vld [vmem:[#allocation2 + $0x10] sm:$0xff]
    %v3599 = vld [vmem:[#allocation2 + $0x18] sm:$0xff]
    %v3600 = vld [vmem:[#allocation2 + $0x20] sm:$0xff]
    %v3601 = vld [vmem:[#allocation2 + $0x28] sm:$0xff]
    %v3602 = vld [vmem:[#allocation2 + $0x30] sm:$0xff]
    %v3603 = vld [vmem:[#allocation2 + $0x38] sm:$0xff]
    %v3604 = vld [vmem:[#allocation2 + $0x40] sm:$0xff]
    %v3605 = vld [vmem:[#allocation2 + $0x48] sm:$0xff]
    %v3606 = vld [vmem:[#allocation2 + $0x50] sm:$0xff]
    %v3607 = vld [vmem:[#allocation2 + $0x58] sm:$0xff]
    %v3608 = vld [vmem:[#allocation2 + $0x60] sm:$0xff]
    %v3609 = vld [vmem:[#allocation2 + $0x68] sm:$0xff]
    %3624 = vrot.lane.b32.xlu0 %v3596, 1
    %v3625 = vpop.permute.xlu0 %3624
    %3626 = vrot.lane.b32.xlu0 %v3597, 1
    %v3627 = vpop.permute.xlu0 %3626
    %3628 = vrot.lane.b32.xlu0 %v3598, 1
    %v3629 = vpop.permute.xlu0 %3628
    %3630 = vrot.lane.b32.xlu0 %v3599, 1
    %v3631 = vpop.permute.xlu0 %3630
    %3632 = vrot.lane.b32.xlu0 %v3600, 1
    %v3633 = vpop.permute.xlu0 %3632
    %3634 = vrot.lane.b32.xlu0 %v3601, 1
    %v3635 = vpop.permute.xlu0 %3634
    %3636 = vrot.lane.b32.xlu0 %v3602, 1
    %v3637 = vpop.permute.xlu0 %3636
    %3638 = vrot.lane.b32.xlu0 %v3603, 1
    %v3639 = vpop.permute.xlu0 %3638
    %3640 = vrot.lane.b32.xlu0 %v3604, 1
    %v3641 = vpop.permute.xlu0 %3640
    %3642 = vrot.lane.b32.xlu0 %v3605, 1
    %v3643 = vpop.permute.xlu0 %3642
    %3644 = vrot.lane.b32.xlu0 %v3606, 1
    %v3645 = vpop.permute.xlu0 %3644
    %3646 = vrot.lane.b32.xlu0 %v3607, 1
    %v3647 = vpop.permute.xlu0 %3646
    %3648 = vrot.lane.b32.xlu0 %v3608, 1
    %v3649 = vpop.permute.xlu0 %3648
    %3650 = vrot.lane.b32.xlu0 %v3609, 1
    %v3651 = vpop.permute.xlu0 %3650
    %v3652 = vsel %vm1011, %v3625, %v3627
    %v3653 = vsel %vm1011, %v3627, %v3629
    %v3654 = vsel %vm1011, %v3629, %v3631
    %v3655 = vsel %vm1011, %v3631, %v3633
    %v3656 = vsel %vm1011, %v3633, %v3635
    %v3657 = vsel %vm1011, %v3635, %v3637
    %v3658 = vsel %vm1011, %v3639, %v3641
    %v3659 = vsel %vm1011, %v3641, %v3643
    %v3660 = vsel %vm1011, %v3643, %v3645
    %v3661 = vsel %vm1011, %v3645, %v3647
    %v3662 = vsel %vm1011, %v3647, %v3649
    %v3663 = vsel %vm1011, %v3649, %v3651
    %3676 = vst [vmem:[#allocation3 + $0x2a0] sm:$0xff] %v3652
    %3677 = vst [vmem:[#allocation3 + $0x2a8] sm:$0xff] %v3653
    %3678 = vst [vmem:[#allocation3 + $0x2b0] sm:$0xff] %v3654
    %3679 = vst [vmem:[#allocation3 + $0x2b8] sm:$0xff] %v3655
    %3680 = vst [vmem:[#allocation3 + $0x2c0] sm:$0xff] %v3656
    %3681 = vst [vmem:[#allocation3 + $0x2c8] sm:$0xff] %v3657
    %3682 = vst [vmem:[#allocation3 + $0x2d0] sm:$0xff] %v3658
    %3683 = vst [vmem:[#allocation3 + $0x2d8] sm:$0xff] %v3659
    %3684 = vst [vmem:[#allocation3 + $0x2e0] sm:$0xff] %v3660
    %3685 = vst [vmem:[#allocation3 + $0x2e8] sm:$0xff] %v3661
    %3686 = vst [vmem:[#allocation3 + $0x2f0] sm:$0xff] %v3662
    %3687 = vst [vmem:[#allocation3 + $0x2f8] sm:$0xff] %v3663
    %v3688 = vld [vmem:[#allocation2 + $0x8] sm:$0xff]
    %v3689 = vld [vmem:[#allocation2 + $0x10] sm:$0xff]
    %v3690 = vld [vmem:[#allocation2 + $0x18] sm:$0xff]
    %v3691 = vld [vmem:[#allocation2 + $0x20] sm:$0xff]
    %v3692 = vld [vmem:[#allocation2 + $0x28] sm:$0xff]
    %v3693 = vld [vmem:[#allocation2 + $0x30] sm:$0xff]
    %v3694 = vld [vmem:[#allocation2 + $0x40] sm:$0xff]
    %v3695 = vld [vmem:[#allocation2 + $0x48] sm:$0xff]
    %v3696 = vld [vmem:[#allocation2 + $0x50] sm:$0xff]
    %v3697 = vld [vmem:[#allocation2 + $0x58] sm:$0xff]
    %v3698 = vld [vmem:[#allocation2 + $0x60] sm:$0xff]
    %v3699 = vld [vmem:[#allocation2 + $0x68] sm:$0xff]
    %3700 = vst [vmem:[#allocation3 + $0x300] sm:$0xff] %v3688
    %3701 = vst [vmem:[#allocation3 + $0x308] sm:$0xff] %v3689
    %3702 = vst [vmem:[#allocation3 + $0x310] sm:$0xff] %v3690
    %3703 = vst [vmem:[#allocation3 + $0x318] sm:$0xff] %v3691
    %3704 = vst [vmem:[#allocation3 + $0x320] sm:$0xff] %v3692
    %3705 = vst [vmem:[#allocation3 + $0x328] sm:$0xff] %v3693
    %3706 = vst [vmem:[#allocation3 + $0x330] sm:$0xff] %v3694
    %3707 = vst [vmem:[#allocation3 + $0x338] sm:$0xff] %v3695
    %3708 = vst [vmem:[#allocation3 + $0x340] sm:$0xff] %v3696
    %3709 = vst [vmem:[#allocation3 + $0x348] sm:$0xff] %v3697
    %3710 = vst [vmem:[#allocation3 + $0x350] sm:$0xff] %v3698
    %3711 = vst [vmem:[#allocation3 + $0x358] sm:$0xff] %v3699
    %v3712 = vld [vmem:[%s5] sm:$0xff]
    %v3713 = vld [vmem:[%s5 + $0x8] sm:$0xff]
    %v3714 = vld [vmem:[%s5 + $0x10] sm:$0xff]
    %v3715 = vld [vmem:[%s5 + $0x18] sm:$0xff]
    %v3716 = vld [vmem:[#allocation3] sm:$0xff]
    %v3717 = vld [vmem:[#allocation3 + $0x8] sm:$0xff]
    %v3718 = vld [vmem:[#allocation3 + $0x10] sm:$0xff]
    %v3719 = vld [vmem:[#allocation3 + $0x18] sm:$0xff]
    %v3720 = vld [vmem:[#allocation3 + $0x20] sm:$0xff]
    %v3721 = vld [vmem:[#allocation3 + $0x28] sm:$0xff]
    %v3722 = vld [vmem:[#allocation3 + $0x30] sm:$0xff]
    %v3723 = vld [vmem:[#allocation3 + $0x38] sm:$0xff]
    %v3724 = vld [vmem:[#allocation3 + $0x40] sm:$0xff]
    %v3725 = vld [vmem:[#allocation3 + $0x48] sm:$0xff]
    %v3726 = vld [vmem:[#allocation3 + $0x50] sm:$0xff]
    %v3727 = vld [vmem:[#allocation3 + $0x58] sm:$0xff]
    %v3728 = vld [vmem:[#allocation3 + $0x60] sm:$0xff]
    %v3729 = vld [vmem:[#allocation3 + $0x68] sm:$0xff]
    %v3730 = vld [vmem:[#allocation3 + $0x70] sm:$0xff]
    %v3731 = vld [vmem:[#allocation3 + $0x78] sm:$0xff]
    %v3732 = vld [vmem:[#allocation3 + $0x80] sm:$0xff]
    %v3733 = vld [vmem:[#allocation3 + $0x88] sm:$0xff]
    %v3734 = vld [vmem:[#allocation3 + $0x90] sm:$0xff]
    %v3735 = vld [vmem:[#allocation3 + $0x98] sm:$0xff]
    %v3736 = vld [vmem:[#allocation3 + $0xa0] sm:$0xff]
    %v3737 = vld [vmem:[#allocation3 + $0xa8] sm:$0xff]
    %v3738 = vld [vmem:[#allocation3 + $0xb0] sm:$0xff]
    %v3739 = vld [vmem:[#allocation3 + $0xb8] sm:$0xff]
    %v3740 = vld [vmem:[#allocation3 + $0xc0] sm:$0xff]
    %v3741 = vld [vmem:[#allocation3 + $0xc8] sm:$0xff]
    %v3742 = vld [vmem:[#allocation3 + $0xd0] sm:$0xff]
    %v3743 = vld [vmem:[#allocation3 + $0xd8] sm:$0xff]
    %v3744 = vld [vmem:[#allocation3 + $0xe0] sm:$0xff]
    %v3745 = vld [vmem:[#allocation3 + $0xe8] sm:$0xff]
    %v3746 = vld [vmem:[#allocation3 + $0xf0] sm:$0xff]
    %v3747 = vld [vmem:[#allocation3 + $0xf8] sm:$0xff]
    %v3748 = vld [vmem:[#allocation3 + $0x100] sm:$0xff]
    %v3749 = vld [vmem:[#allocation3 + $0x108] sm:$0xff]
    %v3750 = vld [vmem:[#allocation3 + $0x110] sm:$0xff]
    %v3751 = vld [vmem:[#allocation3 + $0x118] sm:$0xff]
    %v3752 = vld [vmem:[#allocation3 + $0x120] sm:$0xff]
    %v3753 = vld [vmem:[#allocation3 + $0x128] sm:$0xff]
    %v3754 = vld [vmem:[#allocation3 + $0x130] sm:$0xff]
    %v3755 = vld [vmem:[#allocation3 + $0x138] sm:$0xff]
    %v3756 = vld [vmem:[#allocation3 + $0x140] sm:$0xff]
    %v3757 = vld [vmem:[#allocation3 + $0x148] sm:$0xff]
    %v3758 = vld [vmem:[#allocation3 + $0x150] sm:$0xff]
    %v3759 = vld [vmem:[#allocation3 + $0x158] sm:$0xff]
    %v3760 = vld [vmem:[#allocation3 + $0x160] sm:$0xff]
    %v3761 = vld [vmem:[#allocation3 + $0x168] sm:$0xff]
    %v3762 = vld [vmem:[#allocation3 + $0x170] sm:$0xff]
    %v3763 = vld [vmem:[#allocation3 + $0x178] sm:$0xff]
    %v3764 = vld [vmem:[#allocation3 + $0x180] sm:$0xff]
    %v3765 = vld [vmem:[#allocation3 + $0x188] sm:$0xff]
    %v3766 = vld [vmem:[#allocation3 + $0x190] sm:$0xff]
    %v3767 = vld [vmem:[#allocation3 + $0x198] sm:$0xff]
    %v3768 = vld [vmem:[#allocation3 + $0x1a0] sm:$0xff]
    %v3769 = vld [vmem:[#allocation3 + $0x1a8] sm:$0xff]
    %v3770 = vld [vmem:[#allocation3 + $0x1b0] sm:$0xff]
    %v3771 = vld [vmem:[#allocation3 + $0x1b8] sm:$0xff]
    %v3772 = vld [vmem:[#allocation3 + $0x1c0] sm:$0xff]
    %v3773 = vld [vmem:[#allocation3 + $0x1c8] sm:$0xff]
    %v3774 = vld [vmem:[#allocation3 + $0x1d0] sm:$0xff]
    %v3775 = vld [vmem:[#allocation3 + $0x1d8] sm:$0xff]
    %v3776 = vld [vmem:[#allocation3 + $0x1e0] sm:$0xff]
    %v3777 = vld [vmem:[#allocation3 + $0x1e8] sm:$0xff]
    %v3778 = vld [vmem:[#allocation3 + $0x1f0] sm:$0xff]
    %v3779 = vld [vmem:[#allocation3 + $0x1f8] sm:$0xff]
    %v3780 = vld [vmem:[#allocation3 + $0x200] sm:$0xff]
    %v3781 = vld [vmem:[#allocation3 + $0x208] sm:$0xff]
    %v3782 = vld [vmem:[#allocation3 + $0x210] sm:$0xff]
    %v3783 = vld [vmem:[#allocation3 + $0x218] sm:$0xff]
    %v3784 = vld [vmem:[#allocation3 + $0x220] sm:$0xff]
    %v3785 = vld [vmem:[#allocation3 + $0x228] sm:$0xff]
    %v3786 = vld [vmem:[#allocation3 + $0x230] sm:$0xff]
    %v3787 = vld [vmem:[#allocation3 + $0x238] sm:$0xff]
    %v3788 = vld [vmem:[#allocation3 + $0x240] sm:$0xff]
    %v3789 = vld [vmem:[#allocation3 + $0x248] sm:$0xff]
    %v3790 = vld [vmem:[#allocation3 + $0x250] sm:$0xff]
    %v3791 = vld [vmem:[#allocation3 + $0x258] sm:$0xff]
    %v3792 = vld [vmem:[#allocation3 + $0x260] sm:$0xff]
    %v3793 = vld [vmem:[#allocation3 + $0x268] sm:$0xff]
    %v3794 = vld [vmem:[#allocation3 + $0x270] sm:$0xff]
    %v3795 = vld [vmem:[#allocation3 + $0x278] sm:$0xff]
    %v3796 = vld [vmem:[#allocation3 + $0x280] sm:$0xff]
    %v3797 = vld [vmem:[#allocation3 + $0x288] sm:$0xff]
    %v3798 = vld [vmem:[#allocation3 + $0x290] sm:$0xff]
    %v3799 = vld [vmem:[#allocation3 + $0x298] sm:$0xff]
    %v3800 = vld [vmem:[#allocation3 + $0x2a0] sm:$0xff]
    %v3801 = vld [vmem:[#allocation3 + $0x2a8] sm:$0xff]
    %v3802 = vld [vmem:[#allocation3 + $0x2b0] sm:$0xff]
    %v3803 = vld [vmem:[#allocation3 + $0x2b8] sm:$0xff]
    %v3804 = vld [vmem:[#allocation3 + $0x2c0] sm:$0xff]
    %v3805 = vld [vmem:[#allocation3 + $0x2c8] sm:$0xff]
    %v3806 = vld [vmem:[#allocation3 + $0x2d0] sm:$0xff]
    %v3807 = vld [vmem:[#allocation3 + $0x2d8] sm:$0xff]
    %v3808 = vld [vmem:[#allocation3 + $0x2e0] sm:$0xff]
    %v3809 = vld [vmem:[#allocation3 + $0x2e8] sm:$0xff]
    %v3810 = vld [vmem:[#allocation3 + $0x2f0] sm:$0xff]
    %v3811 = vld [vmem:[#allocation3 + $0x2f8] sm:$0xff]
    %v3812 = vld [vmem:[#allocation3 + $0x300] sm:$0xff]
    %v3813 = vld [vmem:[#allocation3 + $0x308] sm:$0xff]
    %v3814 = vld [vmem:[#allocation3 + $0x310] sm:$0xff]
    %v3815 = vld [vmem:[#allocation3 + $0x318] sm:$0xff]
    %v3816 = vld [vmem:[#allocation3 + $0x320] sm:$0xff]
    %v3817 = vld [vmem:[#allocation3 + $0x328] sm:$0xff]
    %v3818 = vld [vmem:[#allocation3 + $0x330] sm:$0xff]
    %v3819 = vld [vmem:[#allocation3 + $0x338] sm:$0xff]
    %v3820 = vld [vmem:[#allocation3 + $0x340] sm:$0xff]
    %v3821 = vld [vmem:[#allocation3 + $0x348] sm:$0xff]
    %v3822 = vld [vmem:[#allocation3 + $0x350] sm:$0xff]
    %v3823 = vld [vmem:[#allocation3 + $0x358] sm:$0xff]
    %v3824 = vld [vmem:[%s6] sm:$0xff]
    %v3825 = vld [vmem:[%s6 + $0x8] sm:$0xff]
    %3827 = vset.pattern.permute.xlu0 0
    %3828 = vperm.xlu0 %3827, %v3824
    %v3829 = vpop.permute.xlu0 %3828
    %3832 = vset.pattern.permute.xlu0 0
    %3833 = vperm.xlu0 %3832, %v3825
    %v3834 = vpop.permute.xlu0 %3833
    %v3837 = vsel %vm1196, %v3713, 0
    %v3840 = vsel %vm1196, %v3715, 0
    %3842 = vmatprep.subr.mxu0 %v3717
    %3843 = vmatpush1.msra.mxu0 %v3716
    %3844 = vmatprep.subr.mxu0 %v3723
    %3845 = vmatpush1.msra.mxu0 %v3722
    %3846 = vmatprep.subr.mxu0 %v3729
    %3847 = vmatpush1.msra.mxu0 %v3728
    %3848 = vmatprep.subr.mxu0 %v3735
    %3849 = vmatpush1.msra.mxu0 %v3734
    %3850 = vmatprep.subr.mxu0 %v3741
    %3851 = vmatpush1.msra.mxu0 %v3740
    %3852 = vmatprep.subr.mxu0 %v3747
    %3853 = vmatpush1.msra.mxu0 %v3746
    %3854 = vmatprep.subr.mxu0 %v3753
    %3855 = vmatpush1.msra.mxu0 %v3752
    %3856 = vmatprep.subr.mxu0 %v3759
    %3857 = vmatpush1.msra.mxu0 %v3758
    %3858 = vmatprep.subr.mxu0 %v3765
    %3859 = vmatpush1.msra.mxu0 %v3764
    %3860 = vmatprep.subr.mxu0 %v3771
    %3861 = vmatpush1.msra.mxu0 %v3770
    %3862 = vmatprep.subr.mxu0 %v3777
    %3863 = vmatpush1.msra.mxu0 %v3776
    %3864 = vmatprep.subr.mxu0 %v3783
    %3865 = vmatpush1.msra.mxu0 %v3782
    %3866 = vmatprep.subr.mxu0 %v3789
    %3867 = vmatpush1.msra.mxu0 %v3788
    %3868 = vmatprep.subr.mxu0 %v3795
    %3869 = vmatpush1.msra.mxu0 %v3794
    %3870 = vmatprep.subr.mxu0 %v3801
    %3871 = vmatpush1.msra.mxu0 %v3800
    %3872 = vmatprep.subr.mxu0 %v3807
    %3873 = vmatpush1.msra.mxu0 %v3806
    %3874 = vmatprep.subr.mxu0 %v3813
    %3875 = vmatpush1.msra.mxu0 %v3812
    %3876 = vmatprep.subr.mxu0 %v3819
    %3877 = vmatpush1.msra.mxu0 %v3818
    %3878 = vmatprep.subr.mxu0 0.0
    %3879 = vmatpush1.msra.mxu0 0.0
    %3880 = vmatprep.subr.mxu0 0.0
    %3881 = vmatpush1.msra.mxu0 0.0
    %3882 = vmatprep.subr.mxu0 0.0
    %3883 = vmatpush1.msra.mxu0 0.0
    %3884 = vmatprep.subr.mxu0 0.0
    %3885 = vmatpush1.msra.mxu0 0.0
    %3886 = vmatprep.subr.mxu0 0.0
    %3887 = vmatpush1.msra.mxu0 0.0
    %3888 = vmatprep.subr.mxu0 0.0
    %3889 = vmatpush1.msra.mxu0 0.0
    %3890 = vmatprep.subr.mxu0 0.0
    %3891 = vmatpush1.msra.mxu0 0.0
    %3892 = vmatprep.subr.mxu0 0.0
    %3893 = vmatpush1.msra.mxu0 0.0
    %3894 = vmatprep.subr.mxu0 0.0
    %3895 = vmatpush1.msra.mxu0 0.0
    %3896 = vmatprep.subr.mxu0 0.0
    %3897 = vmatpush1.msra.mxu0 0.0
    %3898 = vmatprep.subr.mxu0 0.0
    %3899 = vmatpush1.msra.mxu0 0.0
    %3900 = vmatprep.subr.mxu0 0.0
    %3901 = vmatpush1.msra.mxu0 0.0
    %3902 = vmatprep.subr.mxu0 0.0
    %3903 = vmatpush1.msra.mxu0 0.0
    %3904 = vmatprep.subr.mxu0 0.0
    %3905 = vmatpush1.msra.mxu0 0.0
    %3906 = vmatprep.mubr.f32.mxu0 %v3837
    %3907 = vmatmul.mubr.f32.gmra.mrb[0].mxu0 %v3712
    %v3908 = vpop.f32.mrb[0].mxu0
    %v3909 = vadd.f32 %v3829, %v3908
    %v3910 = vpop.f32.mrb[0].mxu0
    %v3911 = vadd.f32 %v3829, %v3910
    %3912 = vmatprep.mubr.f32.mxu0 %v3840
    %3913 = vmatmul.mubr.f32.gmra.mrb[0].mxu0 %v3714
    %v3914 = vpop.f32.mrb[0].mxu0
    %v3915 = vadd.f32 %v3834, %v3914
    %v3916 = vpop.f32.mrb[0].mxu0
    %v3917 = vadd.f32 %v3834, %v3916
    %3918 = vdwg.mxu0
    %3919 = vmatprep.subr.mxu0 %v3719
    %3920 = vmatpush1.msra.mxu0 %v3718
    %3921 = vmatprep.subr.mxu0 %v3725
    %3922 = vmatpush1.msra.mxu0 %v3724
    %3923 = vmatprep.subr.mxu0 %v3731
    %3924 = vmatpush1.msra.mxu0 %v3730
    %3925 = vmatprep.subr.mxu0 %v3737
    %3926 = vmatpush1.msra.mxu0 %v3736
    %3927 = vmatprep.subr.mxu0 %v3743
    %3928 = vmatpush1.msra.mxu0 %v3742
    %3929 = vmatprep.subr.mxu0 %v3749
    %3930 = vmatpush1.msra.mxu0 %v3748
    %3931 = vmatprep.subr.mxu0 %v3755
    %3932 = vmatpush1.msra.mxu0 %v3754
    %3933 = vmatprep.subr.mxu0 %v3761
    %3934 = vmatpush1.msra.mxu0 %v3760
    %3935 = vmatprep.subr.mxu0 %v3767
    %3936 = vmatpush1.msra.mxu0 %v3766
    %3937 = vmatprep.subr.mxu0 %v3773
    %3938 = vmatpush1.msra.mxu0 %v3772
    %3939 = vmatprep.subr.mxu0 %v3779
    %3940 = vmatpush1.msra.mxu0 %v3778
    %3941 = vmatprep.subr.mxu0 %v3785
    %3942 = vmatpush1.msra.mxu0 %v3784
    %3943 = vmatprep.subr.mxu0 %v3791
    %3944 = vmatpush1.msra.mxu0 %v3790
    %3945 = vmatprep.subr.mxu0 %v3797
    %3946 = vmatpush1.msra.mxu0 %v3796
    %3947 = vmatprep.subr.mxu0 %v3803
    %3948 = vmatpush1.msra.mxu0 %v3802
    %3949 = vmatprep.subr.mxu0 %v3809
    %3950 = vmatpush1.msra.mxu0 %v3808
    %3951 = vmatprep.subr.mxu0 %v3815
    %3952 = vmatpush1.msra.mxu0 %v3814
    %3953 = vmatprep.subr.mxu0 %v3821
    %3954 = vmatpush1.msra.mxu0 %v3820
    %3955 = vmatprep.subr.mxu0 0.0
    %3956 = vmatpush1.msra.mxu0 0.0
    %3957 = vmatprep.subr.mxu0 0.0
    %3958 = vmatpush1.msra.mxu0 0.0
    %3959 = vmatprep.subr.mxu0 0.0
    %3960 = vmatpush1.msra.mxu0 0.0
    %3961 = vmatprep.subr.mxu0 0.0
    %3962 = vmatpush1.msra.mxu0 0.0
    %3963 = vmatprep.subr.mxu0 0.0
    %3964 = vmatpush1.msra.mxu0 0.0
    %3965 = vmatprep.subr.mxu0 0.0
    %3966 = vmatpush1.msra.mxu0 0.0
    %3967 = vmatprep.subr.mxu0 0.0
    %3968 = vmatpush1.msra.mxu0 0.0
    %3969 = vmatprep.subr.mxu0 0.0
    %3970 = vmatpush1.msra.mxu0 0.0
    %3971 = vmatprep.subr.mxu0 0.0
    %3972 = vmatpush1.msra.mxu0 0.0
    %3973 = vmatprep.subr.mxu0 0.0
    %3974 = vmatpush1.msra.mxu0 0.0
    %3975 = vmatprep.subr.mxu0 0.0
    %3976 = vmatpush1.msra.mxu0 0.0
    %3977 = vmatprep.subr.mxu0 0.0
    %3978 = vmatpush1.msra.mxu0 0.0
    %3979 = vmatprep.subr.mxu0 0.0
    %3980 = vmatpush1.msra.mxu0 0.0
    %3981 = vmatprep.subr.mxu0 0.0
    %3982 = vmatpush1.msra.mxu0 0.0
    %3983 = vmatprep.mubr.f32.mxu0 %v3837
    %3984 = vmatmul.mubr.f32.gmra.mrb[0].mxu0 %v3712
    %v3985 = vpop.f32.mrb[0].mxu0
    %v3986 = vadd.f32 %v3829, %v3985
    %v3987 = vpop.f32.mrb[0].mxu0
    %v3988 = vadd.f32 %v3829, %v3987
    %3989 = vmatprep.mubr.f32.mxu0 %v3840
    %3990 = vmatmul.mubr.f32.gmra.mrb[0].mxu0 %v3714
    %v3991 = vpop.f32.mrb[0].mxu0
    %v3992 = vadd.f32 %v3834, %v3991
    %v3993 = vpop.f32.mrb[0].mxu0
    %v3994 = vadd.f32 %v3834, %v3993
    %3995 = vdwg.mxu0
    %3996 = vmatprep.subr.mxu0 %v3721
    %3997 = vmatpush1.msra.mxu0 %v3720
    %3998 = vmatprep.subr.mxu0 %v3727
    %3999 = vmatpush1.msra.mxu0 %v3726
    %4000 = vmatprep.subr.mxu0 %v3733
    %4001 = vmatpush1.msra.mxu0 %v3732
    %4002 = vmatprep.subr.mxu0 %v3739
    %4003 = vmatpush1.msra.mxu0 %v3738
    %4004 = vmatprep.subr.mxu0 %v3745
    %4005 = vmatpush1.msra.mxu0 %v3744
    %4006 = vmatprep.subr.mxu0 %v3751
    %4007 = vmatpush1.msra.mxu0 %v3750
    %4008 = vmatprep.subr.mxu0 %v3757
    %4009 = vmatpush1.msra.mxu0 %v3756
    %4010 = vmatprep.subr.mxu0 %v3763
    %4011 = vmatpush1.msra.mxu0 %v3762
    %4012 = vmatprep.subr.mxu0 %v3769
    %4013 = vmatpush1.msra.mxu0 %v3768
    %4014 = vmatprep.subr.mxu0 %v3775
    %4015 = vmatpush1.msra.mxu0 %v3774
    %4016 = vmatprep.subr.mxu0 %v3781
    %4017 = vmatpush1.msra.mxu0 %v3780
    %4018 = vmatprep.subr.mxu0 %v3787
    %4019 = vmatpush1.msra.mxu0 %v3786
    %4020 = vmatprep.subr.mxu0 %v3793
    %4021 = vmatpush1.msra.mxu0 %v3792
    %4022 = vmatprep.subr.mxu0 %v3799
    %4023 = vmatpush1.msra.mxu0 %v3798
    %4024 = vmatprep.subr.mxu0 %v3805
    %4025 = vmatpush1.msra.mxu0 %v3804
    %4026 = vmatprep.subr.mxu0 %v3811
    %4027 = vmatpush1.msra.mxu0 %v3810
    %4028 = vmatprep.subr.mxu0 %v3817
    %4029 = vmatpush1.msra.mxu0 %v3816
    %4030 = vmatprep.subr.mxu0 %v3823
    %4031 = vmatpush1.msra.mxu0 %v3822
    %4032 = vmatprep.subr.mxu0 0.0
    %4033 = vmatpush1.msra.mxu0 0.0
    %4034 = vmatprep.subr.mxu0 0.0
    %4035 = vmatpush1.msra.mxu0 0.0
    %4036 = vmatprep.subr.mxu0 0.0
    %4037 = vmatpush1.msra.mxu0 0.0
    %4038 = vmatprep.subr.mxu0 0.0
    %4039 = vmatpush1.msra.mxu0 0.0
    %4040 = vmatprep.subr.mxu0 0.0
    %4041 = vmatpush1.msra.mxu0 0.0
    %4042 = vmatprep.subr.mxu0 0.0
    %4043 = vmatpush1.msra.mxu0 0.0
    %4044 = vmatprep.subr.mxu0 0.0
    %4045 = vmatpush1.msra.mxu0 0.0
    %4046 = vmatprep.subr.mxu0 0.0
    %4047 = vmatpush1.msra.mxu0 0.0
    %4048 = vmatprep.subr.mxu0 0.0
    %4049 = vmatpush1.msra.mxu0 0.0
    %4050 = vmatprep.subr.mxu0 0.0
    %4051 = vmatpush1.msra.mxu0 0.0
    %4052 = vmatprep.subr.mxu0 0.0
    %4053 = vmatpush1.msra.mxu0 0.0
    %4054 = vmatprep.subr.mxu0 0.0
    %4055 = vmatpush1.msra.mxu0 0.0
    %4056 = vmatprep.subr.mxu0 0.0
    %4057 = vmatpush1.msra.mxu0 0.0
    %4058 = vmatprep.subr.mxu0 0.0
    %4059 = vmatpush1.msra.mxu0 0.0
    %4060 = vmatprep.mubr.f32.mxu0 %v3837
    %4061 = vmatmul.mubr.f32.gmra.mrb[0].mxu0 %v3712
    %v4062 = vpop.f32.mrb[0].mxu0
    %v4063 = vadd.f32 %v3829, %v4062
    %v4064 = vpop.f32.mrb[0].mxu0
    %v4065 = vadd.f32 %v3829, %v4064
    %4066 = vmatprep.mubr.f32.mxu0 %v3840
    %4067 = vmatmul.mubr.f32.gmra.mrb[0].mxu0 %v3714
    %v4068 = vpop.f32.mrb[0].mxu0
    %v4069 = vadd.f32 %v3834, %v4068
    %v4070 = vpop.f32.mrb[0].mxu0
    %v4071 = vadd.f32 %v3834, %v4070
    %4072 = vdwg.mxu0
    %s4073 = scalar_lea.vmem %s7, 2
    %v4074 = vld [vmem:[%s4073] ss:$4 sm:$0x3f]
    %v4076 = vlaneseq
    %v4077 = vshrl.u32 %v4076, 7
    %v4078 = vsub.s32 0, %v4077
    %v4079 = vrot.slane %v4074, %v4078
    %v4080 = vlaneseq
    %v4081 = vshrl.u32 %v4080, 7
    %v4082 = vsub.s32 1, %v4081
    %v4083 = vrot.slane %v4074, %v4082
    %v4084 = vlaneseq
    %v4085 = vshrl.u32 %v4084, 7
    %v4086 = vsub.s32 2, %v4085
    %v4087 = vrot.slane %v4074, %v4086
    %v4088 = vlaneseq
    %v4089 = vshrl.u32 %v4088, 7
    %v4090 = vsub.s32 3, %v4089
    %v4091 = vrot.slane %v4074, %v4090
    %v4092 = vlaneseq
    %v4093 = vshrl.u32 %v4092, 7
    %v4094 = vsub.s32 4, %v4093
    %v4095 = vrot.slane %v4074, %v4094
    %v4096 = vlaneseq
    %v4097 = vshrl.u32 %v4096, 7
    %v4098 = vsub.s32 5, %v4097
    %v4099 = vrot.slane %v4074, %v4098
    %v4106 = vmul.f32 %v3909, %v4079
    %v4107 = vmul.f32 %v3911, %v4083
    %v4108 = vmul.f32 %v3986, %v4087
    %v4109 = vmul.f32 %v3988, %v4091
    %v4110 = vmul.f32 %v4063, %v4095
    %v4111 = vmul.f32 %v4065, %v4099
    %v4112 = vmul.f32 %v3915, %v4079
    %v4113 = vmul.f32 %v3917, %v4083
    %v4114 = vmul.f32 %v3992, %v4087
    %v4115 = vmul.f32 %v3994, %v4091
    %v4116 = vmul.f32 %v4069, %v4095
    %v4117 = vmul.f32 %v4071, %v4099
    %v4118 = vmul.f32 %v4106, %v3909
    %v4119 = vmul.f32 %v4107, %v3911
    %v4120 = vmul.f32 %v4108, %v3986
    %v4121 = vmul.f32 %v4109, %v3988
    %v4122 = vmul.f32 %v4110, %v4063
    %v4123 = vmul.f32 %v4111, %v4065
    %v4124 = vmul.f32 %v4112, %v3915
    %v4125 = vmul.f32 %v4113, %v3917
    %v4126 = vmul.f32 %v4114, %v3992
    %v4127 = vmul.f32 %v4115, %v3994
    %v4128 = vmul.f32 %v4116, %v4069
    %v4129 = vmul.f32 %v4117, %v4071
    %v4130 = vadd.f32 %v4106, %v4107
    %v4131 = vadd.f32 %v4130, %v4108
    %v4132 = vadd.f32 %v4131, %v4109
    %v4133 = vadd.f32 %v4132, %v4110
    %v4134 = vadd.f32 %v4133, %v4111
    %4135 = vadd.xlane.f32.xlu0 %v4134
    %v4136 = vpop.xlane.xlu0 %4135
    %v4137 = vadd.f32 %v4112, %v4113
    %v4138 = vadd.f32 %v4137, %v4114
    %v4139 = vadd.f32 %v4138, %v4115
    %v4140 = vadd.f32 %v4139, %v4116
    %v4141 = vadd.f32 %v4140, %v4117
    %4142 = vadd.xlane.f32.xlu0 %v4141
    %v4143 = vpop.xlane.xlu0 %4142
    %v4144 = vadd.f32 %v4118, %v4119
    %v4145 = vadd.f32 %v4144, %v4120
    %v4146 = vadd.f32 %v4145, %v4121
    %v4147 = vadd.f32 %v4146, %v4122
    %v4148 = vadd.f32 %v4147, %v4123
    %4149 = vadd.xlane.f32.xlu0 %v4148
    %v4150 = vpop.xlane.xlu0 %4149
    %v4151 = vadd.f32 %v4124, %v4125
    %v4152 = vadd.f32 %v4151, %v4126
    %v4153 = vadd.f32 %v4152, %v4127
    %v4154 = vadd.f32 %v4153, %v4128
    %v4155 = vadd.f32 %v4154, %v4129
    %4156 = vadd.xlane.f32.xlu0 %v4155
    %v4157 = vpop.xlane.xlu0 %4156
    %v4158 = vmul.f32 %v4136, 0.0022222223
    %v4159 = vmul.f32 %v4143, 0.0022222223
    %v4160 = vmul.f32 %v4150, 0.0022222223
    %v4161 = vmul.f32 %v4157, 0.0022222223
    %v4162 = vmul.f32 %v4158, %v4158
    %v4163 = vmul.f32 %v4159, %v4159
    %v4164 = vsub.f32 %v4160, %v4162
    %v4165 = vsub.f32 %v4161, %v4163
    %v4166 = vmax.f32 %v4164, 0.0
    %v4167 = vmax.f32 %v4165, 0.0
    %v4168 = vsub.f32 %v3909, %v4158
    %v4169 = vsub.f32 %v3911, %v4158
    %v4170 = vsub.f32 %v3986, %v4158
    %v4171 = vsub.f32 %v3988, %v4158
    %v4172 = vsub.f32 %v4063, %v4158
    %v4173 = vsub.f32 %v4065, %v4158
    %v4174 = vsub.f32 %v3915, %v4159
    %v4175 = vsub.f32 %v3917, %v4159
    %v4176 = vsub.f32 %v3992, %v4159
    %v4177 = vsub.f32 %v3994, %v4159
    %v4178 = vsub.f32 %v4069, %v4159
    %v4179 = vsub.f32 %v4071, %v4159
    %v4180 = vadd.f32 %v4166, 1e-05
    %v4181 = vadd.f32 %v4167, 1e-05
    %v4182 = vrsqrt.pop %v4180
    %v4183 = vrsqrt.pop %v4181
    %v4184 = vmul.f32 %v4168, %v4182
    %v4185 = vmul.f32 %v4169, %v4182
    %v4186 = vmul.f32 %v4170, %v4182
    %v4187 = vmul.f32 %v4171, %v4182
    %v4188 = vmul.f32 %v4172, %v4182
    %v4189 = vmul.f32 %v4173, %v4182
    %v4190 = vmul.f32 %v4174, %v4183
    %v4191 = vmul.f32 %v4175, %v4183
    %v4192 = vmul.f32 %v4176, %v4183
    %v4193 = vmul.f32 %v4177, %v4183
    %v4194 = vmul.f32 %v4178, %v4183
    %v4195 = vmul.f32 %v4179, %v4183
    %4196 = vset.pattern.permute.xlu0 1
    %4197 = vperm.xlu0 %4196, %v3824
    %v4198 = vpop.permute.xlu0 %4197
    %4200 = vset.pattern.permute.xlu0 1
    %4201 = vperm.xlu0 %4200, %v3825
    %v4202 = vpop.permute.xlu0 %4201
    %v4204 = vmul.f32 %v4184, %v4198
    %v4205 = vmul.f32 %v4185, %v4198
    %v4206 = vmul.f32 %v4186, %v4198
    %v4207 = vmul.f32 %v4187, %v4198
    %v4208 = vmul.f32 %v4188, %v4198
    %v4209 = vmul.f32 %v4189, %v4198
    %v4210 = vmul.f32 %v4190, %v4202
    %v4211 = vmul.f32 %v4191, %v4202
    %v4212 = vmul.f32 %v4192, %v4202
    %v4213 = vmul.f32 %v4193, %v4202
    %v4214 = vmul.f32 %v4194, %v4202
    %v4215 = vmul.f32 %v4195, %v4202
    %4216 = vset.pattern.permute.xlu0 2
    %4217 = vperm.xlu0 %4216, %v3824
    %v4218 = vpop.permute.xlu0 %4217
    %4220 = vset.pattern.permute.xlu0 2
    %4221 = vperm.xlu0 %4220, %v3825
    %v4222 = vpop.permute.xlu0 %4221
    %v4224 = vadd.f32 %v4204, %v4218
    %v4225 = vadd.f32 %v4205, %v4218
    %v4226 = vadd.f32 %v4206, %v4218
    %v4227 = vadd.f32 %v4207, %v4218
    %v4228 = vadd.f32 %v4208, %v4218
    %v4229 = vadd.f32 %v4209, %v4218
    %v4230 = vadd.f32 %v4210, %v4222
    %v4231 = vadd.f32 %v4211, %v4222
    %v4232 = vadd.f32 %v4212, %v4222
    %v4233 = vadd.f32 %v4213, %v4222
    %v4234 = vadd.f32 %v4214, %v4222
    %v4235 = vadd.f32 %v4215, %v4222
    %v4236 = vmax.f32 %v4224, 0.0
    %v4237 = vmax.f32 %v4225, 0.0
    %v4238 = vmax.f32 %v4226, 0.0
    %v4239 = vmax.f32 %v4227, 0.0
    %v4240 = vmax.f32 %v4228, 0.0
    %v4241 = vmax.f32 %v4229, 0.0
    %v4242 = vmax.f32 %v4230, 0.0
    %v4243 = vmax.f32 %v4231, 0.0
    %v4244 = vmax.f32 %v4232, 0.0
    %v4245 = vmax.f32 %v4233, 0.0
    %v4246 = vmax.f32 %v4234, 0.0
    %v4247 = vmax.f32 %v4235, 0.0
    %v4248 = vmul.f32 %v4236, %v4079
    %v4249 = vmul.f32 %v4237, %v4083
    %v4250 = vmul.f32 %v4238, %v4087
    %v4251 = vmul.f32 %v4239, %v4091
    %v4252 = vmul.f32 %v4240, %v4095
    %v4253 = vmul.f32 %v4241, %v4099
    %v4254 = vmul.f32 %v4242, %v4079
    %v4255 = vmul.f32 %v4243, %v4083
    %v4256 = vmul.f32 %v4244, %v4087
    %v4257 = vmul.f32 %v4245, %v4091
    %v4258 = vmul.f32 %v4246, %v4095
    %v4259 = vmul.f32 %v4247, %v4099
    %v4260 = vld [vmem:[%s8] sm:$0xff]
    %v4261 = vld [vmem:[%s8 + $0x8] sm:$0xff]
    %v4262 = vld [vmem:[%s8 + $0x10] sm:$0xff]
    %v4263 = vld [vmem:[%s8 + $0x18] sm:$0xff]
    %v4264 = vld [vmem:[%s8 + $0x20] sm:$0xff]
    %v4265 = vld [vmem:[%s8 + $0x28] sm:$0xff]
    %v4266 = vld [vmem:[%s8 + $0x30] sm:$0xff]
    %v4267 = vld [vmem:[%s8 + $0x38] sm:$0xff]
    %v4268 = vld [vmem:[%s8 + $0x40] sm:$0xff]
    %v4269 = vld [vmem:[%s8 + $0x48] sm:$0xff]
    %v4270 = vld [vmem:[%s8 + $0x50] sm:$0xff]
    %v4271 = vld [vmem:[%s8 + $0x58] sm:$0xff]
    %v4272 = vmul.f32 %v4248, %v4260
    %v4273 = vmul.f32 %v4249, %v4261
    %v4274 = vmul.f32 %v4250, %v4262
    %v4275 = vmul.f32 %v4251, %v4263
    %v4276 = vmul.f32 %v4252, %v4264
    %v4277 = vmul.f32 %v4253, %v4265
    %v4278 = vmul.f32 %v4254, %v4266
    %v4279 = vmul.f32 %v4255, %v4267
    %v4280 = vmul.f32 %v4256, %v4268
    %v4281 = vmul.f32 %v4257, %v4269
    %v4282 = vmul.f32 %v4258, %v4270
    %v4283 = vmul.f32 %v4259, %v4271
    %v4284 = vld [vmem:[#allocation5] sm:$0xff]
    %v4285 = vld [vmem:[#allocation5 + $0x8] sm:$0xff]
    %v4286 = vld [vmem:[#allocation5 + $0x10] sm:$0xff]
    %v4287 = vld [vmem:[#allocation5 + $0x18] sm:$0xff]
    %v4288 = vld [vmem:[#allocation5 + $0x20] sm:$0xff]
    %v4289 = vld [vmem:[#allocation5 + $0x28] sm:$0xff]
    %v4290 = vld [vmem:[#allocation5 + $0x30] sm:$0xff]
    %v4291 = vld [vmem:[#allocation5 + $0x38] sm:$0xff]
    %v4292 = vld [vmem:[#allocation5 + $0x40] sm:$0xff]
    %v4293 = vld [vmem:[#allocation5 + $0x48] sm:$0xff]
    %v4294 = vld [vmem:[#allocation5 + $0x50] sm:$0xff]
    %v4295 = vld [vmem:[#allocation5 + $0x58] sm:$0xff]
    %v4296 = vld [vmem:[#allocation5 + $0x60] sm:$0xff]
    %v4297 = vld [vmem:[#allocation5 + $0x68] sm:$0xff]
    %v4298 = vld [vmem:[#allocation5 + $0x70] sm:$0xff]
    %v4299 = vld [vmem:[#allocation5 + $0x78] sm:$0xff]
    %v4300 = vld [vmem:[#allocation5 + $0x80] sm:$0xff]
    %v4301 = vld [vmem:[#allocation5 + $0x88] sm:$0xff]
    %v4302 = vld [vmem:[#allocation5 + $0x90] sm:$0xff]
    %v4303 = vld [vmem:[#allocation5 + $0x98] sm:$0xff]
    %v4304 = vld [vmem:[#allocation5 + $0xa0] sm:$0xff]
    %v4305 = vld [vmem:[#allocation5 + $0xa8] sm:$0xff]
    %v4306 = vld [vmem:[#allocation5 + $0xb0] sm:$0xff]
    %v4307 = vld [vmem:[#allocation5 + $0xb8] sm:$0xff]
    %v4308 = vld [vmem:[#allocation5 + $0xc0] sm:$0xff]
    %v4309 = vld [vmem:[#allocation5 + $0xc8] sm:$0xff]
    %v4310 = vld [vmem:[#allocation5 + $0xd0] sm:$0xff]
    %v4311 = vld [vmem:[#allocation5 + $0xd8] sm:$0xff]
    %v4312 = vld [vmem:[#allocation5 + $0xe0] sm:$0xff]
    %v4313 = vld [vmem:[#allocation5 + $0xe8] sm:$0xff]
    %v4314 = vld [vmem:[#allocation5 + $0xf0] sm:$0xff]
    %v4315 = vld [vmem:[#allocation5 + $0xf8] sm:$0xff]
    %v4316 = vld [vmem:[#allocation5 + $0x100] sm:$0xff]
    %v4317 = vld [vmem:[#allocation5 + $0x108] sm:$0xff]
    %v4318 = vld [vmem:[#allocation5 + $0x110] sm:$0xff]
    %v4319 = vld [vmem:[#allocation5 + $0x118] sm:$0xff]
    %v4320 = vld [vmem:[#allocation5 + $0x120] sm:$0xff]
    %v4321 = vld [vmem:[#allocation5 + $0x128] sm:$0xff]
    %v4322 = vld [vmem:[#allocation5 + $0x130] sm:$0xff]
    %v4323 = vld [vmem:[#allocation5 + $0x138] sm:$0xff]
    %v4324 = vld [vmem:[#allocation5 + $0x140] sm:$0xff]
    %v4325 = vld [vmem:[#allocation5 + $0x148] sm:$0xff]
    %v4326 = vld [vmem:[#allocation5 + $0x150] sm:$0xff]
    %v4327 = vld [vmem:[#allocation5 + $0x158] sm:$0xff]
    %v4328 = vld [vmem:[#allocation5 + $0x160] sm:$0xff]
    %v4329 = vld [vmem:[#allocation5 + $0x168] sm:$0xff]
    %v4330 = vld [vmem:[#allocation5 + $0x170] sm:$0xff]
    %v4331 = vld [vmem:[#allocation5 + $0x178] sm:$0xff]
    %v4332 = vld [vmem:[#allocation5 + $0x180] sm:$0xff]
    %v4333 = vld [vmem:[#allocation5 + $0x188] sm:$0xff]
    %v4334 = vld [vmem:[#allocation5 + $0x190] sm:$0xff]
    %v4335 = vld [vmem:[#allocation5 + $0x198] sm:$0xff]
    %v4336 = vld [vmem:[#allocation5 + $0x1a0] sm:$0xff]
    %v4337 = vld [vmem:[#allocation5 + $0x1a8] sm:$0xff]
    %v4338 = vld [vmem:[#allocation5 + $0x1b0] sm:$0xff]
    %v4339 = vld [vmem:[#allocation5 + $0x1b8] sm:$0xff]
    %v4340 = vld [vmem:[#allocation5 + $0x1c0] sm:$0xff]
    %v4341 = vld [vmem:[#allocation5 + $0x1c8] sm:$0xff]
    %v4342 = vld [vmem:[#allocation5 + $0x1d0] sm:$0xff]
    %v4343 = vld [vmem:[#allocation5 + $0x1d8] sm:$0xff]
    %v4344 = vld [vmem:[#allocation5 + $0x1e0] sm:$0xff]
    %v4345 = vld [vmem:[#allocation5 + $0x1e8] sm:$0xff]
    %v4346 = vld [vmem:[#allocation5 + $0x1f0] sm:$0xff]
    %v4347 = vld [vmem:[#allocation5 + $0x1f8] sm:$0xff]
    %v4348 = vld [vmem:[#allocation5 + $0x200] sm:$0xff]
    %v4349 = vld [vmem:[#allocation5 + $0x208] sm:$0xff]
    %v4350 = vld [vmem:[#allocation5 + $0x210] sm:$0xff]
    %v4351 = vld [vmem:[#allocation5 + $0x218] sm:$0xff]
    %v4352 = vld [vmem:[#allocation5 + $0x220] sm:$0xff]
    %v4353 = vld [vmem:[#allocation5 + $0x228] sm:$0xff]
    %v4354 = vld [vmem:[#allocation5 + $0x230] sm:$0xff]
    %v4355 = vld [vmem:[#allocation5 + $0x238] sm:$0xff]
    %v4356 = vld [vmem:[#allocation5 + $0x240] sm:$0xff]
    %v4357 = vld [vmem:[#allocation5 + $0x248] sm:$0xff]
    %v4358 = vld [vmem:[#allocation5 + $0x250] sm:$0xff]
    %v4359 = vld [vmem:[#allocation5 + $0x258] sm:$0xff]
    %v4360 = vld [vmem:[#allocation5 + $0x260] sm:$0xff]
    %v4361 = vld [vmem:[#allocation5 + $0x268] sm:$0xff]
    %v4362 = vld [vmem:[#allocation5 + $0x270] sm:$0xff]
    %v4363 = vld [vmem:[#allocation5 + $0x278] sm:$0xff]
    %v4364 = vld [vmem:[#allocation5 + $0x280] sm:$0xff]
    %v4365 = vld [vmem:[#allocation5 + $0x288] sm:$0xff]
    %v4366 = vld [vmem:[#allocation5 + $0x290] sm:$0xff]
    %v4367 = vld [vmem:[#allocation5 + $0x298] sm:$0xff]
    %v4368 = vld [vmem:[#allocation5 + $0x2a0] sm:$0xff]
    %v4369 = vld [vmem:[#allocation5 + $0x2a8] sm:$0xff]
    %v4370 = vld [vmem:[#allocation5 + $0x2b0] sm:$0xff]
    %v4371 = vld [vmem:[#allocation5 + $0x2b8] sm:$0xff]
    %v4372 = vld [vmem:[#allocation5 + $0x2c0] sm:$0xff]
    %v4373 = vld [vmem:[#allocation5 + $0x2c8] sm:$0xff]
    %v4374 = vld [vmem:[#allocation5 + $0x2d0] sm:$0xff]
    %v4375 = vld [vmem:[#allocation5 + $0x2d8] sm:$0xff]
    %v4376 = vld [vmem:[#allocation5 + $0x2e0] sm:$0xff]
    %v4377 = vld [vmem:[#allocation5 + $0x2e8] sm:$0xff]
    %v4378 = vld [vmem:[#allocation5 + $0x2f0] sm:$0xff]
    %v4379 = vld [vmem:[#allocation5 + $0x2f8] sm:$0xff]
    %4380 = vmatprep.subr.mxu0 0.0
    %4381 = vmatpush1.msra.mxu0 %v4284
    %4382 = vmatprep.subr.mxu0 0.0
    %4383 = vmatpush1.msra.mxu0 %v4285
    %4384 = vmatprep.subr.mxu0 0.0
    %4385 = vmatpush1.msra.mxu0 %v4286
    %4386 = vmatprep.subr.mxu0 0.0
    %4387 = vmatpush1.msra.mxu0 %v4287
    %4388 = vmatprep.subr.mxu0 0.0
    %4389 = vmatpush1.msra.mxu0 %v4288
    %4390 = vmatprep.subr.mxu0 0.0
    %4391 = vmatpush1.msra.mxu0 %v4289
    %4392 = vmatprep.subr.mxu0 0.0
    %4393 = vmatpush1.msra.mxu0 %v4290
    %4394 = vmatprep.subr.mxu0 0.0
    %4395 = vmatpush1.msra.mxu0 %v4291
    %4396 = vmatprep.subr.mxu0 0.0
    %4397 = vmatpush1.msra.mxu0 %v4292
    %4398 = vmatprep.subr.mxu0 0.0
    %4399 = vmatpush1.msra.mxu0 %v4293
    %4400 = vmatprep.subr.mxu0 0.0
    %4401 = vmatpush1.msra.mxu0 %v4294
    %4402 = vmatprep.subr.mxu0 0.0
    %4403 = vmatpush1.msra.mxu0 %v4295
    %4404 = vmatprep.subr.mxu0 0.0
    %4405 = vmatpush1.msra.mxu0 %v4296
    %4406 = vmatprep.subr.mxu0 0.0
    %4407 = vmatpush1.msra.mxu0 %v4297
    %4408 = vmatprep.subr.mxu0 0.0
    %4409 = vmatpush1.msra.mxu0 %v4298
    %4410 = vmatprep.subr.mxu0 0.0
    %4411 = vmatpush1.msra.mxu0 %v4299
    %4412 = vmatprep.subr.mxu0 0.0
    %4413 = vmatpush1.msra.mxu0 %v4300
    %4414 = vmatprep.subr.mxu0 0.0
    %4415 = vmatpush1.msra.mxu0 %v4301
    %4416 = vmatprep.subr.mxu0 0.0
    %4417 = vmatpush1.msra.mxu0 %v4302
    %4418 = vmatprep.subr.mxu0 0.0
    %4419 = vmatpush1.msra.mxu0 %v4303
    %4420 = vmatprep.subr.mxu0 0.0
    %4421 = vmatpush1.msra.mxu0 %v4304
    %4422 = vmatprep.subr.mxu0 0.0
    %4423 = vmatpush1.msra.mxu0 %v4305
    %4424 = vmatprep.subr.mxu0 0.0
    %4425 = vmatpush1.msra.mxu0 %v4306
    %4426 = vmatprep.subr.mxu0 0.0
    %4427 = vmatpush1.msra.mxu0 %v4307
    %4428 = vmatprep.subr.mxu0 0.0
    %4429 = vmatpush1.msra.mxu0 %v4308
    %4430 = vmatprep.subr.mxu0 0.0
    %4431 = vmatpush1.msra.mxu0 %v4309
    %4432 = vmatprep.subr.mxu0 0.0
    %4433 = vmatpush1.msra.mxu0 %v4310
    %4434 = vmatprep.subr.mxu0 0.0
    %4435 = vmatpush1.msra.mxu0 %v4311
    %4436 = vmatprep.subr.mxu0 0.0
    %4437 = vmatpush1.msra.mxu0 %v4312
    %4438 = vmatprep.subr.mxu0 0.0
    %4439 = vmatpush1.msra.mxu0 %v4313
    %4440 = vmatprep.subr.mxu0 0.0
    %4441 = vmatpush1.msra.mxu0 %v4314
    %4442 = vmatprep.subr.mxu0 0.0
    %4443 = vmatpush1.msra.mxu0 %v4315
    %4444 = vmatprep.mubr.f32.mxu0 %v4273
    %4445 = vmatmul.mubr.f32.gmra.mrb[0].mxu0 %v4272
    %v4446 = vpop.f32.mrb[0].mxu0
    %v4447 = vadd.f32 0.0, %v4446
    %v4448 = vpop.f32.mrb[0].mxu0
    %4449 = vmatprep.mubr.f32.mxu0 %v4279
    %4450 = vmatmul.mubr.f32.gmra.mrb[0].mxu0 %v4278
    %v4451 = vpop.f32.mrb[0].mxu0
    %v4452 = vadd.f32 0.0, %v4451
    %v4453 = vpop.f32.mrb[0].mxu0
    %4454 = vdwg.mxu0
    %4455 = vmatprep.subr.mxu0 0.0
    %4456 = vmatpush1.msra.mxu0 %v4316
    %4457 = vmatprep.subr.mxu0 0.0
    %4458 = vmatpush1.msra.mxu0 %v4317
    %4459 = vmatprep.subr.mxu0 0.0
    %4460 = vmatpush1.msra.mxu0 %v4318
    %4461 = vmatprep.subr.mxu0 0.0
    %4462 = vmatpush1.msra.mxu0 %v4319
    %4463 = vmatprep.subr.mxu0 0.0
    %4464 = vmatpush1.msra.mxu0 %v4320
    %4465 = vmatprep.subr.mxu0 0.0
    %4466 = vmatpush1.msra.mxu0 %v4321
    %4467 = vmatprep.subr.mxu0 0.0
    %4468 = vmatpush1.msra.mxu0 %v4322
    %4469 = vmatprep.subr.mxu0 0.0
    %4470 = vmatpush1.msra.mxu0 %v4323
    %4471 = vmatprep.subr.mxu0 0.0
    %4472 = vmatpush1.msra.mxu0 %v4324
    %4473 = vmatprep.subr.mxu0 0.0
    %4474 = vmatpush1.msra.mxu0 %v4325
    %4475 = vmatprep.subr.mxu0 0.0
    %4476 = vmatpush1.msra.mxu0 %v4326
    %4477 = vmatprep.subr.mxu0 0.0
    %4478 = vmatpush1.msra.mxu0 %v4327
    %4479 = vmatprep.subr.mxu0 0.0
    %4480 = vmatpush1.msra.mxu0 %v4328
    %4481 = vmatprep.subr.mxu0 0.0
    %4482 = vmatpush1.msra.mxu0 %v4329
    %4483 = vmatprep.subr.mxu0 0.0
    %4484 = vmatpush1.msra.mxu0 %v4330
    %4485 = vmatprep.subr.mxu0 0.0
    %4486 = vmatpush1.msra.mxu0 %v4331
    %4487 = vmatprep.subr.mxu0 0.0
    %4488 = vmatpush1.msra.mxu0 %v4332
    %4489 = vmatprep.subr.mxu0 0.0
    %4490 = vmatpush1.msra.mxu0 %v4333
    %4491 = vmatprep.subr.mxu0 0.0
    %4492 = vmatpush1.msra.mxu0 %v4334
    %4493 = vmatprep.subr.mxu0 0.0
    %4494 = vmatpush1.msra.mxu0 %v4335
    %4495 = vmatprep.subr.mxu0 0.0
    %4496 = vmatpush1.msra.mxu0 %v4336
    %4497 = vmatprep.subr.mxu0 0.0
    %4498 = vmatpush1.msra.mxu0 %v4337
    %4499 = vmatprep.subr.mxu0 0.0
    %4500 = vmatpush1.msra.mxu0 %v4338
    %4501 = vmatprep.subr.mxu0 0.0
    %4502 = vmatpush1.msra.mxu0 %v4339
    %4503 = vmatprep.subr.mxu0 0.0
    %4504 = vmatpush1.msra.mxu0 %v4340
    %4505 = vmatprep.subr.mxu0 0.0
    %4506 = vmatpush1.msra.mxu0 %v4341
    %4507 = vmatprep.subr.mxu0 0.0
    %4508 = vmatpush1.msra.mxu0 %v4342
    %4509 = vmatprep.subr.mxu0 0.0
    %4510 = vmatpush1.msra.mxu0 %v4343
    %4511 = vmatprep.subr.mxu0 0.0
    %4512 = vmatpush1.msra.mxu0 %v4344
    %4513 = vmatprep.subr.mxu0 0.0
    %4514 = vmatpush1.msra.mxu0 %v4345
    %4515 = vmatprep.subr.mxu0 0.0
    %4516 = vmatpush1.msra.mxu0 %v4346
    %4517 = vmatprep.subr.mxu0 0.0
    %4518 = vmatpush1.msra.mxu0 %v4347
    %4519 = vmatprep.mubr.f32.mxu0 %v4275
    %4520 = vmatmul.mubr.f32.gmra.mrb[0].mxu0 %v4274
    %v4521 = vpop.f32.mrb[0].mxu0
    %v4522 = vadd.f32 %v4447, %v4521
    %v4523 = vpop.f32.mrb[0].mxu0
    %4524 = vmatprep.mubr.f32.mxu0 %v4281
    %4525 = vmatmul.mubr.f32.gmra.mrb[0].mxu0 %v4280
    %v4526 = vpop.f32.mrb[0].mxu0
    %v4527 = vadd.f32 %v4452, %v4526
    %v4528 = vpop.f32.mrb[0].mxu0
    %4529 = vdwg.mxu0
    %4530 = vmatprep.subr.mxu0 0.0
    %4531 = vmatpush1.msra.mxu0 %v4348
    %4532 = vmatprep.subr.mxu0 0.0
    %4533 = vmatpush1.msra.mxu0 %v4349
    %4534 = vmatprep.subr.mxu0 0.0
    %4535 = vmatpush1.msra.mxu0 %v4350
    %4536 = vmatprep.subr.mxu0 0.0
    %4537 = vmatpush1.msra.mxu0 %v4351
    %4538 = vmatprep.subr.mxu0 0.0
    %4539 = vmatpush1.msra.mxu0 %v4352
    %4540 = vmatprep.subr.mxu0 0.0
    %4541 = vmatpush1.msra.mxu0 %v4353
    %4542 = vmatprep.subr.mxu0 0.0
    %4543 = vmatpush1.msra.mxu0 %v4354
    %4544 = vmatprep.subr.mxu0 0.0
    %4545 = vmatpush1.msra.mxu0 %v4355
    %4546 = vmatprep.subr.mxu0 0.0
    %4547 = vmatpush1.msra.mxu0 %v4356
    %4548 = vmatprep.subr.mxu0 0.0
    %4549 = vmatpush1.msra.mxu0 %v4357
    %4550 = vmatprep.subr.mxu0 0.0
    %4551 = vmatpush1.msra.mxu0 %v4358
    %4552 = vmatprep.subr.mxu0 0.0
    %4553 = vmatpush1.msra.mxu0 %v4359
    %4554 = vmatprep.subr.mxu0 0.0
    %4555 = vmatpush1.msra.mxu0 %v4360
    %4556 = vmatprep.subr.mxu0 0.0
    %4557 = vmatpush1.msra.mxu0 %v4361
    %4558 = vmatprep.subr.mxu0 0.0
    %4559 = vmatpush1.msra.mxu0 %v4362
    %4560 = vmatprep.subr.mxu0 0.0
    %4561 = vmatpush1.msra.mxu0 %v4363
    %4562 = vmatprep.subr.mxu0 0.0
    %4563 = vmatpush1.msra.mxu0 %v4364
    %4564 = vmatprep.subr.mxu0 0.0
    %4565 = vmatpush1.msra.mxu0 %v4365
    %4566 = vmatprep.subr.mxu0 0.0
    %4567 = vmatpush1.msra.mxu0 %v4366
    %4568 = vmatprep.subr.mxu0 0.0
    %4569 = vmatpush1.msra.mxu0 %v4367
    %4570 = vmatprep.subr.mxu0 0.0
    %4571 = vmatpush1.msra.mxu0 %v4368
    %4572 = vmatprep.subr.mxu0 0.0
    %4573 = vmatpush1.msra.mxu0 %v4369
    %4574 = vmatprep.subr.mxu0 0.0
    %4575 = vmatpush1.msra.mxu0 %v4370
    %4576 = vmatprep.subr.mxu0 0.0
    %4577 = vmatpush1.msra.mxu0 %v4371
    %4578 = vmatprep.subr.mxu0 0.0
    %4579 = vmatpush1.msra.mxu0 %v4372
    %4580 = vmatprep.subr.mxu0 0.0
    %4581 = vmatpush1.msra.mxu0 %v4373
    %4582 = vmatprep.subr.mxu0 0.0
    %4583 = vmatpush1.msra.mxu0 %v4374
    %4584 = vmatprep.subr.mxu0 0.0
    %4585 = vmatpush1.msra.mxu0 %v4375
    %4586 = vmatprep.subr.mxu0 0.0
    %4587 = vmatpush1.msra.mxu0 %v4376
    %4588 = vmatprep.subr.mxu0 0.0
    %4589 = vmatpush1.msra.mxu0 %v4377
    %4590 = vmatprep.subr.mxu0 0.0
    %4591 = vmatpush1.msra.mxu0 %v4378
    %4592 = vmatprep.subr.mxu0 0.0
    %4593 = vmatpush1.msra.mxu0 %v4379
    %4594 = vmatprep.mubr.f32.mxu0 %v4277
    %4595 = vmatmul.mubr.f32.gmra.mrb[0].mxu0 %v4276
    %v4596 = vpop.f32.mrb[0].mxu0
    %v4597 = vadd.f32 %v4522, %v4596
    %v4598 = vpop.f32.mrb[0].mxu0
    %4599 = vmatprep.mubr.f32.mxu0 %v4283
    %4600 = vmatmul.mubr.f32.gmra.mrb[0].mxu0 %v4282
    %v4601 = vpop.f32.mrb[0].mxu0
    %v4602 = vadd.f32 %v4527, %v4601
    %v4603 = vpop.f32.mrb[0].mxu0
    %4604 = vdwg.mxu0
    %v4605 = vsel %vm918, %v4597, 0.0
    %v4606 = vsel %vm918, %v4602, 0.0
    %v4607 = vadd.f32 %v4605, %v4606
    %v4608 = vrot.slane %v4607, 4
    %v4609 = vadd.f32 %v4607, %v4608
    %v4610 = vrot.slane %v4609, 2
    %v4611 = vadd.f32 %v4609, %v4610
    %v4612 = vrot.slane %v4611, 1
    %v4613 = vadd.f32 %v4611, %v4612
    %v4614 = vld [vmem:[#allocation4] sm:$0x1]
    %4616 = vset.pattern.permute.xlu0 0
    %4617 = vperm.xlu0 %4616, %v4614
    %v4618 = vpop.permute.xlu0 %4617
    %v4620 = vlaneseq
    %v4621 = vshrl.u32 %v4620, 7
    %v4622 = vsub.s32 0, %v4621
    %v4623 = vrot.slane %v4618, %v4622
    %v4624 = vadd.f32 %v4613, %v4623
    %vm4625 = vcmask 8192
    %4626 = vst.msk [vmem:[#allocation8] sm:$0x1] %vm4625, %v4624
    // Predicated region
    $region50: #{_lambda_.1} parent=1 // pred_check
      _
    $region51: #{_lambda_.1} parent=1 // pred_check_branch
      %4628 = sbr.rel (0) target = $region53
    $region52: #{_lambda_.1} parent=1 // pred_region
      %s4630 = ssub.s32 16, 16
      %4631 = vsyncadd [#allocation7], %s4630
      %s4633 = sshll.u32 [#allocation8], 4
      %s4634 = int_to_ptr.vmem [resolvable:$true] %s4633
      %4636 = dma.vmem_to_hbm [thread:$0]  %s4634, 16, %s11, [#allocation7]
    $region53: #{_lambda_.1} parent=1 // pred_fallthru
      _
    // Predicated region
    $region54: #{_lambda_.1} parent=1 // pred_check
      _
    $region55: #{_lambda_.1} parent=1 // pred_check_branch
      %4638 = sbr.rel (0) target = $region57
    $region56: #{_lambda_.1} parent=1 // pred_region
      %4639 = dma.done [#allocation7], 16
    $region57: #{_lambda_.1} parent=1 // pred_fallthru
      _
    %4640 = vsyncpa [#allocation6], 1
    %4641 = vsyncpa [#allocation7], 1

</llo_original>
